<compile_context>
chip_gen: v5e
topology: v5e:2x2
jax: 0.10.0
libtpu: 0.0.40
codegen_flags: <defaults>
</compile_context>

<pallas_src>
import functools

import jax
import jax.numpy as jnp
from jax import lax
from jax.experimental import pallas as pl
from jax.experimental.pallas import tpu as pltpu


# ----------------------------------------------------------------------------
# Pallas kernel.  Grid axis = K chunks of the input-feature dimension.
#   x_ref     : (T*B, Kc)  bf16   time-major frame features (K chunk)
#   wih_ref   : (Kc, 4H)   bf16   W_ih^T chunk (streamed / double-buffered)
#   whh_ref   : (H, 4H)    f32    W_hh^T (resident)
#   b_ref     : (1, 4H)    f32    b_ih + b_hh
#   wcls_ref  : (1, H)     f32    classifier weight row
#   bcls_ref  : (1, 1)     f32    classifier bias
#   out_ref   : (B, 1)     f32    sigmoid probabilities
#   gacc_ref  : (T*B, 4H)  f32    VMEM accumulator for the input projection
# ----------------------------------------------------------------------------
def _lstm_kernel(x_ref, wih_ref, whh_ref, b_ref, wcls_ref, bcls_ref,
                 out_ref, gacc_ref, *, seq_len, batch, hidden_dim, maxpool):
    T, B, H = seq_len, batch, hidden_dim
    k = pl.program_id(0)
    nk = pl.num_programs(0)

    # ---- Streamed input projection: accumulate (T*B, Kc) @ (Kc, 4H) chunks.
    @pl.when(k == 0)
    def _():
        # Fold the LSTM biases (b_ih + b_hh) into the accumulator init.
        gacc_ref[...] = jnp.broadcast_to(b_ref[...], gacc_ref.shape)

    gacc_ref[...] += jnp.dot(x_ref[...], wih_ref[...],
                             preferred_element_type=jnp.float32)

    # ---- Recurrence + classifier: only on the last K chunk.
    @pl.when(k == nk - 1)
    def _():
        whh = whh_ref[...]                              # (H, 4H) f32, once
        h = jnp.zeros((B, H), jnp.float32)
        c = jnp.zeros((B, H), jnp.float32)
        # T >= 1 always here (asserted in the wrapper), so -inf is safe.
        mx = jnp.full((B, H), -jnp.inf, jnp.float32) if maxpool else None

        # Fully unrolled recurrence (T is small & static): only the tiny
        # (B, H) @ (H, 4H) f32 matmul and the gate math are serial.
        for t in range(T):
            gx = gacc_ref[t * B:(t + 1) * B, :]         # (B, 4H), B % 8 == 0
            gates = gx + jnp.dot(h, whh, preferred_element_type=jnp.float32)

            # Gate columns were reordered to [i, f, o, g] at init time, so
            # one sigmoid covers i/f/o in a single contiguous slice.
            sig = jax.nn.sigmoid(gates[:, 0:3 * H])
            i_g = sig[:, 0 * H:1 * H]
            f_g = sig[:, 1 * H:2 * H]
            o_g = sig[:, 2 * H:3 * H]
            g_g = jnp.tanh(gates[:, 3 * H:4 * H])

            c = f_g * c + i_g * g_g
            h = o_g * jnp.tanh(c)
            if maxpool:
                mx = jnp.maximum(mx, h)

        feat = mx if maxpool else h                     # (B, H)
        # Classifier Linear(H, 1): VPU multiply + cross-lane reduce.
        logits = (jnp.sum(feat * wcls_ref[...], axis=-1, keepdims=True)
                  + bcls_ref[...])
        out_ref[...] = jax.nn.sigmoid(logits).astype(out_ref.dtype)


# ----------------------------------------------------------------------------
# One-time (init-time) parameter preparation — NOT on the per-call path.
# ----------------------------------------------------------------------------
def prepare_lstm_params(w_ih, w_hh, b_ih, b_hh, w_cls, b_cls):
    """Reorders PyTorch's [i, f, g, o] gate blocks to [i, f, o, g], transposes
    to (in, 4H) layout, and casts only the large streamed W_ih to bf16."""
    H = w_hh.shape[1]
    perm = jnp.concatenate([jnp.arange(0, 2 * H),        # i, f
                            jnp.arange(3 * H, 4 * H),    # o
                            jnp.arange(2 * H, 3 * H)])   # g
    return dict(
        w_ih_t=jnp.asarray(w_ih[perm].T, jnp.bfloat16),            # (I, 4H)
        w_hh_t=jnp.asarray(w_hh[perm].T, jnp.float32),             # (H, 4H)
        b=jnp.asarray((b_ih + b_hh)[perm][None, :], jnp.float32),  # (1, 4H)
        w_cls=jnp.asarray(w_cls, jnp.float32),                     # (1, H)
        b_cls=jnp.asarray(b_cls[None, :], jnp.float32),            # (1, 1)
    )


def lstm_forward_pallas(features, params, *, maxpool=False):
    """features: (T, B, I) float32.  Returns (B, 1) sigmoid probabilities."""
    T, B, I = features.shape
    H = params["w_ih_t"].shape[1] // 4
    assert T >= 1

    # Pad batch to a sublane multiple (>= 8): aligns per-step gate slices to
    # (8,128) tiles and uses full vreg sublanes through the recurrence.
    B_pad = max(8, -(-B // 8) * 8)
    feats = features
    if B_pad != B:
        feats = jnp.pad(features, ((0, 0), (0, B_pad - B), (0, 0)))
    x2d = feats.reshape(T * B_pad, I).astype(jnp.bfloat16)        # (T*B_pad, I)

    # K-chunking of the input-feature dim: streams W_ih's 2 MiB DMA behind
    # the MXU projection via BlockSpec double-buffering.
    if I % 512 == 0:
        kc = 512
    elif I % 256 == 0:
        kc = 256
    elif I % 128 == 0:
        kc = 128
    else:
        kc = I
    nk = I // kc

    kernel = functools.partial(_lstm_kernel, seq_len=T, batch=B_pad,
                               hidden_dim=H, maxpool=maxpool)

    out = pl.pallas_call(
        kernel,
        out_shape=jax.ShapeDtypeStruct((B_pad, 1), jnp.float32),
        grid=(nk,),
        in_specs=[
            pl.BlockSpec((T * B_pad, kc), lambda k: (0, k)),   # x (K chunk)
            pl.BlockSpec((kc, 4 * H), lambda k: (k, 0)),       # W_ih^T (streamed)
            pl.BlockSpec((H, 4 * H), lambda k: (0, 0)),        # W_hh^T (resident)
            pl.BlockSpec((1, 4 * H), lambda k: (0, 0)),        # b_ih + b_hh
            pl.BlockSpec((1, H), lambda k: (0, 0)),            # W_cls row
            pl.BlockSpec((1, 1), lambda k: (0, 0)),            # b_cls
        ],
        out_specs=pl.BlockSpec((B_pad, 1), lambda k: (0, 0)),
        scratch_shapes=[pltpu.VMEM((T * B_pad, 4 * H), jnp.float32)],
        compiler_params=pltpu.CompilerParams(
            dimension_semantics=("arbitrary",)),   # K is a reduction axis
    )(x2d, params["w_ih_t"], params["w_hh_t"], params["b"],
      params["w_cls"], params["b_cls"])

    # TODO(synk): with multiple clips / ensemble members, stack them into the
    # batch dim and add a leading "parallel" grid axis so v7x's second
    # TensorCore does work; a single (T, B) sequence has no independent work.
    return out[:B]


# ----------------------------------------------------------------------------
# Pure-JAX reference (mirrors PyTorch nn.LSTM + Linear + Sigmoid semantics).
# ----------------------------------------------------------------------------
def lstm_forward_ref(features, w_ih, w_hh, b_ih, b_hh, w_cls, b_cls,
                     *, maxpool=False):
    T, B, I = features.shape
    H = w_hh.shape[1]

    def step(carry, x):
        h, c = carry
        gates = x @ w_ih.T + b_ih + h @ w_hh.T + b_hh
        i, f, g, o = jnp.split(gates, 4, axis=-1)
        i, f, o = jax.nn.sigmoid(i), jax.nn.sigmoid(f), jax.nn.sigmoid(o)
        g = jnp.tanh(g)
        c = f * c + i * g
        h = o * jnp.tanh(c)
        return (h, c), h

    (h, _), outs = lax.scan(step,
                            (jnp.zeros((B, H), jnp.float32),
                             jnp.zeros((B, H), jnp.float32)),
                            features)
    feat = outs.max(axis=0) if maxpool else h
    return jax.nn.sigmoid(feat @ w_cls.T + b_cls)


if __name__ == "__main__":
    # Small shapes consistent with the module: n_frames (seq) = 8, batch = 2,
    # feature dim = 2048 (hard-coded in nn.LSTM(2048, hidden_dim)), hidden = 128.
    n_frames, batch, in_dim, hidden = 8, 2, 2048, 128

    key = jax.random.PRNGKey(0)
    keys = jax.random.split(key, 8)

    # Synthesize per-frame feature_extracter outputs: list of (B, 2048, 1, 1).
    images_feats = [
        jax.random.normal(k, (batch, in_dim, 1, 1), jnp.float32) * 0.1
        for k in jax.random.split(keys[0], n_frames)
    ]
    # Reproduce forward() glue:  squeeze(dim=3) -> (B, 2048, 1); transpose(1,2)
    # -> (B, 1, 2048); cat(dim=1) -> (B, T, 2048); transpose(0,1) -> (T, B, 2048).
    X = [jnp.transpose(jnp.squeeze(x, axis=3), (0, 2, 1)) for x in images_feats]
    features = jnp.transpose(jnp.concatenate(X, axis=1), (1, 0, 2))

    # Deterministic parameter init (PyTorch-style uniform(-1/sqrt(H), 1/sqrt(H))).
    s = 1.0 / jnp.sqrt(hidden).astype(jnp.float32)
    w_ih = jax.random.uniform(keys[1], (4 * hidden, in_dim), jnp.float32, -s, s)
    w_hh = jax.random.uniform(keys[2], (4 * hidden, hidden), jnp.float32, -s, s)
    b_ih = jax.random.uniform(keys[3], (4 * hidden,), jnp.float32, -s, s)
    b_hh = jax.random.uniform(keys[4], (4 * hidden,), jnp.float32, -s, s)
    w_cls = jax.random.uniform(keys[5], (1, hidden), jnp.float32, -s, s)
    b_cls = jax.random.uniform(keys[6], (1,), jnp.float32, -s, s)

    # One-time parameter prep (init-time; off the per-call path).
    params = prepare_lstm_params(w_ih, w_hh, b_ih, b_hh, w_cls, b_cls)
    params = jax.tree_util.tree_map(jax.block_until_ready, params)

    forward = jax.jit(lstm_forward_pallas, static_argnames=("maxpool",))

    ok = True
    for mp_flag in (False, True):   # module default is maxpool=False
        out = jax.block_until_ready(forward(features, params, maxpool=mp_flag))
        ref = lstm_forward_ref(features, w_ih, w_hh, b_ih, b_hh,
                               w_cls, b_cls, maxpool=mp_flag)
        assert out.shape == (batch, 1), out.shape
        # bf16 W_ih vs. f32 reference -> loosened tolerance.
        ok &= bool(jnp.allclose(out, ref, atol=2e-2, rtol=0.0))

    assert ok
    print("KERNEL_OK")
</pallas_src>

<mosaic_0001>
module attributes {stable_mosaic.version = 11 : i64} {
  func.func @_lstm_kernel(%arg0: i32, %arg1: memref<64x512xbf16, #tpu.memory_space<vmem>>, %arg2: memref<512x512xbf16, #tpu.memory_space<vmem>>, %arg3: memref<128x512xf32, #tpu.memory_space<vmem>>, %arg4: memref<1x512xf32, #tpu.memory_space<vmem>>, %arg5: memref<1x128xf32, #tpu.memory_space<vmem>>, %arg6: memref<1x1xf32, #tpu.memory_space<vmem>>, %arg7: memref<8x1xf32, #tpu.memory_space<vmem>>, %arg8: memref<64x512xf32, #tpu.memory_space<vmem>>) attributes {dimension_semantics = [#tpu.dimension_semantics<arbitrary>], iteration_bounds = array<i64: 4>, scalar_prefetch = 0 : i64, scratch_operands = 1 : i64, tpu.core_type = #tpu.core_type<tc>, window_params = [{transform_indices = @transform_0, window_bounds = array<i64: 64, 512>}, {transform_indices = @transform_1, window_bounds = array<i64: 512, 512>}, {pipeline_mode = #tpu.pipeline_mode<synchronous>, transform_indices = @transform_2, window_bounds = array<i64: 128, 512>}, {pipeline_mode = #tpu.pipeline_mode<synchronous>, transform_indices = @transform_3, window_bounds = array<i64: 1, 512>}, {pipeline_mode = #tpu.pipeline_mode<synchronous>, transform_indices = @transform_4, window_bounds = array<i64: 1, 128>}, {pipeline_mode = #tpu.pipeline_mode<synchronous>, transform_indices = @transform_5, window_bounds = array<i64: 1, 1>}, {pipeline_mode = #tpu.pipeline_mode<synchronous>, transform_indices = @transform_6, window_bounds = array<i64: 8, 1>}]} {
    %c0_i32 = arith.constant 0 : i32
    %0 = arith.cmpi eq, %arg0, %c0_i32 : i32
    %1 = arith.extui %0 : i1 to i32
    %c0_i32_0 = arith.constant 0 : i32
    %2 = arith.cmpi ne, %1, %c0_i32_0 : i32
    scf.if %2 {
      %c0_9 = arith.constant 0 : index
      %c0_10 = arith.constant 0 : index
      %12 = vector.load %arg4[%c0_9, %c0_10] : memref<1x512xf32, #tpu.memory_space<vmem>>, vector<1x512xf32>
      %13 = vector.shape_cast %12 : vector<1x512xf32> to vector<1x512xf32>
      %14 = vector.broadcast %13 : vector<1x512xf32> to vector<64x512xf32>
      %c0_11 = arith.constant 0 : index
      %c0_12 = arith.constant 0 : index
      %15 = vector.load %arg8[%c0_11, %c0_12] : memref<64x512xf32, #tpu.memory_space<vmem>>, vector<64x512xf32>
      tpu.vector_store %arg8[%c0_11, %c0_12], %14 {strides = array<i32>} : memref<64x512xf32, #tpu.memory_space<vmem>>, vector<64x512xf32>,
    } else {
    }
    %c0 = arith.constant 0 : index
    %c0_1 = arith.constant 0 : index
    %3 = vector.load %arg8[%c0, %c0_1] : memref<64x512xf32, #tpu.memory_space<vmem>>, vector<64x512xf32>
    %c0_2 = arith.constant 0 : index
    %c0_3 = arith.constant 0 : index
    %4 = vector.load %arg1[%c0_2, %c0_3] : memref<64x512xbf16, #tpu.memory_space<vmem>>, vector<64x512xbf16>
    %c0_4 = arith.constant 0 : index
    %c0_5 = arith.constant 0 : index
    %5 = vector.load %arg2[%c0_4, %c0_5] : memref<512x512xbf16, #tpu.memory_space<vmem>>, vector<512x512xbf16>
    %cst = arith.constant dense<0.000000e+00> : vector<64x512xf32>
    %6 = tpu.matmul %4, %5, %cst {dimension_numbers = #tpu.dot_dimension_numbers<[1], [0], [0], [1], [0, 0, 1, 1], [], []>} : vector<64x512xbf16>, vector<512x512xbf16>, vector<64x512xf32> -> vector<64x512xf32>
    %7 = arith.addf %3, %6 : vector<64x512xf32>
    %c0_6 = arith.constant 0 : index
    %c0_7 = arith.constant 0 : index
    %8 = vector.load %arg8[%c0_6, %c0_7] : memref<64x512xf32, #tpu.memory_space<vmem>>, vector<64x512xf32>
    tpu.vector_store %arg8[%c0_6, %c0_7], %7 {strides = array<i32>} : memref<64x512xf32, #tpu.memory_space<vmem>>, vector<64x512xf32>,
    %c3_i32 = arith.constant 3 : i32
    %9 = arith.cmpi eq, %arg0, %c3_i32 : i32
    %10 = arith.extui %9 : i1 to i32
    %c0_i32_8 = arith.constant 0 : i32
    %11 = arith.cmpi ne, %10, %c0_i32_8 : i32
    scf.if %11 {
      %c0_9 = arith.constant 0 : index
      %c0_10 = arith.constant 0 : index
      %12 = vector.load %arg3[%c0_9, %c0_10] : memref<128x512xf32, #tpu.memory_space<vmem>>, vector<128x512xf32>
      %cst_11 = arith.constant 0.000000e+00 : f32
      %13 = vector.broadcast %cst_11 : f32 to vector<8x128xf32>
      %cst_12 = arith.constant 0.000000e+00 : f32
      %14 = vector.broadcast %cst_12 : f32 to vector<8x128xf32>
      %c0_13 = arith.constant 0 : index
      %c0_14 = arith.constant 0 : index
      %15 = vector.load %arg8[%c0_13, %c0_14] : memref<64x512xf32, #tpu.memory_space<vmem>>, vector<8x512xf32>
      %cst_15 = arith.constant dense<0.000000e+00> : vector<8x512xf32>
      %16 = tpu.matmul %13, %12, %cst_15 {dimension_numbers = #tpu.dot_dimension_numbers<[1], [0], [0], [1], [0, 0, 1, 1], [], []>} : vector<8x128xf32>, vector<128x512xf32>, vector<8x512xf32> -> vector<8x512xf32>
      %17 = arith.addf %15, %16 : vector<8x512xf32>
      %18 = vector.extract_strided_slice %17 {offsets = [0, 0], sizes = [8, 384], strides = [1, 1]} : vector<8x512xf32> to vector<8x384xf32>
      %19 = arith.negf %18 : vector<8x384xf32>
      %20 = math.exp %19 : vector<8x384xf32>
      %cst_16 = arith.constant 1.000000e+00 : f32
      %21 = vector.broadcast %cst_16 : f32 to vector<8x384xf32>
      %22 = arith.addf %21, %20 : vector<8x384xf32>
      %23 = arith.divf %21, %22 : vector<8x384xf32>
      %24 = vector.extract_strided_slice %23 {offsets = [0, 0], sizes = [8, 128], strides = [1, 1]} : vector<8x384xf32> to vector<8x128xf32>
      %25 = vector.extract_strided_slice %23 {offsets = [0, 128], sizes = [8, 128], strides = [1, 1]} : vector<8x384xf32> to vector<8x128xf32>
      %26 = vector.extract_strided_slice %23 {offsets = [0, 256], sizes = [8, 128], strides = [1, 1]} : vector<8x384xf32> to vector<8x128xf32>
      %27 = vector.extract_strided_slice %17 {offsets = [0, 384], sizes = [8, 128], strides = [1, 1]} : vector<8x512xf32> to vector<8x128xf32>
      %28 = math.tanh %27 : vector<8x128xf32>
      %29 = arith.mulf %25, %14 : vector<8x128xf32>
      %30 = arith.mulf %24, %28 : vector<8x128xf32>
      %31 = arith.addf %29, %30 : vector<8x128xf32>
      %32 = math.tanh %31 : vector<8x128xf32>
      %33 = arith.mulf %26, %32 : vector<8x128xf32>
      %c8 = arith.constant 8 : index
      %c0_17 = arith.constant 0 : index
      %34 = vector.load %arg8[%c8, %c0_17] : memref<64x512xf32, #tpu.memory_space<vmem>>, vector<8x512xf32>
      %cst_18 = arith.constant dense<0.000000e+00> : vector<8x512xf32>
      %35 = tpu.matmul %33, %12, %cst_18 {dimension_numbers = #tpu.dot_dimension_numbers<[1], [0], [0], [1], [0, 0, 1, 1], [], []>} : vector<8x128xf32>, vector<128x512xf32>, vector<8x512xf32> -> vector<8x512xf32>
      %36 = arith.addf %34, %35 : vector<8x512xf32>
      %37 = vector.extract_strided_slice %36 {offsets = [0, 0], sizes = [8, 384], strides = [1, 1]} : vector<8x512xf32> to vector<8x384xf32>
      %38 = arith.negf %37 : vector<8x384xf32>
      %39 = math.exp %38 : vector<8x384xf32>
      %cst_19 = arith.constant 1.000000e+00 : f32
      %40 = vector.broadcast %cst_19 : f32 to vector<8x384xf32>
      %41 = arith.addf %40, %39 : vector<8x384xf32>
      %42 = arith.divf %40, %41 : vector<8x384xf32>
      %43 = vector.extract_strided_slice %42 {offsets = [0, 0], sizes = [8, 128], strides = [1, 1]} : vector<8x384xf32> to vector<8x128xf32>
      %44 = vector.extract_strided_slice %42 {offsets = [0, 128], sizes = [8, 128], strides = [1, 1]} : vector<8x384xf32> to vector<8x128xf32>
      %45 = vector.extract_strided_slice %42 {offsets = [0, 256], sizes = [8, 128], strides = [1, 1]} : vector<8x384xf32> to vector<8x128xf32>
      %46 = vector.extract_strided_slice %36 {offsets = [0, 384], sizes = [8, 128], strides = [1, 1]} : vector<8x512xf32> to vector<8x128xf32>
      %47 = math.tanh %46 : vector<8x128xf32>
      %48 = arith.mulf %44, %31 : vector<8x128xf32>
      %49 = arith.mulf %43, %47 : vector<8x128xf32>
      %50 = arith.addf %48, %49 : vector<8x128xf32>
      %51 = math.tanh %50 : vector<8x128xf32>
      %52 = arith.mulf %45, %51 : vector<8x128xf32>
      %c16 = arith.constant 16 : index
      %c0_20 = arith.constant 0 : index
      %53 = vector.load %arg8[%c16, %c0_20] : memref<64x512xf32, #tpu.memory_space<vmem>>, vector<8x512xf32>
      %cst_21 = arith.constant dense<0.000000e+00> : vector<8x512xf32>
      %54 = tpu.matmul %52, %12, %cst_21 {dimension_numbers = #tpu.dot_dimension_numbers<[1], [0], [0], [1], [0, 0, 1, 1], [], []>} : vector<8x128xf32>, vector<128x512xf32>, vector<8x512xf32> -> vector<8x512xf32>
      %55 = arith.addf %53, %54 : vector<8x512xf32>
      %56 = vector.extract_strided_slice %55 {offsets = [0, 0], sizes = [8, 384], strides = [1, 1]} : vector<8x512xf32> to vector<8x384xf32>
      %57 = arith.negf %56 : vector<8x384xf32>
      %58 = math.exp %57 : vector<8x384xf32>
      %cst_22 = arith.constant 1.000000e+00 : f32
      %59 = vector.broadcast %cst_22 : f32 to vector<8x384xf32>
      %60 = arith.addf %59, %58 : vector<8x384xf32>
      %61 = arith.divf %59, %60 : vector<8x384xf32>
      %62 = vector.extract_strided_slice %61 {offsets = [0, 0], sizes = [8, 128], strides = [1, 1]} : vector<8x384xf32> to vector<8x128xf32>
      %63 = vector.extract_strided_slice %61 {offsets = [0, 128], sizes = [8, 128], strides = [1, 1]} : vector<8x384xf32> to vector<8x128xf32>
      %64 = vector.extract_strided_slice %61 {offsets = [0, 256], sizes = [8, 128], strides = [1, 1]} : vector<8x384xf32> to vector<8x128xf32>
      %65 = vector.extract_strided_slice %55 {offsets = [0, 384], sizes = [8, 128], strides = [1, 1]} : vector<8x512xf32> to vector<8x128xf32>
      %66 = math.tanh %65 : vector<8x128xf32>
      %67 = arith.mulf %63, %50 : vector<8x128xf32>
      %68 = arith.mulf %62, %66 : vector<8x128xf32>
      %69 = arith.addf %67, %68 : vector<8x128xf32>
      %70 = math.tanh %69 : vector<8x128xf32>
      %71 = arith.mulf %64, %70 : vector<8x128xf32>
      %c24 = arith.constant 24 : index
      %c0_23 = arith.constant 0 : index
      %72 = vector.load %arg8[%c24, %c0_23] : memref<64x512xf32, #tpu.memory_space<vmem>>, vector<8x512xf32>
      %cst_24 = arith.constant dense<0.000000e+00> : vector<8x512xf32>
      %73 = tpu.matmul %71, %12, %cst_24 {dimension_numbers = #tpu.dot_dimension_numbers<[1], [0], [0], [1], [0, 0, 1, 1], [], []>} : vector<8x128xf32>, vector<128x512xf32>, vector<8x512xf32> -> vector<8x512xf32>
      %74 = arith.addf %72, %73 : vector<8x512xf32>
      %75 = vector.extract_strided_slice %74 {offsets = [0, 0], sizes = [8, 384], strides = [1, 1]} : vector<8x512xf32> to vector<8x384xf32>
      %76 = arith.negf %75 : vector<8x384xf32>
      %77 = math.exp %76 : vector<8x384xf32>
      %cst_25 = arith.constant 1.000000e+00 : f32
      %78 = vector.broadcast %cst_25 : f32 to vector<8x384xf32>
      %79 = arith.addf %78, %77 : vector<8x384xf32>
      %80 = arith.divf %78, %79 : vector<8x384xf32>
      %81 = vector.extract_strided_slice %80 {offsets = [0, 0], sizes = [8, 128], strides = [1, 1]} : vector<8x384xf32> to vector<8x128xf32>
      %82 = vector.extract_strided_slice %80 {offsets = [0, 128], sizes = [8, 128], strides = [1, 1]} : vector<8x384xf32> to vector<8x128xf32>
      %83 = vector.extract_strided_slice %80 {offsets = [0, 256], sizes = [8, 128], strides = [1, 1]} : vector<8x384xf32> to vector<8x128xf32>
      %84 = vector.extract_strided_slice %74 {offsets = [0, 384], sizes = [8, 128], strides = [1, 1]} : vector<8x512xf32> to vector<8x128xf32>
      %85 = math.tanh %84 : vector<8x128xf32>
      %86 = arith.mulf %82, %69 : vector<8x128xf32>
      %87 = arith.mulf %81, %85 : vector<8x128xf32>
      %88 = arith.addf %86, %87 : vector<8x128xf32>
      %89 = math.tanh %88 : vector<8x128xf32>
      %90 = arith.mulf %83, %89 : vector<8x128xf32>
      %c32 = arith.constant 32 : index
      %c0_26 = arith.constant 0 : index
      %91 = vector.load %arg8[%c32, %c0_26] : memref<64x512xf32, #tpu.memory_space<vmem>>, vector<8x512xf32>
      %cst_27 = arith.constant dense<0.000000e+00> : vector<8x512xf32>
      %92 = tpu.matmul %90, %12, %cst_27 {dimension_numbers = #tpu.dot_dimension_numbers<[1], [0], [0], [1], [0, 0, 1, 1], [], []>} : vector<8x128xf32>, vector<128x512xf32>, vector<8x512xf32> -> vector<8x512xf32>
      %93 = arith.addf %91, %92 : vector<8x512xf32>
      %94 = vector.extract_strided_slice %93 {offsets = [0, 0], sizes = [8, 384], strides = [1, 1]} : vector<8x512xf32> to vector<8x384xf32>
      %95 = arith.negf %94 : vector<8x384xf32>
      %96 = math.exp %95 : vector<8x384xf32>
      %cst_28 = arith.constant 1.000000e+00 : f32
      %97 = vector.broadcast %cst_28 : f32 to vector<8x384xf32>
      %98 = arith.addf %97, %96 : vector<8x384xf32>
      %99 = arith.divf %97, %98 : vector<8x384xf32>
      %100 = vector.extract_strided_slice %99 {offsets = [0, 0], sizes = [8, 128], strides = [1, 1]} : vector<8x384xf32> to vector<8x128xf32>
      %101 = vector.extract_strided_slice %99 {offsets = [0, 128], sizes = [8, 128], strides = [1, 1]} : vector<8x384xf32> to vector<8x128xf32>
      %102 = vector.extract_strided_slice %99 {offsets = [0, 256], sizes = [8, 128], strides = [1, 1]} : vector<8x384xf32> to vector<8x128xf32>
      %103 = vector.extract_strided_slice %93 {offsets = [0, 384], sizes = [8, 128], strides = [1, 1]} : vector<8x512xf32> to vector<8x128xf32>
      %104 = math.tanh %103 : vector<8x128xf32>
      %105 = arith.mulf %101, %88 : vector<8x128xf32>
      %106 = arith.mulf %100, %104 : vector<8x128xf32>
      %107 = arith.addf %105, %106 : vector<8x128xf32>
      %108 = math.tanh %107 : vector<8x128xf32>
      %109 = arith.mulf %102, %108 : vector<8x128xf32>
      %c40 = arith.constant 40 : index
      %c0_29 = arith.constant 0 : index
      %110 = vector.load %arg8[%c40, %c0_29] : memref<64x512xf32, #tpu.memory_space<vmem>>, vector<8x512xf32>
      %cst_30 = arith.constant dense<0.000000e+00> : vector<8x512xf32>
      %111 = tpu.matmul %109, %12, %cst_30 {dimension_numbers = #tpu.dot_dimension_numbers<[1], [0], [0], [1], [0, 0, 1, 1], [], []>} : vector<8x128xf32>, vector<128x512xf32>, vector<8x512xf32> -> vector<8x512xf32>
      %112 = arith.addf %110, %111 : vector<8x512xf32>
      %113 = vector.extract_strided_slice %112 {offsets = [0, 0], sizes = [8, 384], strides = [1, 1]} : vector<8x512xf32> to vector<8x384xf32>
      %114 = arith.negf %113 : vector<8x384xf32>
      %115 = math.exp %114 : vector<8x384xf32>
      %cst_31 = arith.constant 1.000000e+00 : f32
      %116 = vector.broadcast %cst_31 : f32 to vector<8x384xf32>
      %117 = arith.addf %116, %115 : vector<8x384xf32>
      %118 = arith.divf %116, %117 : vector<8x384xf32>
      %119 = vector.extract_strided_slice %118 {offsets = [0, 0], sizes = [8, 128], strides = [1, 1]} : vector<8x384xf32> to vector<8x128xf32>
      %120 = vector.extract_strided_slice %118 {offsets = [0, 128], sizes = [8, 128], strides = [1, 1]} : vector<8x384xf32> to vector<8x128xf32>
      %121 = vector.extract_strided_slice %118 {offsets = [0, 256], sizes = [8, 128], strides = [1, 1]} : vector<8x384xf32> to vector<8x128xf32>
      %122 = vector.extract_strided_slice %112 {offsets = [0, 384], sizes = [8, 128], strides = [1, 1]} : vector<8x512xf32> to vector<8x128xf32>
      %123 = math.tanh %122 : vector<8x128xf32>
      %124 = arith.mulf %120, %107 : vector<8x128xf32>
      %125 = arith.mulf %119, %123 : vector<8x128xf32>
      %126 = arith.addf %124, %125 : vector<8x128xf32>
      %127 = math.tanh %126 : vector<8x128xf32>
      %128 = arith.mulf %121, %127 : vector<8x128xf32>
      %c48 = arith.constant 48 : index
      %c0_32 = arith.constant 0 : index
      %129 = vector.load %arg8[%c48, %c0_32] : memref<64x512xf32, #tpu.memory_space<vmem>>, vector<8x512xf32>
      %cst_33 = arith.constant dense<0.000000e+00> : vector<8x512xf32>
      %130 = tpu.matmul %128, %12, %cst_33 {dimension_numbers = #tpu.dot_dimension_numbers<[1], [0], [0], [1], [0, 0, 1, 1], [], []>} : vector<8x128xf32>, vector<128x512xf32>, vector<8x512xf32> -> vector<8x512xf32>
      %131 = arith.addf %129, %130 : vector<8x512xf32>
      %132 = vector.extract_strided_slice %131 {offsets = [0, 0], sizes = [8, 384], strides = [1, 1]} : vector<8x512xf32> to vector<8x384xf32>
      %133 = arith.negf %132 : vector<8x384xf32>
      %134 = math.exp %133 : vector<8x384xf32>
      %cst_34 = arith.constant 1.000000e+00 : f32
      %135 = vector.broadcast %cst_34 : f32 to vector<8x384xf32>
      %136 = arith.addf %135, %134 : vector<8x384xf32>
      %137 = arith.divf %135, %136 : vector<8x384xf32>
      %138 = vector.extract_strided_slice %137 {offsets = [0, 0], sizes = [8, 128], strides = [1, 1]} : vector<8x384xf32> to vector<8x128xf32>
      %139 = vector.extract_strided_slice %137 {offsets = [0, 128], sizes = [8, 128], strides = [1, 1]} : vector<8x384xf32> to vector<8x128xf32>
      %140 = vector.extract_strided_slice %137 {offsets = [0, 256], sizes = [8, 128], strides = [1, 1]} : vector<8x384xf32> to vector<8x128xf32>
      %141 = vector.extract_strided_slice %131 {offsets = [0, 384], sizes = [8, 128], strides = [1, 1]} : vector<8x512xf32> to vector<8x128xf32>
      %142 = math.tanh %141 : vector<8x128xf32>
      %143 = arith.mulf %139, %126 : vector<8x128xf32>
      %144 = arith.mulf %138, %142 : vector<8x128xf32>
      %145 = arith.addf %143, %144 : vector<8x128xf32>
      %146 = math.tanh %145 : vector<8x128xf32>
      %147 = arith.mulf %140, %146 : vector<8x128xf32>
      %c56 = arith.constant 56 : index
      %c0_35 = arith.constant 0 : index
      %148 = vector.load %arg8[%c56, %c0_35] : memref<64x512xf32, #tpu.memory_space<vmem>>, vector<8x512xf32>
      %cst_36 = arith.constant dense<0.000000e+00> : vector<8x512xf32>
      %149 = tpu.matmul %147, %12, %cst_36 {dimension_numbers = #tpu.dot_dimension_numbers<[1], [0], [0], [1], [0, 0, 1, 1], [], []>} : vector<8x128xf32>, vector<128x512xf32>, vector<8x512xf32> -> vector<8x512xf32>
      %150 = arith.addf %148, %149 : vector<8x512xf32>
      %151 = vector.extract_strided_slice %150 {offsets = [0, 0], sizes = [8, 384], strides = [1, 1]} : vector<8x512xf32> to vector<8x384xf32>
      %152 = arith.negf %151 : vector<8x384xf32>
      %153 = math.exp %152 : vector<8x384xf32>
      %cst_37 = arith.constant 1.000000e+00 : f32
      %154 = vector.broadcast %cst_37 : f32 to vector<8x384xf32>
      %155 = arith.addf %154, %153 : vector<8x384xf32>
      %156 = arith.divf %154, %155 : vector<8x384xf32>
      %157 = vector.extract_strided_slice %156 {offsets = [0, 0], sizes = [8, 128], strides = [1, 1]} : vector<8x384xf32> to vector<8x128xf32>
      %158 = vector.extract_strided_slice %156 {offsets = [0, 128], sizes = [8, 128], strides = [1, 1]} : vector<8x384xf32> to vector<8x128xf32>
      %159 = vector.extract_strided_slice %156 {offsets = [0, 256], sizes = [8, 128], strides = [1, 1]} : vector<8x384xf32> to vector<8x128xf32>
      %160 = vector.extract_strided_slice %150 {offsets = [0, 384], sizes = [8, 128], strides = [1, 1]} : vector<8x512xf32> to vector<8x128xf32>
      %161 = math.tanh %160 : vector<8x128xf32>
      %162 = arith.mulf %158, %145 : vector<8x128xf32>
      %163 = arith.mulf %157, %161 : vector<8x128xf32>
      %164 = arith.addf %162, %163 : vector<8x128xf32>
      %165 = math.tanh %164 : vector<8x128xf32>
      %166 = arith.mulf %159, %165 : vector<8x128xf32>
      %c0_38 = arith.constant 0 : index
      %c0_39 = arith.constant 0 : index
      %167 = vector.load %arg5[%c0_38, %c0_39] : memref<1x128xf32, #tpu.memory_space<vmem>>, vector<1x128xf32>
      %168 = vector.broadcast %167 : vector<1x128xf32> to vector<8x128xf32>
      %169 = arith.mulf %166, %168 : vector<8x128xf32>
      %cst_40 = arith.constant dense<0.000000e+00> : vector<8xf32>
      %170 = vector.multi_reduction <add>, %169, %cst_40 [1] : vector<8x128xf32> to vector<8xf32>
      %171 = vector.shape_cast %170 : vector<8xf32> to vector<8x1xf32>
      %c0_41 = arith.constant 0 : index
      %c0_42 = arith.constant 0 : index
      %172 = vector.load %arg6[%c0_41, %c0_42] : memref<1x1xf32, #tpu.memory_space<vmem>>, vector<1x1xf32>
      %173 = vector.broadcast %172 : vector<1x1xf32> to vector<8x1xf32>
      %174 = arith.addf %171, %173 : vector<8x1xf32>
      %175 = arith.negf %174 : vector<8x1xf32>
      %176 = math.exp %175 : vector<8x1xf32>
      %cst_43 = arith.constant 1.000000e+00 : f32
      %177 = vector.broadcast %cst_43 : f32 to vector<8x1xf32>
      %178 = arith.addf %177, %176 : vector<8x1xf32>
      %179 = arith.divf %177, %178 : vector<8x1xf32>
      %c0_44 = arith.constant 0 : index
      %c0_45 = arith.constant 0 : index
      %180 = vector.load %arg7[%c0_44, %c0_45] : memref<8x1xf32, #tpu.memory_space<vmem>>, vector<8x1xf32>
      tpu.vector_store %arg7[%c0_44, %c0_45], %179 {strides = array<i32>} : memref<8x1xf32, #tpu.memory_space<vmem>>, vector<8x1xf32>,
    } else {
    }
    return
  }
  func.func @transform_0(%arg0: i32) -> (i32, i32) {
    %c0_i32 = arith.constant 0 : i32
    %c0_i32_0 = arith.constant 0 : i32
    return %c0_i32, %arg0 : i32, i32
  }
  func.func @transform_1(%arg0: i32) -> (i32, i32) {
    %c0_i32 = arith.constant 0 : i32
    %c0_i32_0 = arith.constant 0 : i32
    return %arg0, %c0_i32 : i32, i32
  }
  func.func @transform_2(%arg0: i32) -> (i32, i32) {
    %c0_i32 = arith.constant 0 : i32
    %c0_i32_0 = arith.constant 0 : i32
    %c0_i32_1 = arith.constant 0 : i32
    return %c0_i32, %c0_i32_0 : i32, i32
  }
  func.func @transform_3(%arg0: i32) -> (i32, i32) {
    %c0_i32 = arith.constant 0 : i32
    %c0_i32_0 = arith.constant 0 : i32
    %c0_i32_1 = arith.constant 0 : i32
    return %c0_i32, %c0_i32_0 : i32, i32
  }
  func.func @transform_4(%arg0: i32) -> (i32, i32) {
    %c0_i32 = arith.constant 0 : i32
    %c0_i32_0 = arith.constant 0 : i32
    %c0_i32_1 = arith.constant 0 : i32
    return %c0_i32, %c0_i32_0 : i32, i32
  }
  func.func @transform_5(%arg0: i32) -> (i32, i32) {
    %c0_i32 = arith.constant 0 : i32
    %c0_i32_0 = arith.constant 0 : i32
    %c0_i32_1 = arith.constant 0 : i32
    return %c0_i32, %c0_i32_0 : i32, i32
  }
  func.func @transform_6(%arg0: i32) -> (i32, i32) {
    %c0_i32 = arith.constant 0 : i32
    %c0_i32_0 = arith.constant 0 : i32
    %c0_i32_1 = arith.constant 0 : i32
    return %c0_i32, %c0_i32_0 : i32, i32
  }
}

</mosaic_0001>

<llo_original>
// kernel: lstm_forward_pallas.1
$region0: #{lstm_forward_pallas.1}
  #allocation0 [shape = 'u32[]', space=smem, size = 0x4, offset = 0x4, fixed_abs, tag = 'smem constant byte address 0x4 - core index']
  #allocation1 [shape = 'u32[72,128]{1,0:T(1,128)}', space=vmem, size = 0x9000, scoped, tag = 'internal scratch']
  #allocation2 [shape = 'f32[64,512]{1,0:T(8,128)}', space=vmem, size = 0x20000, scoped, tag = 'scratch operand']
  #allocation3 [shape = 'f32[1,1]{1,0:T(1,128)S(1)}', space=vmem, size = 0x200, scoped, tag = 'scoped memory for lstm_forward_pallas.1']
  %s0 = inlined_call_operand.vmem [shape: bf16[64,2048], index: 0, kind: input, shape index: {}]
  %s1 = inlined_call_operand.hbm [shape: bf16[2048,512], index: 1, kind: input, shape index: {}]
  %s2 = inlined_call_operand.hbm [shape: f32[128,512], index: 2, kind: input, shape index: {}]
  %s3 = inlined_call_operand.hbm [shape: f32[1,512], index: 3, kind: input, shape index: {}]
  %s4 = inlined_call_operand.hbm [shape: f32[1,128], index: 4, kind: input, shape index: {}]
  %s5 = inlined_call_operand.<no memory space> [shape: f32[1,1], index: 5, kind: input, shape index: {}]
  %s6 = inlined_call_operand.vmem [shape: f32[8,1], index: 6, kind: output, shape index: {}]
  %s7 = sld [smem:[#allocation0]]
  $region104: #{lstm_forward_pallas.1} parent=0
    _
  %s9 = ssub.s32 1, %s7
  %s10 = scalar_select 0, %s9, %s7
  %v11 = vstv %s5
  %12 = vst [vmem:[#allocation3] sm:$0x1] %v11
  $region1: #{lstm_forward_pallas.1} parent=0
    #allocation4 [shape = 'u8[131072]{0}', space=vmem, size = 0x20000, scoped, tag = 'input window, operand 0']
    #allocation5 [shape = 'u8[1048576]{0}', space=vmem, size = 0x100000, scoped, tag = 'input window, operand 1']
    #allocation6 [shape = 's32[2]{0}', space=sflag, size = 0x8, scoped, tag = 'scoped memory for lstm_forward_pallas.1']
    #allocation7 [shape = 'u8[262144]{0}', space=vmem, size = 0x40000, scoped, tag = 'input window, operand 2, single buffered']
    #allocation8 [shape = 's32[1]{0}', space=sflag, size = 0x4, scoped, tag = 'scoped memory for lstm_forward_pallas.1']
    #allocation9 [shape = 'u8[2048]{0}', space=vmem, size = 0x800, scoped, tag = 'input window, operand 3, single buffered']
    #allocation10 [shape = 'u8[512]{0}', space=vmem, size = 0x400, scoped, tag = 'input window, operand 4, single buffered']
    #allocation11 [shape = 's32[1]{0}', space=sflag, size = 0x4, scoped, tag = 'scoped memory for lstm_forward_pallas.1']
    %13 = vsyncpa [#allocation6], 0
    %s14 = scalar_lea.sflag [#allocation6], 1
    %15 = vsyncpa %s14, 0
    %16 = vsyncpa [#allocation8], 0
    %17 = vsyncpa [#allocation11], 0
    loop: start=0, step=1, limit=6
    $region2: #{lstm_forward_pallas.1} parent=1 // loop_pre_header
      _
    $region3: #{lstm_forward_pallas.1} parent=1 // loop_header
      %s19 = sphi 0, %s23
      %p20 = scmp.ge.s32.totalorder %s19, 6
      %s29 = sphi 0, %s31
      %s32 = sphi 0, %s29
      %s33 = sphi 0, %s32
      %s49 = sphi 0, %s33
      %s55 = sphi 0, %s57
      %s58 = sphi 0, %s55
      %s59 = sphi 0, %s58
      %s75 = sphi 0, %s59
      %s79 = sphi 0, %s79
      %s81 = sphi 0, %s79
      %s82 = sphi 0, %s81
      %s96 = sphi 0, %s82
      %s100 = sphi 0, %s100
      %s102 = sphi 0, %s100
      %s103 = sphi 0, %s102
      %s117 = sphi 0, %s103
      %s121 = sphi 0, %s121
      %s123 = sphi 0, %s121
      %s124 = sphi 0, %s123
      %s138 = sphi 0, %s124
      %s142 = sphi 0, %s142
      %s144 = sphi 0, %s142
      %s145 = sphi 0, %s144
      %s159 = sphi 0, %s145
      %s163 = sphi 0, %s163
      %s165 = sphi 0, %s163
      %s166 = sphi 0, %s165
      %s180 = sphi 0, %s166
    $region4: #{lstm_forward_pallas.1} parent=1 // loop_header_branch
      %22 = sbr.rel (%p20) target = $region8
    $region5: #{lstm_forward_pallas.1} parent=1 // loop_body
      %s24 = ssub.s32 %s19, 1
      %s25 = ssub.s32 %s19, 2
      %s26 = sadd.s32 %s19, 1
      %s27 = ssub.s32 %s19, %s26
      %p28 = scmp.eq.s32.totalorder %s27, 0
      %s30 = sadd.s32 %s29, 1
      %s31 = scalar_select %p28, %s29, %s30
      %p34 = pneg %p28
      %p35 = scmp.eq.s32.totalorder %s19, 3
      %p36 = por %p34, %p35
      %p37 = scmp.ne.s32.totalorder %s29, %s32
      %p38 = scmp.eq.s32.totalorder %s19, 0
      %p39 = por %p37, %p38
      %p40 = scmp.ne.s32.totalorder %s29, %s32
      %p41 = scmp.eq.s32.totalorder %s24, 3
      %p42 = por %p40, %p41
      %p43 = scmp.ne.s32.totalorder %s32, %s33
      %p44 = scmp.eq.s32.totalorder %s24, 0
      %p45 = por %p43, %p44
      %p46 = scmp.ne.s32.totalorder %s32, %s33
      %p47 = scmp.eq.s32.totalorder %s25, 3
      %p48 = por %p46, %p47
      %p50 = scmp.ne.s32.totalorder %s33, %s49
      %p51 = scmp.eq.s32.totalorder %s25, 0
      %p52 = por %p50, %p51
      %s53 = ssub.s32 %s19, %s26
      %p54 = scmp.eq.s32.totalorder %s53, 0
      %s56 = sadd.s32 %s55, 1
      %s57 = scalar_select %p54, %s55, %s56
      %p60 = pneg %p54
      %p61 = scmp.eq.s32.totalorder %s19, 3
      %p62 = por %p60, %p61
      %p63 = scmp.ne.s32.totalorder %s55, %s58
      %p64 = scmp.eq.s32.totalorder %s19, 0
      %p65 = por %p63, %p64
      %p66 = scmp.ne.s32.totalorder %s55, %s58
      %p67 = scmp.eq.s32.totalorder %s24, 3
      %p68 = por %p66, %p67
      %p69 = scmp.ne.s32.totalorder %s58, %s59
      %p70 = scmp.eq.s32.totalorder %s24, 0
      %p71 = por %p69, %p70
      %p72 = scmp.ne.s32.totalorder %s58, %s59
      %p73 = scmp.eq.s32.totalorder %s25, 3
      %p74 = por %p72, %p73
      %p76 = scmp.ne.s32.totalorder %s59, %s75
      %p77 = scmp.eq.s32.totalorder %s25, 0
      %p78 = por %p76, %p77
      %s80 = sadd.s32 %s79, 1
      %p83 = scmp.eq.s32.totalorder %s19, 3
      %p84 = scmp.ne.s32.totalorder %s79, %s81
      %p85 = scmp.eq.s32.totalorder %s19, 0
      %p86 = por %p84, %p85
      %p87 = scmp.ne.s32.totalorder %s79, %s81
      %p88 = scmp.eq.s32.totalorder %s24, 3
      %p89 = por %p87, %p88
      %p90 = scmp.ne.s32.totalorder %s81, %s82
      %p91 = scmp.eq.s32.totalorder %s24, 0
      %p92 = por %p90, %p91
      %p93 = scmp.ne.s32.totalorder %s81, %s82
      %p94 = scmp.eq.s32.totalorder %s25, 3
      %p95 = por %p93, %p94
      %p97 = scmp.ne.s32.totalorder %s82, %s96
      %p98 = scmp.eq.s32.totalorder %s25, 0
      %p99 = por %p97, %p98
      %s101 = sadd.s32 %s100, 1
      %p104 = scmp.eq.s32.totalorder %s19, 3
      %p105 = scmp.ne.s32.totalorder %s100, %s102
      %p106 = scmp.eq.s32.totalorder %s19, 0
      %p107 = por %p105, %p106
      %p108 = scmp.ne.s32.totalorder %s100, %s102
      %p109 = scmp.eq.s32.totalorder %s24, 3
      %p110 = por %p108, %p109
      %p111 = scmp.ne.s32.totalorder %s102, %s103
      %p112 = scmp.eq.s32.totalorder %s24, 0
      %p113 = por %p111, %p112
      %p114 = scmp.ne.s32.totalorder %s102, %s103
      %p115 = scmp.eq.s32.totalorder %s25, 3
      %p116 = por %p114, %p115
      %p118 = scmp.ne.s32.totalorder %s103, %s117
      %p119 = scmp.eq.s32.totalorder %s25, 0
      %p120 = por %p118, %p119
      %s122 = sadd.s32 %s121, 1
      %p125 = scmp.eq.s32.totalorder %s19, 3
      %p126 = scmp.ne.s32.totalorder %s121, %s123
      %p127 = scmp.eq.s32.totalorder %s19, 0
      %p128 = por %p126, %p127
      %p129 = scmp.ne.s32.totalorder %s121, %s123
      %p130 = scmp.eq.s32.totalorder %s24, 3
      %p131 = por %p129, %p130
      %p132 = scmp.ne.s32.totalorder %s123, %s124
      %p133 = scmp.eq.s32.totalorder %s24, 0
      %p134 = por %p132, %p133
      %p135 = scmp.ne.s32.totalorder %s123, %s124
      %p136 = scmp.eq.s32.totalorder %s25, 3
      %p137 = por %p135, %p136
      %p139 = scmp.ne.s32.totalorder %s124, %s138
      %p140 = scmp.eq.s32.totalorder %s25, 0
      %p141 = por %p139, %p140
      %s143 = sadd.s32 %s142, 1
      %p146 = scmp.eq.s32.totalorder %s19, 3
      %p147 = scmp.ne.s32.totalorder %s142, %s144
      %p148 = scmp.eq.s32.totalorder %s19, 0
      %p149 = por %p147, %p148
      %p150 = scmp.ne.s32.totalorder %s142, %s144
      %p151 = scmp.eq.s32.totalorder %s24, 3
      %p152 = por %p150, %p151
      %p153 = scmp.ne.s32.totalorder %s144, %s145
      %p154 = scmp.eq.s32.totalorder %s24, 0
      %p155 = por %p153, %p154
      %p156 = scmp.ne.s32.totalorder %s144, %s145
      %p157 = scmp.eq.s32.totalorder %s25, 3
      %p158 = por %p156, %p157
      %p160 = scmp.ne.s32.totalorder %s145, %s159
      %p161 = scmp.eq.s32.totalorder %s25, 0
      %p162 = por %p160, %p161
      %s164 = sadd.s32 %s163, 1
      %p167 = scmp.eq.s32.totalorder %s19, 3
      %p168 = scmp.ne.s32.totalorder %s163, %s165
      %p169 = scmp.eq.s32.totalorder %s19, 0
      %p170 = por %p168, %p169
      %p171 = scmp.ne.s32.totalorder %s163, %s165
      %p172 = scmp.eq.s32.totalorder %s24, 3
      %p173 = por %p171, %p172
      %p174 = scmp.ne.s32.totalorder %s165, %s166
      %p175 = scmp.eq.s32.totalorder %s24, 0
      %p176 = por %p174, %p175
      %p177 = scmp.ne.s32.totalorder %s165, %s166
      %p178 = scmp.eq.s32.totalorder %s25, 3
      %p179 = por %p177, %p178
      %p181 = scmp.ne.s32.totalorder %s166, %s180
      %p182 = scmp.eq.s32.totalorder %s25, 0
      %p183 = por %p181, %p182
      %p184 = scmp.le.s32.totalorder 1, %s19
      %p185 = scmp.lt.s32.totalorder %s19, 5
      %p186 = pnand %p184, %p185
      %p187 = pneg %p186
      // Predicated region
      $region9: #{lstm_forward_pallas.1} parent=5 // pred_check
        _
      $region10: #{lstm_forward_pallas.1} parent=5 // pred_check_branch
        %189 = sbr.rel (%p186) target = $region12
      $region11: #{lstm_forward_pallas.1} parent=5 // pred_region
        %s190 = ssub.s32 %s19, 1
        // Predicated region
        $region13: #{lstm_forward_pallas.1} parent=11 // pred_check
          %p191 = pneg %p92
        $region14: #{lstm_forward_pallas.1} parent=11 // pred_check_branch
          %193 = sbr.rel (%p191) target = $region16
        $region15: #{lstm_forward_pallas.1} parent=11 // pred_region
          %195 = vsyncadd [#allocation8], 0
          %s196 = sshll.u32 %s2, 4
          %s197 = int_to_ptr.hbm [resolvable:$true] %s196
          %s198 = sshll.u32 [#allocation7], 4
          %s199 = int_to_ptr.vmem [resolvable:$true] %s198
          %204 = dma.hbm_to_vmem [thread:$0]  %s197, 8192, %s199, [#allocation8], 512, 512, 32
        $region16: #{lstm_forward_pallas.1} parent=11 // pred_fallthru
          _
        // Predicated region
        $region17: #{lstm_forward_pallas.1} parent=11 // pred_check
          %p205 = pneg %p113
        $region18: #{lstm_forward_pallas.1} parent=11 // pred_check_branch
          %207 = sbr.rel (%p205) target = $region20
        $region19: #{lstm_forward_pallas.1} parent=11 // pred_region
          %209 = vsyncadd [#allocation8], 0
          %s211 = sshll.u32 %s3, 4
          %s212 = int_to_ptr.hbm [resolvable:$true] %s211
          %s213 = sshll.u32 [#allocation9], 4
          %s214 = int_to_ptr.vmem [resolvable:$true] %s213
          %216 = dma.hbm_to_vmem [thread:$0]  %s212, 64, %s214, [#allocation8]
        $region20: #{lstm_forward_pallas.1} parent=11 // pred_fallthru
          _
        // Predicated region
        $region21: #{lstm_forward_pallas.1} parent=11 // pred_check
          %p217 = pneg %p134
        $region22: #{lstm_forward_pallas.1} parent=11 // pred_check_branch
          %219 = sbr.rel (%p217) target = $region24
        $region23: #{lstm_forward_pallas.1} parent=11 // pred_region
          %221 = vsyncadd [#allocation11], 0
          %s223 = sshll.u32 %s4, 4
          %s224 = int_to_ptr.hbm [resolvable:$true] %s223
          %s225 = sshll.u32 [#allocation10], 4
          %s226 = int_to_ptr.vmem [resolvable:$true] %s225
          %228 = dma.hbm_to_vmem [thread:$0]  %s224, 16, %s226, [#allocation11]
        $region24: #{lstm_forward_pallas.1} parent=11 // pred_fallthru
          _
        // Predicated region
        $region25: #{lstm_forward_pallas.1} parent=11 // pred_check
          %p229 = pneg %p155
        $region26: #{lstm_forward_pallas.1} parent=11 // pred_check_branch
          %231 = sbr.rel (%p229) target = $region28
        $region27: #{lstm_forward_pallas.1} parent=11 // pred_region
          _
        $region28: #{lstm_forward_pallas.1} parent=11 // pred_fallthru
          _
      $region12: #{lstm_forward_pallas.1} parent=5 // pred_fallthru
        _
      %p232 = scmp.lt.s32.totalorder %s19, 4
      // Predicated region
      $region29: #{lstm_forward_pallas.1} parent=5 // pred_check
        %p233 = pneg %p232
      $region30: #{lstm_forward_pallas.1} parent=5 // pred_check_branch
        %235 = sbr.rel (%p233) target = $region32
      $region31: #{lstm_forward_pallas.1} parent=5 // pred_region
        // Predicated region
        $region33: #{lstm_forward_pallas.1} parent=31 // pred_check
          %p236 = pneg %p39
        $region34: #{lstm_forward_pallas.1} parent=31 // pred_check_branch
          %238 = sbr.rel (%p236) target = $region36
        $region35: #{lstm_forward_pallas.1} parent=31 // pred_region
          %s239 = sand.u32 %s29, 1
          %s240 = sand.u32 %s29, 1
          %s241 = smul.addr %s240, 128
          %s242 = scalar_lea.vmem [#allocation4], %s241
          %s243 = smul.u32 4, %s19
          %s244 = smul.addr %s243, 4
          %s245 = scalar_lea.vmem %s0, %s244
          // Predicated region
          $region37: #{lstm_forward_pallas.1} parent=35 // pred_check
            _
          $region38: #{lstm_forward_pallas.1} parent=35 // pred_check_branch
            %247 = sbr.rel (0) target = $region40
          $region39: #{lstm_forward_pallas.1} parent=35 // pred_region
            // Predicated region
            $region41: #{lstm_forward_pallas.1} parent=39 // pred_check
              _
            $region42: #{lstm_forward_pallas.1} parent=39 // pred_check_branch
              %249 = sbr.rel (0) target = $region44
            $region43: #{lstm_forward_pallas.1} parent=39 // pred_region
              loop: start=0, step=1, limit=1
              $region45: #{lstm_forward_pallas.1} parent=43 // loop_pre_header
                _
              $region46: #{lstm_forward_pallas.1} parent=43 // loop_header
                %s251 = sphi 0, %s255
                %p252 = scmp.ge.s32.totalorder %s251, 1
                %s256 = sphi %s245, %s245
                %s257 = sphi %s242, %s242
              $region47: #{lstm_forward_pallas.1} parent=43 // loop_header_branch
                %254 = sbr.rel (%p252) target = $region51
              $region48: #{lstm_forward_pallas.1} parent=43 // loop_body
                %v258 = vld [vmem:[%s256] sm:$0xff]
                %259 = vst [vmem:[%s257] sm:$0xff] %v258
                %v260 = vld [vmem:[%s256 + $0x8] sm:$0xff]
                %261 = vst [vmem:[%s257 + $0x8] sm:$0xff] %v260
                %v262 = vld [vmem:[%s256 + $0x40] sm:$0xff]
                %263 = vst [vmem:[%s257 + $0x10] sm:$0xff] %v262
                %v264 = vld [vmem:[%s256 + $0x48] sm:$0xff]
                %265 = vst [vmem:[%s257 + $0x18] sm:$0xff] %v264
                %v266 = vld [vmem:[%s256 + $0x80] sm:$0xff]
                %267 = vst [vmem:[%s257 + $0x20] sm:$0xff] %v266
                %v268 = vld [vmem:[%s256 + $0x88] sm:$0xff]
                %269 = vst [vmem:[%s257 + $0x28] sm:$0xff] %v268
                %v270 = vld [vmem:[%s256 + $0xc0] sm:$0xff]
                %271 = vst [vmem:[%s257 + $0x30] sm:$0xff] %v270
                %v272 = vld [vmem:[%s256 + $0xc8] sm:$0xff]
                %273 = vst [vmem:[%s257 + $0x38] sm:$0xff] %v272
                %v274 = vld [vmem:[%s256 + $0x100] sm:$0xff]
                %275 = vst [vmem:[%s257 + $0x40] sm:$0xff] %v274
                %v276 = vld [vmem:[%s256 + $0x108] sm:$0xff]
                %277 = vst [vmem:[%s257 + $0x48] sm:$0xff] %v276
                %v278 = vld [vmem:[%s256 + $0x140] sm:$0xff]
                %279 = vst [vmem:[%s257 + $0x50] sm:$0xff] %v278
                %v280 = vld [vmem:[%s256 + $0x148] sm:$0xff]
                %281 = vst [vmem:[%s257 + $0x58] sm:$0xff] %v280
                %v282 = vld [vmem:[%s256 + $0x180] sm:$0xff]
                %283 = vst [vmem:[%s257 + $0x60] sm:$0xff] %v282
                %v284 = vld [vmem:[%s256 + $0x188] sm:$0xff]
                %285 = vst [vmem:[%s257 + $0x68] sm:$0xff] %v284
                %v286 = vld [vmem:[%s256 + $0x1c0] sm:$0xff]
                %287 = vst [vmem:[%s257 + $0x70] sm:$0xff] %v286
                %v288 = vld [vmem:[%s256 + $0x1c8] sm:$0xff]
                %289 = vst [vmem:[%s257 + $0x78] sm:$0xff] %v288
              $region49: #{lstm_forward_pallas.1} parent=43 // loop_footer
                %s255 = sadd.s32 1, %s251
              $region50: #{lstm_forward_pallas.1} parent=43 // loop_footer_branch
                %250 = sbr.rel target = $region46
              $region51: #{lstm_forward_pallas.1} parent=43 // loop_exit
                _
            $region44: #{lstm_forward_pallas.1} parent=39 // pred_fallthru
              _
            // Predicated region
            $region52: #{lstm_forward_pallas.1} parent=39 // pred_check
              _
            $region53: #{lstm_forward_pallas.1} parent=39 // pred_check_branch
              %291 = sbr.rel target = $region55
            $region54: #{lstm_forward_pallas.1} parent=39 // pred_region
              _
            $region55: #{lstm_forward_pallas.1} parent=39 // pred_fallthru
              _
          $region40: #{lstm_forward_pallas.1} parent=35 // pred_fallthru
            _
          %292 = vnop
        $region36: #{lstm_forward_pallas.1} parent=31 // pred_fallthru
          _
        // Predicated region
        $region56: #{lstm_forward_pallas.1} parent=31 // pred_check
          %p293 = pneg %p65
        $region57: #{lstm_forward_pallas.1} parent=31 // pred_check_branch
          %295 = sbr.rel (%p293) target = $region59
        $region58: #{lstm_forward_pallas.1} parent=31 // pred_region
          %s296 = sand.u32 %s55, 1
          %s297 = scalar_lea.sflag [#allocation6], %s296
          %s298 = sand.u32 %s55, 1
          %s299 = smul.addr %s298, 1024
          %s300 = scalar_lea.vmem [#allocation5], %s299
          %s301 = smul.u32 64, %s19
          %303 = vsyncadd %s297, 0
          %s304 = smul.addr %s301, 4
          %s305 = smul.addr %s304, 4
          %s306 = scalar_lea.hbm %s1, %s305
          %s307 = sshll.u32 %s306, 4
          %s308 = int_to_ptr.hbm [resolvable:$true] %s307
          %s309 = sshll.u32 %s300, 4
          %s310 = int_to_ptr.vmem [resolvable:$true] %s309
          %315 = dma.hbm_to_vmem [thread:$0]  %s308, 16384, %s310, %s297, 256, 256, 16
        $region59: #{lstm_forward_pallas.1} parent=31 // pred_fallthru
          _
      $region32: #{lstm_forward_pallas.1} parent=5 // pred_fallthru
        _
      %p316 = scmp.le.s32.totalorder 1, %s19
      %p317 = scmp.lt.s32.totalorder %s19, 5
      %p318 = pnand %p316, %p317
      %p319 = pneg %p318
      // Predicated region
      $region60: #{lstm_forward_pallas.1} parent=5 // pred_check
        _
      $region61: #{lstm_forward_pallas.1} parent=5 // pred_check_branch
        %321 = sbr.rel (%p318) target = $region63
      $region62: #{lstm_forward_pallas.1} parent=5 // pred_region
        %s322 = ssub.s32 %s19, 1
        %s323 = sand.u32 %s32, 1
        %s324 = sand.u32 %s32, 1
        %s325 = smul.addr %s324, 128
        %s326 = scalar_lea.vmem [#allocation4], %s325
        // Predicated region
        $region64: #{lstm_forward_pallas.1} parent=62 // pred_check
          %p327 = pneg %p45
        $region65: #{lstm_forward_pallas.1} parent=62 // pred_check_branch
          %329 = sbr.rel (%p327) target = $region67
        $region66: #{lstm_forward_pallas.1} parent=62 // pred_region
          _
        $region67: #{lstm_forward_pallas.1} parent=62 // pred_fallthru
          _
        %s330 = sand.u32 %s58, 1
        %s331 = scalar_lea.sflag [#allocation6], %s330
        %s332 = sand.u32 %s58, 1
        %s333 = smul.addr %s332, 1024
        %s334 = scalar_lea.vmem [#allocation5], %s333
        // Predicated region
        $region68: #{lstm_forward_pallas.1} parent=62 // pred_check
          %p335 = pneg %p71
        $region69: #{lstm_forward_pallas.1} parent=62 // pred_check_branch
          %337 = sbr.rel (%p335) target = $region71
        $region70: #{lstm_forward_pallas.1} parent=62 // pred_region
          %339 = dma.done %s331, 16384
        $region71: #{lstm_forward_pallas.1} parent=62 // pred_fallthru
          _
        // Predicated region
        $region72: #{lstm_forward_pallas.1} parent=62 // pred_check
          %p340 = pneg %p92
        $region73: #{lstm_forward_pallas.1} parent=62 // pred_check_branch
          %342 = sbr.rel (%p340) target = $region75
        $region74: #{lstm_forward_pallas.1} parent=62 // pred_region
          %344 = dma.done [#allocation8], 8192
        $region75: #{lstm_forward_pallas.1} parent=62 // pred_fallthru
          _
        // Predicated region
        $region76: #{lstm_forward_pallas.1} parent=62 // pred_check
          %p345 = pneg %p113
        $region77: #{lstm_forward_pallas.1} parent=62 // pred_check_branch
          %347 = sbr.rel (%p345) target = $region79
        $region78: #{lstm_forward_pallas.1} parent=62 // pred_region
          %349 = dma.done [#allocation8], 64
        $region79: #{lstm_forward_pallas.1} parent=62 // pred_fallthru
          _
        // Predicated region
        $region80: #{lstm_forward_pallas.1} parent=62 // pred_check
          %p350 = pneg %p134
        $region81: #{lstm_forward_pallas.1} parent=62 // pred_check_branch
          %352 = sbr.rel (%p350) target = $region83
        $region82: #{lstm_forward_pallas.1} parent=62 // pred_region
          %354 = dma.done [#allocation11], 16
        $region83: #{lstm_forward_pallas.1} parent=62 // pred_fallthru
          _
        %s355 = sand.u32 %s32, 1
        %s356 = sand.u32 %s32, 1
        %s357 = smul.addr %s356, 128
        %s358 = scalar_lea.vmem [#allocation4], %s357
        %p359 = pneg %p45
        %p360 = pneg %p42
        %s361 = sand.u32 %s58, 1
        %s362 = scalar_lea.sflag [#allocation6], %s361
        %s363 = sand.u32 %s58, 1
        %s364 = smul.addr %s363, 1024
        %s365 = scalar_lea.vmem [#allocation5], %s364
        %p366 = pneg %p71
        %p367 = pneg %p68
        %p368 = pneg %p92
        %p369 = pneg %p89
        %p370 = pneg %p113
        %p371 = pneg %p110
        %p372 = pneg %p134
        %p373 = pneg %p131
        %p374 = pneg %p155
        %p375 = pneg %p152
        %p376 = pneg %p176
        %p377 = pneg %p173
        %s378 = smul.u32 4, %s24
        %s379 = smul.u32 64, %s24
        %p380 = scmp.eq.s32.totalorder %s24, 0
        // Predicated region
        $region84: #{lstm_forward_pallas.1} parent=62 // pred_check
          %p381 = pneg %p380
        $region85: #{lstm_forward_pallas.1} parent=62 // pred_check_branch
          %383 = sbr.rel (%p381) target = $region87
        $region86: #{lstm_forward_pallas.1} parent=62 // pred_region
          %v384 = vld [vmem:[#allocation9] sm:$0xf]
          %v386 = vperm.slane %v384, 0
          %v387 = vperm.slane %v384, 1
          %v388 = vperm.slane %v384, 2
          %v389 = vperm.slane %v384, 3
          %394 = vst [vmem:[#allocation2] sm:$0xff] %v386
          %395 = vst [vmem:[#allocation2 + $0x8] sm:$0xff] %v387
          %396 = vst [vmem:[#allocation2 + $0x10] sm:$0xff] %v388
          %397 = vst [vmem:[#allocation2 + $0x18] sm:$0xff] %v389
          %398 = vst [vmem:[#allocation2 + $0x20] sm:$0xff] %v386
          %399 = vst [vmem:[#allocation2 + $0x28] sm:$0xff] %v387
          %400 = vst [vmem:[#allocation2 + $0x30] sm:$0xff] %v388
          %401 = vst [vmem:[#allocation2 + $0x38] sm:$0xff] %v389
          %402 = vst [vmem:[#allocation2 + $0x40] sm:$0xff] %v386
          %403 = vst [vmem:[#allocation2 + $0x48] sm:$0xff] %v387
          %404 = vst [vmem:[#allocation2 + $0x50] sm:$0xff] %v388
          %405 = vst [vmem:[#allocation2 + $0x58] sm:$0xff] %v389
          %406 = vst [vmem:[#allocation2 + $0x60] sm:$0xff] %v386
          %407 = vst [vmem:[#allocation2 + $0x68] sm:$0xff] %v387
          %408 = vst [vmem:[#allocation2 + $0x70] sm:$0xff] %v388
          %409 = vst [vmem:[#allocation2 + $0x78] sm:$0xff] %v389
          %410 = vst [vmem:[#allocation2 + $0x80] sm:$0xff] %v386
          %411 = vst [vmem:[#allocation2 + $0x88] sm:$0xff] %v387
          %412 = vst [vmem:[#allocation2 + $0x90] sm:$0xff] %v388
          %413 = vst [vmem:[#allocation2 + $0x98] sm:$0xff] %v389
          %414 = vst [vmem:[#allocation2 + $0xa0] sm:$0xff] %v386
          %415 = vst [vmem:[#allocation2 + $0xa8] sm:$0xff] %v387
          %416 = vst [vmem:[#allocation2 + $0xb0] sm:$0xff] %v388
          %417 = vst [vmem:[#allocation2 + $0xb8] sm:$0xff] %v389
          %418 = vst [vmem:[#allocation2 + $0xc0] sm:$0xff] %v386
          %419 = vst [vmem:[#allocation2 + $0xc8] sm:$0xff] %v387
          %420 = vst [vmem:[#allocation2 + $0xd0] sm:$0xff] %v388
          %421 = vst [vmem:[#allocation2 + $0xd8] sm:$0xff] %v389
          %422 = vst [vmem:[#allocation2 + $0xe0] sm:$0xff] %v386
          %423 = vst [vmem:[#allocation2 + $0xe8] sm:$0xff] %v387
          %424 = vst [vmem:[#allocation2 + $0xf0] sm:$0xff] %v388
          %425 = vst [vmem:[#allocation2 + $0xf8] sm:$0xff] %v389
        $region87: #{lstm_forward_pallas.1} parent=62 // pred_fallthru
          _
        %v426 = vld [vmem:[#allocation2] sm:$0xff]
        %v427 = vld [vmem:[#allocation2 + $0x8] sm:$0xff]
        %v428 = vld [vmem:[#allocation2 + $0x10] sm:$0xff]
        %v429 = vld [vmem:[#allocation2 + $0x18] sm:$0xff]
        %v430 = vld [vmem:[#allocation2 + $0x20] sm:$0xff]
        %v431 = vld [vmem:[#allocation2 + $0x28] sm:$0xff]
        %v432 = vld [vmem:[#allocation2 + $0x30] sm:$0xff]
        %v433 = vld [vmem:[#allocation2 + $0x38] sm:$0xff]
        %v434 = vld [vmem:[#allocation2 + $0x40] sm:$0xff]
        %v435 = vld [vmem:[#allocation2 + $0x48] sm:$0xff]
        %v436 = vld [vmem:[#allocation2 + $0x50] sm:$0xff]
        %v437 = vld [vmem:[#allocation2 + $0x58] sm:$0xff]
        %v438 = vld [vmem:[#allocation2 + $0x60] sm:$0xff]
        %v439 = vld [vmem:[#allocation2 + $0x68] sm:$0xff]
        %v440 = vld [vmem:[#allocation2 + $0x70] sm:$0xff]
        %v441 = vld [vmem:[#allocation2 + $0x78] sm:$0xff]
        %v442 = vld [vmem:[#allocation2 + $0x80] sm:$0xff]
        %v443 = vld [vmem:[#allocation2 + $0x88] sm:$0xff]
        %v444 = vld [vmem:[#allocation2 + $0x90] sm:$0xff]
        %v445 = vld [vmem:[#allocation2 + $0x98] sm:$0xff]
        %v446 = vld [vmem:[#allocation2 + $0xa0] sm:$0xff]
        %v447 = vld [vmem:[#allocation2 + $0xa8] sm:$0xff]
        %v448 = vld [vmem:[#allocation2 + $0xb0] sm:$0xff]
        %v449 = vld [vmem:[#allocation2 + $0xb8] sm:$0xff]
        %v450 = vld [vmem:[#allocation2 + $0xc0] sm:$0xff]
        %v451 = vld [vmem:[#allocation2 + $0xc8] sm:$0xff]
        %v452 = vld [vmem:[#allocation2 + $0xd0] sm:$0xff]
        %v453 = vld [vmem:[#allocation2 + $0xd8] sm:$0xff]
        %v454 = vld [vmem:[#allocation2 + $0xe0] sm:$0xff]
        %v455 = vld [vmem:[#allocation2 + $0xe8] sm:$0xff]
        %v456 = vld [vmem:[#allocation2 + $0xf0] sm:$0xff]
        %v457 = vld [vmem:[#allocation2 + $0xf8] sm:$0xff]
        %v458 = vld [vmem:[%s326] sm:$0xff]
        %v459 = vld [vmem:[%s326 + $0x8] sm:$0xff]
        %v460 = vld [vmem:[%s326 + $0x10] sm:$0xff]
        %v461 = vld [vmem:[%s326 + $0x18] sm:$0xff]
        %v462 = vld [vmem:[%s326 + $0x20] sm:$0xff]
        %v463 = vld [vmem:[%s326 + $0x28] sm:$0xff]
        %v464 = vld [vmem:[%s326 + $0x30] sm:$0xff]
        %v465 = vld [vmem:[%s326 + $0x38] sm:$0xff]
        %v466 = vld [vmem:[%s326 + $0x40] sm:$0xff]
        %v467 = vld [vmem:[%s326 + $0x48] sm:$0xff]
        %v468 = vld [vmem:[%s326 + $0x50] sm:$0xff]
        %v469 = vld [vmem:[%s326 + $0x58] sm:$0xff]
        %v470 = vld [vmem:[%s326 + $0x60] sm:$0xff]
        %v471 = vld [vmem:[%s326 + $0x68] sm:$0xff]
        %v472 = vld [vmem:[%s326 + $0x70] sm:$0xff]
        %v473 = vld [vmem:[%s326 + $0x78] sm:$0xff]
        %v474 = vld [vmem:[%s334] sm:$0xff]
        %v475 = vld [vmem:[%s334 + $0x8] sm:$0xff]
        %v476 = vld [vmem:[%s334 + $0x10] sm:$0xff]
        %v477 = vld [vmem:[%s334 + $0x18] sm:$0xff]
        %v478 = vld [vmem:[%s334 + $0x20] sm:$0xff]
        %v479 = vld [vmem:[%s334 + $0x28] sm:$0xff]
        %v480 = vld [vmem:[%s334 + $0x30] sm:$0xff]
        %v481 = vld [vmem:[%s334 + $0x38] sm:$0xff]
        %v482 = vld [vmem:[%s334 + $0x40] sm:$0xff]
        %v483 = vld [vmem:[%s334 + $0x48] sm:$0xff]
        %v484 = vld [vmem:[%s334 + $0x50] sm:$0xff]
        %v485 = vld [vmem:[%s334 + $0x58] sm:$0xff]
        %v486 = vld [vmem:[%s334 + $0x60] sm:$0xff]
        %v487 = vld [vmem:[%s334 + $0x68] sm:$0xff]
        %v488 = vld [vmem:[%s334 + $0x70] sm:$0xff]
        %v489 = vld [vmem:[%s334 + $0x78] sm:$0xff]
        %v490 = vld [vmem:[%s334 + $0x80] sm:$0xff]
        %v491 = vld [vmem:[%s334 + $0x88] sm:$0xff]
        %v492 = vld [vmem:[%s334 + $0x90] sm:$0xff]
        %v493 = vld [vmem:[%s334 + $0x98] sm:$0xff]
        %v494 = vld [vmem:[%s334 + $0xa0] sm:$0xff]
        %v495 = vld [vmem:[%s334 + $0xa8] sm:$0xff]
        %v496 = vld [vmem:[%s334 + $0xb0] sm:$0xff]
        %v497 = vld [vmem:[%s334 + $0xb8] sm:$0xff]
        %v498 = vld [vmem:[%s334 + $0xc0] sm:$0xff]
        %v499 = vld [vmem:[%s334 + $0xc8] sm:$0xff]
        %v500 = vld [vmem:[%s334 + $0xd0] sm:$0xff]
        %v501 = vld [vmem:[%s334 + $0xd8] sm:$0xff]
        %v502 = vld [vmem:[%s334 + $0xe0] sm:$0xff]
        %v503 = vld [vmem:[%s334 + $0xe8] sm:$0xff]
        %v504 = vld [vmem:[%s334 + $0xf0] sm:$0xff]
        %v505 = vld [vmem:[%s334 + $0xf8] sm:$0xff]
        %v506 = vld [vmem:[%s334 + $0x100] sm:$0xff]
        %v507 = vld [vmem:[%s334 + $0x108] sm:$0xff]
        %v508 = vld [vmem:[%s334 + $0x110] sm:$0xff]
        %v509 = vld [vmem:[%s334 + $0x118] sm:$0xff]
        %v510 = vld [vmem:[%s334 + $0x120] sm:$0xff]
        %v511 = vld [vmem:[%s334 + $0x128] sm:$0xff]
        %v512 = vld [vmem:[%s334 + $0x130] sm:$0xff]
        %v513 = vld [vmem:[%s334 + $0x138] sm:$0xff]
        %v514 = vld [vmem:[%s334 + $0x140] sm:$0xff]
        %v515 = vld [vmem:[%s334 + $0x148] sm:$0xff]
        %v516 = vld [vmem:[%s334 + $0x150] sm:$0xff]
        %v517 = vld [vmem:[%s334 + $0x158] sm:$0xff]
        %v518 = vld [vmem:[%s334 + $0x160] sm:$0xff]
        %v519 = vld [vmem:[%s334 + $0x168] sm:$0xff]
        %v520 = vld [vmem:[%s334 + $0x170] sm:$0xff]
        %v521 = vld [vmem:[%s334 + $0x178] sm:$0xff]
        %v522 = vld [vmem:[%s334 + $0x180] sm:$0xff]
        %v523 = vld [vmem:[%s334 + $0x188] sm:$0xff]
        %v524 = vld [vmem:[%s334 + $0x190] sm:$0xff]
        %v525 = vld [vmem:[%s334 + $0x198] sm:$0xff]
        %v526 = vld [vmem:[%s334 + $0x1a0] sm:$0xff]
        %v527 = vld [vmem:[%s334 + $0x1a8] sm:$0xff]
        %v528 = vld [vmem:[%s334 + $0x1b0] sm:$0xff]
        %v529 = vld [vmem:[%s334 + $0x1b8] sm:$0xff]
        %v530 = vld [vmem:[%s334 + $0x1c0] sm:$0xff]
        %v531 = vld [vmem:[%s334 + $0x1c8] sm:$0xff]
        %v532 = vld [vmem:[%s334 + $0x1d0] sm:$0xff]
        %v533 = vld [vmem:[%s334 + $0x1d8] sm:$0xff]
        %v534 = vld [vmem:[%s334 + $0x1e0] sm:$0xff]
        %v535 = vld [vmem:[%s334 + $0x1e8] sm:$0xff]
        %v536 = vld [vmem:[%s334 + $0x1f0] sm:$0xff]
        %v537 = vld [vmem:[%s334 + $0x1f8] sm:$0xff]
        %v538 = vld [vmem:[%s334 + $0x200] sm:$0xff]
        %v539 = vld [vmem:[%s334 + $0x208] sm:$0xff]
        %v540 = vld [vmem:[%s334 + $0x210] sm:$0xff]
        %v541 = vld [vmem:[%s334 + $0x218] sm:$0xff]
        %v542 = vld [vmem:[%s334 + $0x220] sm:$0xff]
        %v543 = vld [vmem:[%s334 + $0x228] sm:$0xff]
        %v544 = vld [vmem:[%s334 + $0x230] sm:$0xff]
        %v545 = vld [vmem:[%s334 + $0x238] sm:$0xff]
        %v546 = vld [vmem:[%s334 + $0x240] sm:$0xff]
        %v547 = vld [vmem:[%s334 + $0x248] sm:$0xff]
        %v548 = vld [vmem:[%s334 + $0x250] sm:$0xff]
        %v549 = vld [vmem:[%s334 + $0x258] sm:$0xff]
        %v550 = vld [vmem:[%s334 + $0x260] sm:$0xff]
        %v551 = vld [vmem:[%s334 + $0x268] sm:$0xff]
        %v552 = vld [vmem:[%s334 + $0x270] sm:$0xff]
        %v553 = vld [vmem:[%s334 + $0x278] sm:$0xff]
        %v554 = vld [vmem:[%s334 + $0x280] sm:$0xff]
        %v555 = vld [vmem:[%s334 + $0x288] sm:$0xff]
        %v556 = vld [vmem:[%s334 + $0x290] sm:$0xff]
        %v557 = vld [vmem:[%s334 + $0x298] sm:$0xff]
        %v558 = vld [vmem:[%s334 + $0x2a0] sm:$0xff]
        %v559 = vld [vmem:[%s334 + $0x2a8] sm:$0xff]
        %v560 = vld [vmem:[%s334 + $0x2b0] sm:$0xff]
        %v561 = vld [vmem:[%s334 + $0x2b8] sm:$0xff]
        %v562 = vld [vmem:[%s334 + $0x2c0] sm:$0xff]
        %v563 = vld [vmem:[%s334 + $0x2c8] sm:$0xff]
        %v564 = vld [vmem:[%s334 + $0x2d0] sm:$0xff]
        %v565 = vld [vmem:[%s334 + $0x2d8] sm:$0xff]
        %v566 = vld [vmem:[%s334 + $0x2e0] sm:$0xff]
        %v567 = vld [vmem:[%s334 + $0x2e8] sm:$0xff]
        %v568 = vld [vmem:[%s334 + $0x2f0] sm:$0xff]
        %v569 = vld [vmem:[%s334 + $0x2f8] sm:$0xff]
        %v570 = vld [vmem:[%s334 + $0x300] sm:$0xff]
        %v571 = vld [vmem:[%s334 + $0x308] sm:$0xff]
        %v572 = vld [vmem:[%s334 + $0x310] sm:$0xff]
        %v573 = vld [vmem:[%s334 + $0x318] sm:$0xff]
        %v574 = vld [vmem:[%s334 + $0x320] sm:$0xff]
        %v575 = vld [vmem:[%s334 + $0x328] sm:$0xff]
        %v576 = vld [vmem:[%s334 + $0x330] sm:$0xff]
        %v577 = vld [vmem:[%s334 + $0x338] sm:$0xff]
        %v578 = vld [vmem:[%s334 + $0x340] sm:$0xff]
        %v579 = vld [vmem:[%s334 + $0x348] sm:$0xff]
        %v580 = vld [vmem:[%s334 + $0x350] sm:$0xff]
        %v581 = vld [vmem:[%s334 + $0x358] sm:$0xff]
        %v582 = vld [vmem:[%s334 + $0x360] sm:$0xff]
        %v583 = vld [vmem:[%s334 + $0x368] sm:$0xff]
        %v584 = vld [vmem:[%s334 + $0x370] sm:$0xff]
        %v585 = vld [vmem:[%s334 + $0x378] sm:$0xff]
        %v586 = vld [vmem:[%s334 + $0x380] sm:$0xff]
        %v587 = vld [vmem:[%s334 + $0x388] sm:$0xff]
        %v588 = vld [vmem:[%s334 + $0x390] sm:$0xff]
        %v589 = vld [vmem:[%s334 + $0x398] sm:$0xff]
        %v590 = vld [vmem:[%s334 + $0x3a0] sm:$0xff]
        %v591 = vld [vmem:[%s334 + $0x3a8] sm:$0xff]
        %v592 = vld [vmem:[%s334 + $0x3b0] sm:$0xff]
        %v593 = vld [vmem:[%s334 + $0x3b8] sm:$0xff]
        %v594 = vld [vmem:[%s334 + $0x3c0] sm:$0xff]
        %v595 = vld [vmem:[%s334 + $0x3c8] sm:$0xff]
        %v596 = vld [vmem:[%s334 + $0x3d0] sm:$0xff]
        %v597 = vld [vmem:[%s334 + $0x3d8] sm:$0xff]
        %v598 = vld [vmem:[%s334 + $0x3e0] sm:$0xff]
        %v599 = vld [vmem:[%s334 + $0x3e8] sm:$0xff]
        %v600 = vld [vmem:[%s334 + $0x3f0] sm:$0xff]
        %v601 = vld [vmem:[%s334 + $0x3f8] sm:$0xff]
        %v618 = vunpack.c.l.b16 %v458
        %v619 = vunpack.c.h.b16 %v458
        %v620 = vunpack.c.l.b16 %v459
        %v621 = vunpack.c.h.b16 %v459
        %v622 = vunpack.c.l.b16 %v460
        %v623 = vunpack.c.h.b16 %v460
        %v624 = vunpack.c.l.b16 %v461
        %v625 = vunpack.c.h.b16 %v461
        %v626 = vunpack.c.l.b16 %v462
        %v627 = vunpack.c.h.b16 %v462
        %v628 = vunpack.c.l.b16 %v463
        %v629 = vunpack.c.h.b16 %v463
        %v630 = vunpack.c.l.b16 %v464
        %v631 = vunpack.c.h.b16 %v464
        %v632 = vunpack.c.l.b16 %v465
        %v633 = vunpack.c.h.b16 %v465
        %v634 = vunpack.c.l.b16 %v466
        %v635 = vunpack.c.h.b16 %v466
        %v636 = vunpack.c.l.b16 %v467
        %v637 = vunpack.c.h.b16 %v467
        %v638 = vunpack.c.l.b16 %v468
        %v639 = vunpack.c.h.b16 %v468
        %v640 = vunpack.c.l.b16 %v469
        %v641 = vunpack.c.h.b16 %v469
        %v642 = vunpack.c.l.b16 %v470
        %v643 = vunpack.c.h.b16 %v470
        %v644 = vunpack.c.l.b16 %v471
        %v645 = vunpack.c.h.b16 %v471
        %v646 = vunpack.c.l.b16 %v472
        %v647 = vunpack.c.h.b16 %v472
        %v648 = vunpack.c.l.b16 %v473
        %v649 = vunpack.c.h.b16 %v473
        %v650 = vpack.c.b16 %v622, %v618
        %v651 = vpack.c.b16 %v623, %v619
        %v652 = vpack.c.b16 %v624, %v620
        %v653 = vpack.c.b16 %v625, %v621
        %v654 = vpack.c.b16 %v630, %v626
        %v655 = vpack.c.b16 %v631, %v627
        %v656 = vpack.c.b16 %v632, %v628
        %v657 = vpack.c.b16 %v633, %v629
        %v658 = vpack.c.b16 %v638, %v634
        %v659 = vpack.c.b16 %v639, %v635
        %v660 = vpack.c.b16 %v640, %v636
        %v661 = vpack.c.b16 %v641, %v637
        %v662 = vpack.c.b16 %v646, %v642
        %v663 = vpack.c.b16 %v647, %v643
        %v664 = vpack.c.b16 %v648, %v644
        %v665 = vpack.c.b16 %v649, %v645
        %v810 = vunpack.c.l.b16 %v474
        %v811 = vunpack.c.h.b16 %v474
        %v812 = vunpack.c.l.b16 %v475
        %v813 = vunpack.c.h.b16 %v475
        %v814 = vunpack.c.l.b16 %v476
        %v815 = vunpack.c.h.b16 %v476
        %v816 = vunpack.c.l.b16 %v477
        %v817 = vunpack.c.h.b16 %v477
        %v818 = vunpack.c.l.b16 %v478
        %v819 = vunpack.c.h.b16 %v478
        %v820 = vunpack.c.l.b16 %v479
        %v821 = vunpack.c.h.b16 %v479
        %v822 = vunpack.c.l.b16 %v480
        %v823 = vunpack.c.h.b16 %v480
        %v824 = vunpack.c.l.b16 %v481
        %v825 = vunpack.c.h.b16 %v481
        %v826 = vunpack.c.l.b16 %v482
        %v827 = vunpack.c.h.b16 %v482
        %v828 = vunpack.c.l.b16 %v483
        %v829 = vunpack.c.h.b16 %v483
        %v830 = vunpack.c.l.b16 %v484
        %v831 = vunpack.c.h.b16 %v484
        %v832 = vunpack.c.l.b16 %v485
        %v833 = vunpack.c.h.b16 %v485
        %v834 = vunpack.c.l.b16 %v486
        %v835 = vunpack.c.h.b16 %v486
        %v836 = vunpack.c.l.b16 %v487
        %v837 = vunpack.c.h.b16 %v487
        %v838 = vunpack.c.l.b16 %v488
        %v839 = vunpack.c.h.b16 %v488
        %v840 = vunpack.c.l.b16 %v489
        %v841 = vunpack.c.h.b16 %v489
        %v842 = vunpack.c.l.b16 %v490
        %v843 = vunpack.c.h.b16 %v490
        %v844 = vunpack.c.l.b16 %v491
        %v845 = vunpack.c.h.b16 %v491
        %v846 = vunpack.c.l.b16 %v492
        %v847 = vunpack.c.h.b16 %v492
        %v848 = vunpack.c.l.b16 %v493
        %v849 = vunpack.c.h.b16 %v493
        %v850 = vunpack.c.l.b16 %v494
        %v851 = vunpack.c.h.b16 %v494
        %v852 = vunpack.c.l.b16 %v495
        %v853 = vunpack.c.h.b16 %v495
        %v854 = vunpack.c.l.b16 %v496
        %v855 = vunpack.c.h.b16 %v496
        %v856 = vunpack.c.l.b16 %v497
        %v857 = vunpack.c.h.b16 %v497
        %v858 = vunpack.c.l.b16 %v498
        %v859 = vunpack.c.h.b16 %v498
        %v860 = vunpack.c.l.b16 %v499
        %v861 = vunpack.c.h.b16 %v499
        %v862 = vunpack.c.l.b16 %v500
        %v863 = vunpack.c.h.b16 %v500
        %v864 = vunpack.c.l.b16 %v501
        %v865 = vunpack.c.h.b16 %v501
        %v866 = vunpack.c.l.b16 %v502
        %v867 = vunpack.c.h.b16 %v502
        %v868 = vunpack.c.l.b16 %v503
        %v869 = vunpack.c.h.b16 %v503
        %v870 = vunpack.c.l.b16 %v504
        %v871 = vunpack.c.h.b16 %v504
        %v872 = vunpack.c.l.b16 %v505
        %v873 = vunpack.c.h.b16 %v505
        %v874 = vunpack.c.l.b16 %v506
        %v875 = vunpack.c.h.b16 %v506
        %v876 = vunpack.c.l.b16 %v507
        %v877 = vunpack.c.h.b16 %v507
        %v878 = vunpack.c.l.b16 %v508
        %v879 = vunpack.c.h.b16 %v508
        %v880 = vunpack.c.l.b16 %v509
        %v881 = vunpack.c.h.b16 %v509
        %v882 = vunpack.c.l.b16 %v510
        %v883 = vunpack.c.h.b16 %v510
        %v884 = vunpack.c.l.b16 %v511
        %v885 = vunpack.c.h.b16 %v511
        %v886 = vunpack.c.l.b16 %v512
        %v887 = vunpack.c.h.b16 %v512
        %v888 = vunpack.c.l.b16 %v513
        %v889 = vunpack.c.h.b16 %v513
        %v890 = vunpack.c.l.b16 %v514
        %v891 = vunpack.c.h.b16 %v514
        %v892 = vunpack.c.l.b16 %v515
        %v893 = vunpack.c.h.b16 %v515
        %v894 = vunpack.c.l.b16 %v516
        %v895 = vunpack.c.h.b16 %v516
        %v896 = vunpack.c.l.b16 %v517
        %v897 = vunpack.c.h.b16 %v517
        %v898 = vunpack.c.l.b16 %v518
        %v899 = vunpack.c.h.b16 %v518
        %v900 = vunpack.c.l.b16 %v519
        %v901 = vunpack.c.h.b16 %v519
        %v902 = vunpack.c.l.b16 %v520
        %v903 = vunpack.c.h.b16 %v520
        %v904 = vunpack.c.l.b16 %v521
        %v905 = vunpack.c.h.b16 %v521
        %v906 = vunpack.c.l.b16 %v522
        %v907 = vunpack.c.h.b16 %v522
        %v908 = vunpack.c.l.b16 %v523
        %v909 = vunpack.c.h.b16 %v523
        %v910 = vunpack.c.l.b16 %v524
        %v911 = vunpack.c.h.b16 %v524
        %v912 = vunpack.c.l.b16 %v525
        %v913 = vunpack.c.h.b16 %v525
        %v914 = vunpack.c.l.b16 %v526
        %v915 = vunpack.c.h.b16 %v526
        %v916 = vunpack.c.l.b16 %v527
        %v917 = vunpack.c.h.b16 %v527
        %v918 = vunpack.c.l.b16 %v528
        %v919 = vunpack.c.h.b16 %v528
        %v920 = vunpack.c.l.b16 %v529
        %v921 = vunpack.c.h.b16 %v529
        %v922 = vunpack.c.l.b16 %v530
        %v923 = vunpack.c.h.b16 %v530
        %v924 = vunpack.c.l.b16 %v531
        %v925 = vunpack.c.h.b16 %v531
        %v926 = vunpack.c.l.b16 %v532
        %v927 = vunpack.c.h.b16 %v532
        %v928 = vunpack.c.l.b16 %v533
        %v929 = vunpack.c.h.b16 %v533
        %v930 = vunpack.c.l.b16 %v534
        %v931 = vunpack.c.h.b16 %v534
        %v932 = vunpack.c.l.b16 %v535
        %v933 = vunpack.c.h.b16 %v535
        %v934 = vunpack.c.l.b16 %v536
        %v935 = vunpack.c.h.b16 %v536
        %v936 = vunpack.c.l.b16 %v537
        %v937 = vunpack.c.h.b16 %v537
        %v938 = vunpack.c.l.b16 %v538
        %v939 = vunpack.c.h.b16 %v538
        %v940 = vunpack.c.l.b16 %v539
        %v941 = vunpack.c.h.b16 %v539
        %v942 = vunpack.c.l.b16 %v540
        %v943 = vunpack.c.h.b16 %v540
        %v944 = vunpack.c.l.b16 %v541
        %v945 = vunpack.c.h.b16 %v541
        %v946 = vunpack.c.l.b16 %v542
        %v947 = vunpack.c.h.b16 %v542
        %v948 = vunpack.c.l.b16 %v543
        %v949 = vunpack.c.h.b16 %v543
        %v950 = vunpack.c.l.b16 %v544
        %v951 = vunpack.c.h.b16 %v544
        %v952 = vunpack.c.l.b16 %v545
        %v953 = vunpack.c.h.b16 %v545
        %v954 = vunpack.c.l.b16 %v546
        %v955 = vunpack.c.h.b16 %v546
        %v956 = vunpack.c.l.b16 %v547
        %v957 = vunpack.c.h.b16 %v547
        %v958 = vunpack.c.l.b16 %v548
        %v959 = vunpack.c.h.b16 %v548
        %v960 = vunpack.c.l.b16 %v549
        %v961 = vunpack.c.h.b16 %v549
        %v962 = vunpack.c.l.b16 %v550
        %v963 = vunpack.c.h.b16 %v550
        %v964 = vunpack.c.l.b16 %v551
        %v965 = vunpack.c.h.b16 %v551
        %v966 = vunpack.c.l.b16 %v552
        %v967 = vunpack.c.h.b16 %v552
        %v968 = vunpack.c.l.b16 %v553
        %v969 = vunpack.c.h.b16 %v553
        %v970 = vunpack.c.l.b16 %v554
        %v971 = vunpack.c.h.b16 %v554
        %v972 = vunpack.c.l.b16 %v555
        %v973 = vunpack.c.h.b16 %v555
        %v974 = vunpack.c.l.b16 %v556
        %v975 = vunpack.c.h.b16 %v556
        %v976 = vunpack.c.l.b16 %v557
        %v977 = vunpack.c.h.b16 %v557
        %v978 = vunpack.c.l.b16 %v558
        %v979 = vunpack.c.h.b16 %v558
        %v980 = vunpack.c.l.b16 %v559
        %v981 = vunpack.c.h.b16 %v559
        %v982 = vunpack.c.l.b16 %v560
        %v983 = vunpack.c.h.b16 %v560
        %v984 = vunpack.c.l.b16 %v561
        %v985 = vunpack.c.h.b16 %v561
        %v986 = vunpack.c.l.b16 %v562
        %v987 = vunpack.c.h.b16 %v562
        %v988 = vunpack.c.l.b16 %v563
        %v989 = vunpack.c.h.b16 %v563
        %v990 = vunpack.c.l.b16 %v564
        %v991 = vunpack.c.h.b16 %v564
        %v992 = vunpack.c.l.b16 %v565
        %v993 = vunpack.c.h.b16 %v565
        %v994 = vunpack.c.l.b16 %v566
        %v995 = vunpack.c.h.b16 %v566
        %v996 = vunpack.c.l.b16 %v567
        %v997 = vunpack.c.h.b16 %v567
        %v998 = vunpack.c.l.b16 %v568
        %v999 = vunpack.c.h.b16 %v568
        %v1000 = vunpack.c.l.b16 %v569
        %v1001 = vunpack.c.h.b16 %v569
        %v1002 = vunpack.c.l.b16 %v570
        %v1003 = vunpack.c.h.b16 %v570
        %v1004 = vunpack.c.l.b16 %v571
        %v1005 = vunpack.c.h.b16 %v571
        %v1006 = vunpack.c.l.b16 %v572
        %v1007 = vunpack.c.h.b16 %v572
        %v1008 = vunpack.c.l.b16 %v573
        %v1009 = vunpack.c.h.b16 %v573
        %v1010 = vunpack.c.l.b16 %v574
        %v1011 = vunpack.c.h.b16 %v574
        %v1012 = vunpack.c.l.b16 %v575
        %v1013 = vunpack.c.h.b16 %v575
        %v1014 = vunpack.c.l.b16 %v576
        %v1015 = vunpack.c.h.b16 %v576
        %v1016 = vunpack.c.l.b16 %v577
        %v1017 = vunpack.c.h.b16 %v577
        %v1018 = vunpack.c.l.b16 %v578
        %v1019 = vunpack.c.h.b16 %v578
        %v1020 = vunpack.c.l.b16 %v579
        %v1021 = vunpack.c.h.b16 %v579
        %v1022 = vunpack.c.l.b16 %v580
        %v1023 = vunpack.c.h.b16 %v580
        %v1024 = vunpack.c.l.b16 %v581
        %v1025 = vunpack.c.h.b16 %v581
        %v1026 = vunpack.c.l.b16 %v582
        %v1027 = vunpack.c.h.b16 %v582
        %v1028 = vunpack.c.l.b16 %v583
        %v1029 = vunpack.c.h.b16 %v583
        %v1030 = vunpack.c.l.b16 %v584
        %v1031 = vunpack.c.h.b16 %v584
        %v1032 = vunpack.c.l.b16 %v585
        %v1033 = vunpack.c.h.b16 %v585
        %v1034 = vunpack.c.l.b16 %v586
        %v1035 = vunpack.c.h.b16 %v586
        %v1036 = vunpack.c.l.b16 %v587
        %v1037 = vunpack.c.h.b16 %v587
        %v1038 = vunpack.c.l.b16 %v588
        %v1039 = vunpack.c.h.b16 %v588
        %v1040 = vunpack.c.l.b16 %v589
        %v1041 = vunpack.c.h.b16 %v589
        %v1042 = vunpack.c.l.b16 %v590
        %v1043 = vunpack.c.h.b16 %v590
        %v1044 = vunpack.c.l.b16 %v591
        %v1045 = vunpack.c.h.b16 %v591
        %v1046 = vunpack.c.l.b16 %v592
        %v1047 = vunpack.c.h.b16 %v592
        %v1048 = vunpack.c.l.b16 %v593
        %v1049 = vunpack.c.h.b16 %v593
        %v1050 = vunpack.c.l.b16 %v594
        %v1051 = vunpack.c.h.b16 %v594
        %v1052 = vunpack.c.l.b16 %v595
        %v1053 = vunpack.c.h.b16 %v595
        %v1054 = vunpack.c.l.b16 %v596
        %v1055 = vunpack.c.h.b16 %v596
        %v1056 = vunpack.c.l.b16 %v597
        %v1057 = vunpack.c.h.b16 %v597
        %v1058 = vunpack.c.l.b16 %v598
        %v1059 = vunpack.c.h.b16 %v598
        %v1060 = vunpack.c.l.b16 %v599
        %v1061 = vunpack.c.h.b16 %v599
        %v1062 = vunpack.c.l.b16 %v600
        %v1063 = vunpack.c.h.b16 %v600
        %v1064 = vunpack.c.l.b16 %v601
        %v1065 = vunpack.c.h.b16 %v601
        %v1066 = vpack.c.b16 %v814, %v810
        %v1067 = vpack.c.b16 %v815, %v811
        %v1068 = vpack.c.b16 %v816, %v812
        %v1069 = vpack.c.b16 %v817, %v813
        %v1070 = vpack.c.b16 %v822, %v818
        %v1071 = vpack.c.b16 %v823, %v819
        %v1072 = vpack.c.b16 %v824, %v820
        %v1073 = vpack.c.b16 %v825, %v821
        %v1074 = vpack.c.b16 %v830, %v826
        %v1075 = vpack.c.b16 %v831, %v827
        %v1076 = vpack.c.b16 %v832, %v828
        %v1077 = vpack.c.b16 %v833, %v829
        %v1078 = vpack.c.b16 %v838, %v834
        %v1079 = vpack.c.b16 %v839, %v835
        %v1080 = vpack.c.b16 %v840, %v836
        %v1081 = vpack.c.b16 %v841, %v837
        %v1082 = vpack.c.b16 %v846, %v842
        %v1083 = vpack.c.b16 %v847, %v843
        %v1084 = vpack.c.b16 %v848, %v844
        %v1085 = vpack.c.b16 %v849, %v845
        %v1086 = vpack.c.b16 %v854, %v850
        %v1087 = vpack.c.b16 %v855, %v851
        %v1088 = vpack.c.b16 %v856, %v852
        %v1089 = vpack.c.b16 %v857, %v853
        %v1090 = vpack.c.b16 %v862, %v858
        %v1091 = vpack.c.b16 %v863, %v859
        %v1092 = vpack.c.b16 %v864, %v860
        %v1093 = vpack.c.b16 %v865, %v861
        %v1094 = vpack.c.b16 %v870, %v866
        %v1095 = vpack.c.b16 %v871, %v867
        %v1096 = vpack.c.b16 %v872, %v868
        %v1097 = vpack.c.b16 %v873, %v869
        %v1098 = vpack.c.b16 %v878, %v874
        %v1099 = vpack.c.b16 %v879, %v875
        %v1100 = vpack.c.b16 %v880, %v876
        %v1101 = vpack.c.b16 %v881, %v877
        %v1102 = vpack.c.b16 %v886, %v882
        %v1103 = vpack.c.b16 %v887, %v883
        %v1104 = vpack.c.b16 %v888, %v884
        %v1105 = vpack.c.b16 %v889, %v885
        %v1106 = vpack.c.b16 %v894, %v890
        %v1107 = vpack.c.b16 %v895, %v891
        %v1108 = vpack.c.b16 %v896, %v892
        %v1109 = vpack.c.b16 %v897, %v893
        %v1110 = vpack.c.b16 %v902, %v898
        %v1111 = vpack.c.b16 %v903, %v899
        %v1112 = vpack.c.b16 %v904, %v900
        %v1113 = vpack.c.b16 %v905, %v901
        %v1114 = vpack.c.b16 %v910, %v906
        %v1115 = vpack.c.b16 %v911, %v907
        %v1116 = vpack.c.b16 %v912, %v908
        %v1117 = vpack.c.b16 %v913, %v909
        %v1118 = vpack.c.b16 %v918, %v914
        %v1119 = vpack.c.b16 %v919, %v915
        %v1120 = vpack.c.b16 %v920, %v916
        %v1121 = vpack.c.b16 %v921, %v917
        %v1122 = vpack.c.b16 %v926, %v922
        %v1123 = vpack.c.b16 %v927, %v923
        %v1124 = vpack.c.b16 %v928, %v924
        %v1125 = vpack.c.b16 %v929, %v925
        %v1126 = vpack.c.b16 %v934, %v930
        %v1127 = vpack.c.b16 %v935, %v931
        %v1128 = vpack.c.b16 %v936, %v932
        %v1129 = vpack.c.b16 %v937, %v933
        %v1130 = vpack.c.b16 %v942, %v938
        %v1131 = vpack.c.b16 %v943, %v939
        %v1132 = vpack.c.b16 %v944, %v940
        %v1133 = vpack.c.b16 %v945, %v941
        %v1134 = vpack.c.b16 %v950, %v946
        %v1135 = vpack.c.b16 %v951, %v947
        %v1136 = vpack.c.b16 %v952, %v948
        %v1137 = vpack.c.b16 %v953, %v949
        %v1138 = vpack.c.b16 %v958, %v954
        %v1139 = vpack.c.b16 %v959, %v955
        %v1140 = vpack.c.b16 %v960, %v956
        %v1141 = vpack.c.b16 %v961, %v957
        %v1142 = vpack.c.b16 %v966, %v962
        %v1143 = vpack.c.b16 %v967, %v963
        %v1144 = vpack.c.b16 %v968, %v964
        %v1145 = vpack.c.b16 %v969, %v965
        %v1146 = vpack.c.b16 %v974, %v970
        %v1147 = vpack.c.b16 %v975, %v971
        %v1148 = vpack.c.b16 %v976, %v972
        %v1149 = vpack.c.b16 %v977, %v973
        %v1150 = vpack.c.b16 %v982, %v978
        %v1151 = vpack.c.b16 %v983, %v979
        %v1152 = vpack.c.b16 %v984, %v980
        %v1153 = vpack.c.b16 %v985, %v981
        %v1154 = vpack.c.b16 %v990, %v986
        %v1155 = vpack.c.b16 %v991, %v987
        %v1156 = vpack.c.b16 %v992, %v988
        %v1157 = vpack.c.b16 %v993, %v989
        %v1158 = vpack.c.b16 %v998, %v994
        %v1159 = vpack.c.b16 %v999, %v995
        %v1160 = vpack.c.b16 %v1000, %v996
        %v1161 = vpack.c.b16 %v1001, %v997
        %v1162 = vpack.c.b16 %v1006, %v1002
        %v1163 = vpack.c.b16 %v1007, %v1003
        %v1164 = vpack.c.b16 %v1008, %v1004
        %v1165 = vpack.c.b16 %v1009, %v1005
        %v1166 = vpack.c.b16 %v1014, %v1010
        %v1167 = vpack.c.b16 %v1015, %v1011
        %v1168 = vpack.c.b16 %v1016, %v1012
        %v1169 = vpack.c.b16 %v1017, %v1013
        %v1170 = vpack.c.b16 %v1022, %v1018
        %v1171 = vpack.c.b16 %v1023, %v1019
        %v1172 = vpack.c.b16 %v1024, %v1020
        %v1173 = vpack.c.b16 %v1025, %v1021
        %v1174 = vpack.c.b16 %v1030, %v1026
        %v1175 = vpack.c.b16 %v1031, %v1027
        %v1176 = vpack.c.b16 %v1032, %v1028
        %v1177 = vpack.c.b16 %v1033, %v1029
        %v1178 = vpack.c.b16 %v1038, %v1034
        %v1179 = vpack.c.b16 %v1039, %v1035
        %v1180 = vpack.c.b16 %v1040, %v1036
        %v1181 = vpack.c.b16 %v1041, %v1037
        %v1182 = vpack.c.b16 %v1046, %v1042
        %v1183 = vpack.c.b16 %v1047, %v1043
        %v1184 = vpack.c.b16 %v1048, %v1044
        %v1185 = vpack.c.b16 %v1049, %v1045
        %v1186 = vpack.c.b16 %v1054, %v1050
        %v1187 = vpack.c.b16 %v1055, %v1051
        %v1188 = vpack.c.b16 %v1056, %v1052
        %v1189 = vpack.c.b16 %v1057, %v1053
        %v1190 = vpack.c.b16 %v1062, %v1058
        %v1191 = vpack.c.b16 %v1063, %v1059
        %v1192 = vpack.c.b16 %v1064, %v1060
        %v1193 = vpack.c.b16 %v1065, %v1061
        %1322 = vmatpush.bf16.msra.mxu0 %v1094
        %1323 = vmatpush.bf16.msra.mxu0 %v1090
        %1324 = vmatpush.bf16.msra.mxu0 %v1086
        %1325 = vmatpush.bf16.msra.mxu0 %v1082
        %1326 = vmatpush.bf16.msra.mxu0 %v1078
        %1327 = vmatpush.bf16.msra.mxu0 %v1074
        %1328 = vmatpush.bf16.msra.mxu0 %v1070
        %1329 = vmatpush.bf16.msra.mxu0 %v1066
        %1330 = vmatmul.bf16.gmra.mxu0 %v650
        %v1331 = vpop.f32.mrf.mxu0
        %v1332 = vadd.f32 0.0, %v1331
        %v1333 = vpop.f32.mrf.mxu0
        %v1334 = vadd.f32 0.0, %v1333
        %1335 = vmatmul.bf16.gmra.mxu0 %v654
        %v1336 = vpop.f32.mrf.mxu0
        %v1337 = vadd.f32 0.0, %v1336
        %v1338 = vpop.f32.mrf.mxu0
        %v1339 = vadd.f32 0.0, %v1338
        %1340 = vmatmul.bf16.gmra.mxu0 %v658
        %v1341 = vpop.f32.mrf.mxu0
        %v1342 = vadd.f32 0.0, %v1341
        %v1343 = vpop.f32.mrf.mxu0
        %v1344 = vadd.f32 0.0, %v1343
        %1345 = vmatmul.bf16.gmra.mxu0 %v662
        %v1346 = vpop.f32.mrf.mxu0
        %v1347 = vadd.f32 0.0, %v1346
        %v1348 = vpop.f32.mrf.mxu0
        %v1349 = vadd.f32 0.0, %v1348
        %1350 = vdwg.mxu0
        %1351 = vmatpush.bf16.msra.mxu0 %v1126
        %1352 = vmatpush.bf16.msra.mxu0 %v1122
        %1353 = vmatpush.bf16.msra.mxu0 %v1118
        %1354 = vmatpush.bf16.msra.mxu0 %v1114
        %1355 = vmatpush.bf16.msra.mxu0 %v1110
        %1356 = vmatpush.bf16.msra.mxu0 %v1106
        %1357 = vmatpush.bf16.msra.mxu0 %v1102
        %1358 = vmatpush.bf16.msra.mxu0 %v1098
        %1359 = vmatmul.bf16.gmra.mxu0 %v651
        %v1360 = vpop.f32.mrf.mxu0
        %v1361 = vadd.f32 %v1332, %v1360
        %v1362 = vpop.f32.mrf.mxu0
        %v1363 = vadd.f32 %v1334, %v1362
        %1364 = vmatmul.bf16.gmra.mxu0 %v655
        %v1365 = vpop.f32.mrf.mxu0
        %v1366 = vadd.f32 %v1337, %v1365
        %v1367 = vpop.f32.mrf.mxu0
        %v1368 = vadd.f32 %v1339, %v1367
        %1369 = vmatmul.bf16.gmra.mxu0 %v659
        %v1370 = vpop.f32.mrf.mxu0
        %v1371 = vadd.f32 %v1342, %v1370
        %v1372 = vpop.f32.mrf.mxu0
        %v1373 = vadd.f32 %v1344, %v1372
        %1374 = vmatmul.bf16.gmra.mxu0 %v663
        %v1375 = vpop.f32.mrf.mxu0
        %v1376 = vadd.f32 %v1347, %v1375
        %v1377 = vpop.f32.mrf.mxu0
        %v1378 = vadd.f32 %v1349, %v1377
        %1379 = vdwg.mxu0
        %1380 = vmatpush.bf16.msra.mxu0 %v1158
        %1381 = vmatpush.bf16.msra.mxu0 %v1154
        %1382 = vmatpush.bf16.msra.mxu0 %v1150
        %1383 = vmatpush.bf16.msra.mxu0 %v1146
        %1384 = vmatpush.bf16.msra.mxu0 %v1142
        %1385 = vmatpush.bf16.msra.mxu0 %v1138
        %1386 = vmatpush.bf16.msra.mxu0 %v1134
        %1387 = vmatpush.bf16.msra.mxu0 %v1130
        %1388 = vmatmul.bf16.gmra.mxu0 %v652
        %v1389 = vpop.f32.mrf.mxu0
        %v1390 = vadd.f32 %v1361, %v1389
        %v1391 = vpop.f32.mrf.mxu0
        %v1392 = vadd.f32 %v1363, %v1391
        %1393 = vmatmul.bf16.gmra.mxu0 %v656
        %v1394 = vpop.f32.mrf.mxu0
        %v1395 = vadd.f32 %v1366, %v1394
        %v1396 = vpop.f32.mrf.mxu0
        %v1397 = vadd.f32 %v1368, %v1396
        %1398 = vmatmul.bf16.gmra.mxu0 %v660
        %v1399 = vpop.f32.mrf.mxu0
        %v1400 = vadd.f32 %v1371, %v1399
        %v1401 = vpop.f32.mrf.mxu0
        %v1402 = vadd.f32 %v1373, %v1401
        %1403 = vmatmul.bf16.gmra.mxu0 %v664
        %v1404 = vpop.f32.mrf.mxu0
        %v1405 = vadd.f32 %v1376, %v1404
        %v1406 = vpop.f32.mrf.mxu0
        %v1407 = vadd.f32 %v1378, %v1406
        %1408 = vdwg.mxu0
        %1409 = vmatpush.bf16.msra.mxu0 %v1190
        %1410 = vmatpush.bf16.msra.mxu0 %v1186
        %1411 = vmatpush.bf16.msra.mxu0 %v1182
        %1412 = vmatpush.bf16.msra.mxu0 %v1178
        %1413 = vmatpush.bf16.msra.mxu0 %v1174
        %1414 = vmatpush.bf16.msra.mxu0 %v1170
        %1415 = vmatpush.bf16.msra.mxu0 %v1166
        %1416 = vmatpush.bf16.msra.mxu0 %v1162
        %1417 = vmatmul.bf16.gmra.mxu0 %v653
        %v1418 = vpop.f32.mrf.mxu0
        %v1419 = vadd.f32 %v1390, %v1418
        %v1420 = vpop.f32.mrf.mxu0
        %v1421 = vadd.f32 %v1392, %v1420
        %1422 = vmatmul.bf16.gmra.mxu0 %v657
        %v1423 = vpop.f32.mrf.mxu0
        %v1424 = vadd.f32 %v1395, %v1423
        %v1425 = vpop.f32.mrf.mxu0
        %v1426 = vadd.f32 %v1397, %v1425
        %1427 = vmatmul.bf16.gmra.mxu0 %v661
        %v1428 = vpop.f32.mrf.mxu0
        %v1429 = vadd.f32 %v1400, %v1428
        %v1430 = vpop.f32.mrf.mxu0
        %v1431 = vadd.f32 %v1402, %v1430
        %1432 = vmatmul.bf16.gmra.mxu0 %v665
        %v1433 = vpop.f32.mrf.mxu0
        %v1434 = vadd.f32 %v1405, %v1433
        %v1435 = vpop.f32.mrf.mxu0
        %v1436 = vadd.f32 %v1407, %v1435
        %1437 = vdwg.mxu0
        %1438 = vmatpush.bf16.msra.mxu0 %v1095
        %1439 = vmatpush.bf16.msra.mxu0 %v1091
        %1440 = vmatpush.bf16.msra.mxu0 %v1087
        %1441 = vmatpush.bf16.msra.mxu0 %v1083
        %1442 = vmatpush.bf16.msra.mxu0 %v1079
        %1443 = vmatpush.bf16.msra.mxu0 %v1075
        %1444 = vmatpush.bf16.msra.mxu0 %v1071
        %1445 = vmatpush.bf16.msra.mxu0 %v1067
        %1446 = vmatmul.bf16.gmra.mxu0 %v650
        %v1447 = vpop.f32.mrf.mxu0
        %v1448 = vadd.f32 0.0, %v1447
        %v1449 = vpop.f32.mrf.mxu0
        %v1450 = vadd.f32 0.0, %v1449
        %1451 = vmatmul.bf16.gmra.mxu0 %v654
        %v1452 = vpop.f32.mrf.mxu0
        %v1453 = vadd.f32 0.0, %v1452
        %v1454 = vpop.f32.mrf.mxu0
        %v1455 = vadd.f32 0.0, %v1454
        %1456 = vmatmul.bf16.gmra.mxu0 %v658
        %v1457 = vpop.f32.mrf.mxu0
        %v1458 = vadd.f32 0.0, %v1457
        %v1459 = vpop.f32.mrf.mxu0
        %v1460 = vadd.f32 0.0, %v1459
        %1461 = vmatmul.bf16.gmra.mxu0 %v662
        %v1462 = vpop.f32.mrf.mxu0
        %v1463 = vadd.f32 0.0, %v1462
        %v1464 = vpop.f32.mrf.mxu0
        %v1465 = vadd.f32 0.0, %v1464
        %1466 = vdwg.mxu0
        %1467 = vmatpush.bf16.msra.mxu0 %v1127
        %1468 = vmatpush.bf16.msra.mxu0 %v1123
        %1469 = vmatpush.bf16.msra.mxu0 %v1119
        %1470 = vmatpush.bf16.msra.mxu0 %v1115
        %1471 = vmatpush.bf16.msra.mxu0 %v1111
        %1472 = vmatpush.bf16.msra.mxu0 %v1107
        %1473 = vmatpush.bf16.msra.mxu0 %v1103
        %1474 = vmatpush.bf16.msra.mxu0 %v1099
        %1475 = vmatmul.bf16.gmra.mxu0 %v651
        %v1476 = vpop.f32.mrf.mxu0
        %v1477 = vadd.f32 %v1448, %v1476
        %v1478 = vpop.f32.mrf.mxu0
        %v1479 = vadd.f32 %v1450, %v1478
        %1480 = vmatmul.bf16.gmra.mxu0 %v655
        %v1481 = vpop.f32.mrf.mxu0
        %v1482 = vadd.f32 %v1453, %v1481
        %v1483 = vpop.f32.mrf.mxu0
        %v1484 = vadd.f32 %v1455, %v1483
        %1485 = vmatmul.bf16.gmra.mxu0 %v659
        %v1486 = vpop.f32.mrf.mxu0
        %v1487 = vadd.f32 %v1458, %v1486
        %v1488 = vpop.f32.mrf.mxu0
        %v1489 = vadd.f32 %v1460, %v1488
        %1490 = vmatmul.bf16.gmra.mxu0 %v663
        %v1491 = vpop.f32.mrf.mxu0
        %v1492 = vadd.f32 %v1463, %v1491
        %v1493 = vpop.f32.mrf.mxu0
        %v1494 = vadd.f32 %v1465, %v1493
        %1495 = vdwg.mxu0
        %1496 = vmatpush.bf16.msra.mxu0 %v1159
        %1497 = vmatpush.bf16.msra.mxu0 %v1155
        %1498 = vmatpush.bf16.msra.mxu0 %v1151
        %1499 = vmatpush.bf16.msra.mxu0 %v1147
        %1500 = vmatpush.bf16.msra.mxu0 %v1143
        %1501 = vmatpush.bf16.msra.mxu0 %v1139
        %1502 = vmatpush.bf16.msra.mxu0 %v1135
        %1503 = vmatpush.bf16.msra.mxu0 %v1131
        %1504 = vmatmul.bf16.gmra.mxu0 %v652
        %v1505 = vpop.f32.mrf.mxu0
        %v1506 = vadd.f32 %v1477, %v1505
        %v1507 = vpop.f32.mrf.mxu0
        %v1508 = vadd.f32 %v1479, %v1507
        %1509 = vmatmul.bf16.gmra.mxu0 %v656
        %v1510 = vpop.f32.mrf.mxu0
        %v1511 = vadd.f32 %v1482, %v1510
        %v1512 = vpop.f32.mrf.mxu0
        %v1513 = vadd.f32 %v1484, %v1512
        %1514 = vmatmul.bf16.gmra.mxu0 %v660
        %v1515 = vpop.f32.mrf.mxu0
        %v1516 = vadd.f32 %v1487, %v1515
        %v1517 = vpop.f32.mrf.mxu0
        %v1518 = vadd.f32 %v1489, %v1517
        %1519 = vmatmul.bf16.gmra.mxu0 %v664
        %v1520 = vpop.f32.mrf.mxu0
        %v1521 = vadd.f32 %v1492, %v1520
        %v1522 = vpop.f32.mrf.mxu0
        %v1523 = vadd.f32 %v1494, %v1522
        %1524 = vdwg.mxu0
        %1525 = vmatpush.bf16.msra.mxu0 %v1191
        %1526 = vmatpush.bf16.msra.mxu0 %v1187
        %1527 = vmatpush.bf16.msra.mxu0 %v1183
        %1528 = vmatpush.bf16.msra.mxu0 %v1179
        %1529 = vmatpush.bf16.msra.mxu0 %v1175
        %1530 = vmatpush.bf16.msra.mxu0 %v1171
        %1531 = vmatpush.bf16.msra.mxu0 %v1167
        %1532 = vmatpush.bf16.msra.mxu0 %v1163
        %1533 = vmatmul.bf16.gmra.mxu0 %v653
        %v1534 = vpop.f32.mrf.mxu0
        %v1535 = vadd.f32 %v1506, %v1534
        %v1536 = vpop.f32.mrf.mxu0
        %v1537 = vadd.f32 %v1508, %v1536
        %1538 = vmatmul.bf16.gmra.mxu0 %v657
        %v1539 = vpop.f32.mrf.mxu0
        %v1540 = vadd.f32 %v1511, %v1539
        %v1541 = vpop.f32.mrf.mxu0
        %v1542 = vadd.f32 %v1513, %v1541
        %1543 = vmatmul.bf16.gmra.mxu0 %v661
        %v1544 = vpop.f32.mrf.mxu0
        %v1545 = vadd.f32 %v1516, %v1544
        %v1546 = vpop.f32.mrf.mxu0
        %v1547 = vadd.f32 %v1518, %v1546
        %1548 = vmatmul.bf16.gmra.mxu0 %v665
        %v1549 = vpop.f32.mrf.mxu0
        %v1550 = vadd.f32 %v1521, %v1549
        %v1551 = vpop.f32.mrf.mxu0
        %v1552 = vadd.f32 %v1523, %v1551
        %1553 = vdwg.mxu0
        %1554 = vmatpush.bf16.msra.mxu0 %v1096
        %1555 = vmatpush.bf16.msra.mxu0 %v1092
        %1556 = vmatpush.bf16.msra.mxu0 %v1088
        %1557 = vmatpush.bf16.msra.mxu0 %v1084
        %1558 = vmatpush.bf16.msra.mxu0 %v1080
        %1559 = vmatpush.bf16.msra.mxu0 %v1076
        %1560 = vmatpush.bf16.msra.mxu0 %v1072
        %1561 = vmatpush.bf16.msra.mxu0 %v1068
        %1562 = vmatmul.bf16.gmra.mxu0 %v650
        %v1563 = vpop.f32.mrf.mxu0
        %v1564 = vadd.f32 0.0, %v1563
        %v1565 = vpop.f32.mrf.mxu0
        %v1566 = vadd.f32 0.0, %v1565
        %1567 = vmatmul.bf16.gmra.mxu0 %v654
        %v1568 = vpop.f32.mrf.mxu0
        %v1569 = vadd.f32 0.0, %v1568
        %v1570 = vpop.f32.mrf.mxu0
        %v1571 = vadd.f32 0.0, %v1570
        %1572 = vmatmul.bf16.gmra.mxu0 %v658
        %v1573 = vpop.f32.mrf.mxu0
        %v1574 = vadd.f32 0.0, %v1573
        %v1575 = vpop.f32.mrf.mxu0
        %v1576 = vadd.f32 0.0, %v1575
        %1577 = vmatmul.bf16.gmra.mxu0 %v662
        %v1578 = vpop.f32.mrf.mxu0
        %v1579 = vadd.f32 0.0, %v1578
        %v1580 = vpop.f32.mrf.mxu0
        %v1581 = vadd.f32 0.0, %v1580
        %1582 = vdwg.mxu0
        %1583 = vmatpush.bf16.msra.mxu0 %v1128
        %1584 = vmatpush.bf16.msra.mxu0 %v1124
        %1585 = vmatpush.bf16.msra.mxu0 %v1120
        %1586 = vmatpush.bf16.msra.mxu0 %v1116
        %1587 = vmatpush.bf16.msra.mxu0 %v1112
        %1588 = vmatpush.bf16.msra.mxu0 %v1108
        %1589 = vmatpush.bf16.msra.mxu0 %v1104
        %1590 = vmatpush.bf16.msra.mxu0 %v1100
        %1591 = vmatmul.bf16.gmra.mxu0 %v651
        %v1592 = vpop.f32.mrf.mxu0
        %v1593 = vadd.f32 %v1564, %v1592
        %v1594 = vpop.f32.mrf.mxu0
        %v1595 = vadd.f32 %v1566, %v1594
        %1596 = vmatmul.bf16.gmra.mxu0 %v655
        %v1597 = vpop.f32.mrf.mxu0
        %v1598 = vadd.f32 %v1569, %v1597
        %v1599 = vpop.f32.mrf.mxu0
        %v1600 = vadd.f32 %v1571, %v1599
        %1601 = vmatmul.bf16.gmra.mxu0 %v659
        %v1602 = vpop.f32.mrf.mxu0
        %v1603 = vadd.f32 %v1574, %v1602
        %v1604 = vpop.f32.mrf.mxu0
        %v1605 = vadd.f32 %v1576, %v1604
        %1606 = vmatmul.bf16.gmra.mxu0 %v663
        %v1607 = vpop.f32.mrf.mxu0
        %v1608 = vadd.f32 %v1579, %v1607
        %v1609 = vpop.f32.mrf.mxu0
        %v1610 = vadd.f32 %v1581, %v1609
        %1611 = vdwg.mxu0
        %1612 = vmatpush.bf16.msra.mxu0 %v1160
        %1613 = vmatpush.bf16.msra.mxu0 %v1156
        %1614 = vmatpush.bf16.msra.mxu0 %v1152
        %1615 = vmatpush.bf16.msra.mxu0 %v1148
        %1616 = vmatpush.bf16.msra.mxu0 %v1144
        %1617 = vmatpush.bf16.msra.mxu0 %v1140
        %1618 = vmatpush.bf16.msra.mxu0 %v1136
        %1619 = vmatpush.bf16.msra.mxu0 %v1132
        %1620 = vmatmul.bf16.gmra.mxu0 %v652
        %v1621 = vpop.f32.mrf.mxu0
        %v1622 = vadd.f32 %v1593, %v1621
        %v1623 = vpop.f32.mrf.mxu0
        %v1624 = vadd.f32 %v1595, %v1623
        %1625 = vmatmul.bf16.gmra.mxu0 %v656
        %v1626 = vpop.f32.mrf.mxu0
        %v1627 = vadd.f32 %v1598, %v1626
        %v1628 = vpop.f32.mrf.mxu0
        %v1629 = vadd.f32 %v1600, %v1628
        %1630 = vmatmul.bf16.gmra.mxu0 %v660
        %v1631 = vpop.f32.mrf.mxu0
        %v1632 = vadd.f32 %v1603, %v1631
        %v1633 = vpop.f32.mrf.mxu0
        %v1634 = vadd.f32 %v1605, %v1633
        %1635 = vmatmul.bf16.gmra.mxu0 %v664
        %v1636 = vpop.f32.mrf.mxu0
        %v1637 = vadd.f32 %v1608, %v1636
        %v1638 = vpop.f32.mrf.mxu0
        %v1639 = vadd.f32 %v1610, %v1638
        %1640 = vdwg.mxu0
        %1641 = vmatpush.bf16.msra.mxu0 %v1192
        %1642 = vmatpush.bf16.msra.mxu0 %v1188
        %1643 = vmatpush.bf16.msra.mxu0 %v1184
        %1644 = vmatpush.bf16.msra.mxu0 %v1180
        %1645 = vmatpush.bf16.msra.mxu0 %v1176
        %1646 = vmatpush.bf16.msra.mxu0 %v1172
        %1647 = vmatpush.bf16.msra.mxu0 %v1168
        %1648 = vmatpush.bf16.msra.mxu0 %v1164
        %1649 = vmatmul.bf16.gmra.mxu0 %v653
        %v1650 = vpop.f32.mrf.mxu0
        %v1651 = vadd.f32 %v1622, %v1650
        %v1652 = vpop.f32.mrf.mxu0
        %v1653 = vadd.f32 %v1624, %v1652
        %1654 = vmatmul.bf16.gmra.mxu0 %v657
        %v1655 = vpop.f32.mrf.mxu0
        %v1656 = vadd.f32 %v1627, %v1655
        %v1657 = vpop.f32.mrf.mxu0
        %v1658 = vadd.f32 %v1629, %v1657
        %1659 = vmatmul.bf16.gmra.mxu0 %v661
        %v1660 = vpop.f32.mrf.mxu0
        %v1661 = vadd.f32 %v1632, %v1660
        %v1662 = vpop.f32.mrf.mxu0
        %v1663 = vadd.f32 %v1634, %v1662
        %1664 = vmatmul.bf16.gmra.mxu0 %v665
        %v1665 = vpop.f32.mrf.mxu0
        %v1666 = vadd.f32 %v1637, %v1665
        %v1667 = vpop.f32.mrf.mxu0
        %v1668 = vadd.f32 %v1639, %v1667
        %1669 = vdwg.mxu0
        %1670 = vmatpush.bf16.msra.mxu0 %v1097
        %1671 = vmatpush.bf16.msra.mxu0 %v1093
        %1672 = vmatpush.bf16.msra.mxu0 %v1089
        %1673 = vmatpush.bf16.msra.mxu0 %v1085
        %1674 = vmatpush.bf16.msra.mxu0 %v1081
        %1675 = vmatpush.bf16.msra.mxu0 %v1077
        %1676 = vmatpush.bf16.msra.mxu0 %v1073
        %1677 = vmatpush.bf16.msra.mxu0 %v1069
        %1678 = vmatmul.bf16.gmra.mxu0 %v650
        %v1679 = vpop.f32.mrf.mxu0
        %v1680 = vadd.f32 0.0, %v1679
        %v1681 = vpop.f32.mrf.mxu0
        %v1682 = vadd.f32 0.0, %v1681
        %1683 = vmatmul.bf16.gmra.mxu0 %v654
        %v1684 = vpop.f32.mrf.mxu0
        %v1685 = vadd.f32 0.0, %v1684
        %v1686 = vpop.f32.mrf.mxu0
        %v1687 = vadd.f32 0.0, %v1686
        %1688 = vmatmul.bf16.gmra.mxu0 %v658
        %v1689 = vpop.f32.mrf.mxu0
        %v1690 = vadd.f32 0.0, %v1689
        %v1691 = vpop.f32.mrf.mxu0
        %v1692 = vadd.f32 0.0, %v1691
        %1693 = vmatmul.bf16.gmra.mxu0 %v662
        %v1694 = vpop.f32.mrf.mxu0
        %v1695 = vadd.f32 0.0, %v1694
        %v1696 = vpop.f32.mrf.mxu0
        %v1697 = vadd.f32 0.0, %v1696
        %1698 = vdwg.mxu0
        %1699 = vmatpush.bf16.msra.mxu0 %v1129
        %1700 = vmatpush.bf16.msra.mxu0 %v1125
        %1701 = vmatpush.bf16.msra.mxu0 %v1121
        %1702 = vmatpush.bf16.msra.mxu0 %v1117
        %1703 = vmatpush.bf16.msra.mxu0 %v1113
        %1704 = vmatpush.bf16.msra.mxu0 %v1109
        %1705 = vmatpush.bf16.msra.mxu0 %v1105
        %1706 = vmatpush.bf16.msra.mxu0 %v1101
        %1707 = vmatmul.bf16.gmra.mxu0 %v651
        %v1708 = vpop.f32.mrf.mxu0
        %v1709 = vadd.f32 %v1680, %v1708
        %v1710 = vpop.f32.mrf.mxu0
        %v1711 = vadd.f32 %v1682, %v1710
        %1712 = vmatmul.bf16.gmra.mxu0 %v655
        %v1713 = vpop.f32.mrf.mxu0
        %v1714 = vadd.f32 %v1685, %v1713
        %v1715 = vpop.f32.mrf.mxu0
        %v1716 = vadd.f32 %v1687, %v1715
        %1717 = vmatmul.bf16.gmra.mxu0 %v659
        %v1718 = vpop.f32.mrf.mxu0
        %v1719 = vadd.f32 %v1690, %v1718
        %v1720 = vpop.f32.mrf.mxu0
        %v1721 = vadd.f32 %v1692, %v1720
        %1722 = vmatmul.bf16.gmra.mxu0 %v663
        %v1723 = vpop.f32.mrf.mxu0
        %v1724 = vadd.f32 %v1695, %v1723
        %v1725 = vpop.f32.mrf.mxu0
        %v1726 = vadd.f32 %v1697, %v1725
        %1727 = vdwg.mxu0
        %1728 = vmatpush.bf16.msra.mxu0 %v1161
        %1729 = vmatpush.bf16.msra.mxu0 %v1157
        %1730 = vmatpush.bf16.msra.mxu0 %v1153
        %1731 = vmatpush.bf16.msra.mxu0 %v1149
        %1732 = vmatpush.bf16.msra.mxu0 %v1145
        %1733 = vmatpush.bf16.msra.mxu0 %v1141
        %1734 = vmatpush.bf16.msra.mxu0 %v1137
        %1735 = vmatpush.bf16.msra.mxu0 %v1133
        %1736 = vmatmul.bf16.gmra.mxu0 %v652
        %v1737 = vpop.f32.mrf.mxu0
        %v1738 = vadd.f32 %v1709, %v1737
        %v1739 = vpop.f32.mrf.mxu0
        %v1740 = vadd.f32 %v1711, %v1739
        %1741 = vmatmul.bf16.gmra.mxu0 %v656
        %v1742 = vpop.f32.mrf.mxu0
        %v1743 = vadd.f32 %v1714, %v1742
        %v1744 = vpop.f32.mrf.mxu0
        %v1745 = vadd.f32 %v1716, %v1744
        %1746 = vmatmul.bf16.gmra.mxu0 %v660
        %v1747 = vpop.f32.mrf.mxu0
        %v1748 = vadd.f32 %v1719, %v1747
        %v1749 = vpop.f32.mrf.mxu0
        %v1750 = vadd.f32 %v1721, %v1749
        %1751 = vmatmul.bf16.gmra.mxu0 %v664
        %v1752 = vpop.f32.mrf.mxu0
        %v1753 = vadd.f32 %v1724, %v1752
        %v1754 = vpop.f32.mrf.mxu0
        %v1755 = vadd.f32 %v1726, %v1754
        %1756 = vdwg.mxu0
        %1757 = vmatpush.bf16.msra.mxu0 %v1193
        %1758 = vmatpush.bf16.msra.mxu0 %v1189
        %1759 = vmatpush.bf16.msra.mxu0 %v1185
        %1760 = vmatpush.bf16.msra.mxu0 %v1181
        %1761 = vmatpush.bf16.msra.mxu0 %v1177
        %1762 = vmatpush.bf16.msra.mxu0 %v1173
        %1763 = vmatpush.bf16.msra.mxu0 %v1169
        %1764 = vmatpush.bf16.msra.mxu0 %v1165
        %1765 = vmatmul.bf16.gmra.mxu0 %v653
        %v1766 = vpop.f32.mrf.mxu0
        %v1767 = vadd.f32 %v1738, %v1766
        %v1768 = vpop.f32.mrf.mxu0
        %v1769 = vadd.f32 %v1740, %v1768
        %1770 = vmatmul.bf16.gmra.mxu0 %v657
        %v1771 = vpop.f32.mrf.mxu0
        %v1772 = vadd.f32 %v1743, %v1771
        %v1773 = vpop.f32.mrf.mxu0
        %v1774 = vadd.f32 %v1745, %v1773
        %1775 = vmatmul.bf16.gmra.mxu0 %v661
        %v1776 = vpop.f32.mrf.mxu0
        %v1777 = vadd.f32 %v1748, %v1776
        %v1778 = vpop.f32.mrf.mxu0
        %v1779 = vadd.f32 %v1750, %v1778
        %1780 = vmatmul.bf16.gmra.mxu0 %v665
        %v1781 = vpop.f32.mrf.mxu0
        %v1782 = vadd.f32 %v1753, %v1781
        %v1783 = vpop.f32.mrf.mxu0
        %v1784 = vadd.f32 %v1755, %v1783
        %1785 = vdwg.mxu0
        %v1786 = vadd.f32 %v426, %v1419
        %v1787 = vadd.f32 %v427, %v1535
        %v1788 = vadd.f32 %v428, %v1651
        %v1789 = vadd.f32 %v429, %v1767
        %v1790 = vadd.f32 %v430, %v1421
        %v1791 = vadd.f32 %v431, %v1537
        %v1792 = vadd.f32 %v432, %v1653
        %v1793 = vadd.f32 %v433, %v1769
        %v1794 = vadd.f32 %v434, %v1424
        %v1795 = vadd.f32 %v435, %v1540
        %v1796 = vadd.f32 %v436, %v1656
        %v1797 = vadd.f32 %v437, %v1772
        %v1798 = vadd.f32 %v438, %v1426
        %v1799 = vadd.f32 %v439, %v1542
        %v1800 = vadd.f32 %v440, %v1658
        %v1801 = vadd.f32 %v441, %v1774
        %v1802 = vadd.f32 %v442, %v1429
        %v1803 = vadd.f32 %v443, %v1545
        %v1804 = vadd.f32 %v444, %v1661
        %v1805 = vadd.f32 %v445, %v1777
        %v1806 = vadd.f32 %v446, %v1431
        %v1807 = vadd.f32 %v447, %v1547
        %v1808 = vadd.f32 %v448, %v1663
        %v1809 = vadd.f32 %v449, %v1779
        %v1810 = vadd.f32 %v450, %v1434
        %v1811 = vadd.f32 %v451, %v1550
        %v1812 = vadd.f32 %v452, %v1666
        %v1813 = vadd.f32 %v453, %v1782
        %v1814 = vadd.f32 %v454, %v1436
        %v1815 = vadd.f32 %v455, %v1552
        %v1816 = vadd.f32 %v456, %v1668
        %v1817 = vadd.f32 %v457, %v1784
        %1818 = vst [vmem:[#allocation2] sm:$0xff] %v1786
        %1819 = vst [vmem:[#allocation2 + $0x8] sm:$0xff] %v1787
        %1820 = vst [vmem:[#allocation2 + $0x10] sm:$0xff] %v1788
        %1821 = vst [vmem:[#allocation2 + $0x18] sm:$0xff] %v1789
        %1822 = vst [vmem:[#allocation2 + $0x20] sm:$0xff] %v1790
        %1823 = vst [vmem:[#allocation2 + $0x28] sm:$0xff] %v1791
        %1824 = vst [vmem:[#allocation2 + $0x30] sm:$0xff] %v1792
        %1825 = vst [vmem:[#allocation2 + $0x38] sm:$0xff] %v1793
        %1826 = vst [vmem:[#allocation2 + $0x40] sm:$0xff] %v1794
        %1827 = vst [vmem:[#allocation2 + $0x48] sm:$0xff] %v1795
        %1828 = vst [vmem:[#allocation2 + $0x50] sm:$0xff] %v1796
        %1829 = vst [vmem:[#allocation2 + $0x58] sm:$0xff] %v1797
        %1830 = vst [vmem:[#allocation2 + $0x60] sm:$0xff] %v1798
        %1831 = vst [vmem:[#allocation2 + $0x68] sm:$0xff] %v1799
        %1832 = vst [vmem:[#allocation2 + $0x70] sm:$0xff] %v1800
        %1833 = vst [vmem:[#allocation2 + $0x78] sm:$0xff] %v1801
        %1834 = vst [vmem:[#allocation2 + $0x80] sm:$0xff] %v1802
        %1835 = vst [vmem:[#allocation2 + $0x88] sm:$0xff] %v1803
        %1836 = vst [vmem:[#allocation2 + $0x90] sm:$0xff] %v1804
        %1837 = vst [vmem:[#allocation2 + $0x98] sm:$0xff] %v1805
        %1838 = vst [vmem:[#allocation2 + $0xa0] sm:$0xff] %v1806
        %1839 = vst [vmem:[#allocation2 + $0xa8] sm:$0xff] %v1807
        %1840 = vst [vmem:[#allocation2 + $0xb0] sm:$0xff] %v1808
        %1841 = vst [vmem:[#allocation2 + $0xb8] sm:$0xff] %v1809
        %1842 = vst [vmem:[#allocation2 + $0xc0] sm:$0xff] %v1810
        %1843 = vst [vmem:[#allocation2 + $0xc8] sm:$0xff] %v1811
        %1844 = vst [vmem:[#allocation2 + $0xd0] sm:$0xff] %v1812
        %1845 = vst [vmem:[#allocation2 + $0xd8] sm:$0xff] %v1813
        %1846 = vst [vmem:[#allocation2 + $0xe0] sm:$0xff] %v1814
        %1847 = vst [vmem:[#allocation2 + $0xe8] sm:$0xff] %v1815
        %1848 = vst [vmem:[#allocation2 + $0xf0] sm:$0xff] %v1816
        %1849 = vst [vmem:[#allocation2 + $0xf8] sm:$0xff] %v1817
        %p1850 = scmp.eq.s32.totalorder %s24, 3
        // Predicated region
        $region88: #{lstm_forward_pallas.1} parent=62 // pred_check
          %p1851 = pneg %p1850
        $region89: #{lstm_forward_pallas.1} parent=62 // pred_check_branch
          %1853 = sbr.rel (%p1851) target = $region91
        $region90: #{lstm_forward_pallas.1} parent=62 // pred_region
          %v1854 = vld [vmem:[#allocation7] sm:$0xff]
          %v1855 = vld [vmem:[#allocation7 + $0x8] sm:$0xff]
          %v1856 = vld [vmem:[#allocation7 + $0x10] sm:$0xff]
          %v1857 = vld [vmem:[#allocation7 + $0x18] sm:$0xff]
          %v1858 = vld [vmem:[#allocation7 + $0x20] sm:$0xff]
          %v1859 = vld [vmem:[#allocation7 + $0x28] sm:$0xff]
          %v1860 = vld [vmem:[#allocation7 + $0x30] sm:$0xff]
          %v1861 = vld [vmem:[#allocation7 + $0x38] sm:$0xff]
          %v1862 = vld [vmem:[#allocation7 + $0x40] sm:$0xff]
          %v1863 = vld [vmem:[#allocation7 + $0x48] sm:$0xff]
          %v1864 = vld [vmem:[#allocation7 + $0x50] sm:$0xff]
          %v1865 = vld [vmem:[#allocation7 + $0x58] sm:$0xff]
          %v1866 = vld [vmem:[#allocation7 + $0x60] sm:$0xff]
          %v1867 = vld [vmem:[#allocation7 + $0x68] sm:$0xff]
          %v1868 = vld [vmem:[#allocation7 + $0x70] sm:$0xff]
          %v1869 = vld [vmem:[#allocation7 + $0x78] sm:$0xff]
          %v1870 = vld [vmem:[#allocation7 + $0x80] sm:$0xff]
          %v1871 = vld [vmem:[#allocation7 + $0x88] sm:$0xff]
          %v1872 = vld [vmem:[#allocation7 + $0x90] sm:$0xff]
          %v1873 = vld [vmem:[#allocation7 + $0x98] sm:$0xff]
          %v1874 = vld [vmem:[#allocation7 + $0xa0] sm:$0xff]
          %v1875 = vld [vmem:[#allocation7 + $0xa8] sm:$0xff]
          %v1876 = vld [vmem:[#allocation7 + $0xb0] sm:$0xff]
          %v1877 = vld [vmem:[#allocation7 + $0xb8] sm:$0xff]
          %v1878 = vld [vmem:[#allocation7 + $0xc0] sm:$0xff]
          %v1879 = vld [vmem:[#allocation7 + $0xc8] sm:$0xff]
          %v1880 = vld [vmem:[#allocation7 + $0xd0] sm:$0xff]
          %v1881 = vld [vmem:[#allocation7 + $0xd8] sm:$0xff]
          %v1882 = vld [vmem:[#allocation7 + $0xe0] sm:$0xff]
          %v1883 = vld [vmem:[#allocation7 + $0xe8] sm:$0xff]
          %v1884 = vld [vmem:[#allocation7 + $0xf0] sm:$0xff]
          %v1885 = vld [vmem:[#allocation7 + $0xf8] sm:$0xff]
          %v1886 = vld [vmem:[#allocation7 + $0x100] sm:$0xff]
          %v1887 = vld [vmem:[#allocation7 + $0x108] sm:$0xff]
          %v1888 = vld [vmem:[#allocation7 + $0x110] sm:$0xff]
          %v1889 = vld [vmem:[#allocation7 + $0x118] sm:$0xff]
          %v1890 = vld [vmem:[#allocation7 + $0x120] sm:$0xff]
          %v1891 = vld [vmem:[#allocation7 + $0x128] sm:$0xff]
          %v1892 = vld [vmem:[#allocation7 + $0x130] sm:$0xff]
          %v1893 = vld [vmem:[#allocation7 + $0x138] sm:$0xff]
          %v1894 = vld [vmem:[#allocation7 + $0x140] sm:$0xff]
          %v1895 = vld [vmem:[#allocation7 + $0x148] sm:$0xff]
          %v1896 = vld [vmem:[#allocation7 + $0x150] sm:$0xff]
          %v1897 = vld [vmem:[#allocation7 + $0x158] sm:$0xff]
          %v1898 = vld [vmem:[#allocation7 + $0x160] sm:$0xff]
          %v1899 = vld [vmem:[#allocation7 + $0x168] sm:$0xff]
          %v1900 = vld [vmem:[#allocation7 + $0x170] sm:$0xff]
          %v1901 = vld [vmem:[#allocation7 + $0x178] sm:$0xff]
          %v1902 = vld [vmem:[#allocation7 + $0x180] sm:$0xff]
          %v1903 = vld [vmem:[#allocation7 + $0x188] sm:$0xff]
          %v1904 = vld [vmem:[#allocation7 + $0x190] sm:$0xff]
          %v1905 = vld [vmem:[#allocation7 + $0x198] sm:$0xff]
          %v1906 = vld [vmem:[#allocation7 + $0x1a0] sm:$0xff]
          %v1907 = vld [vmem:[#allocation7 + $0x1a8] sm:$0xff]
          %v1908 = vld [vmem:[#allocation7 + $0x1b0] sm:$0xff]
          %v1909 = vld [vmem:[#allocation7 + $0x1b8] sm:$0xff]
          %v1910 = vld [vmem:[#allocation7 + $0x1c0] sm:$0xff]
          %v1911 = vld [vmem:[#allocation7 + $0x1c8] sm:$0xff]
          %v1912 = vld [vmem:[#allocation7 + $0x1d0] sm:$0xff]
          %v1913 = vld [vmem:[#allocation7 + $0x1d8] sm:$0xff]
          %v1914 = vld [vmem:[#allocation7 + $0x1e0] sm:$0xff]
          %v1915 = vld [vmem:[#allocation7 + $0x1e8] sm:$0xff]
          %v1916 = vld [vmem:[#allocation7 + $0x1f0] sm:$0xff]
          %v1917 = vld [vmem:[#allocation7 + $0x1f8] sm:$0xff]
          %v1918 = vld [vmem:[#allocation2] sm:$0xff]
          %v1919 = vld [vmem:[#allocation2 + $0x8] sm:$0xff]
          %v1920 = vld [vmem:[#allocation2 + $0x10] sm:$0xff]
          %v1921 = vld [vmem:[#allocation2 + $0x18] sm:$0xff]
          %1922 = vmatpush.msra.mxu0 %v1914
          %1923 = vmatpush.msra.mxu0 %v1910
          %1924 = vmatpush.msra.mxu0 %v1906
          %1925 = vmatpush.msra.mxu0 %v1902
          %1926 = vmatpush.msra.mxu0 %v1898
          %1927 = vmatpush.msra.mxu0 %v1894
          %1928 = vmatpush.msra.mxu0 %v1890
          %1929 = vmatpush.msra.mxu0 %v1886
          %1930 = vmatpush.msra.mxu0 %v1882
          %1931 = vmatpush.msra.mxu0 %v1878
          %1932 = vmatpush.msra.mxu0 %v1874
          %1933 = vmatpush.msra.mxu0 %v1870
          %1934 = vmatpush.msra.mxu0 %v1866
          %1935 = vmatpush.msra.mxu0 %v1862
          %1936 = vmatpush.msra.mxu0 %v1858
          %1937 = vmatpush.msra.mxu0 %v1854
          %1938 = vmatmul.f32.gmra.mxu0 0.0
          %v1939 = vpop.f32.mrf.mxu0
          %v1940 = vadd.f32 0.0, %v1939
          %1941 = vdwg.mxu0
          %1942 = vmatpush.msra.mxu0 %v1915
          %1943 = vmatpush.msra.mxu0 %v1911
          %1944 = vmatpush.msra.mxu0 %v1907
          %1945 = vmatpush.msra.mxu0 %v1903
          %1946 = vmatpush.msra.mxu0 %v1899
          %1947 = vmatpush.msra.mxu0 %v1895
          %1948 = vmatpush.msra.mxu0 %v1891
          %1949 = vmatpush.msra.mxu0 %v1887
          %1950 = vmatpush.msra.mxu0 %v1883
          %1951 = vmatpush.msra.mxu0 %v1879
          %1952 = vmatpush.msra.mxu0 %v1875
          %1953 = vmatpush.msra.mxu0 %v1871
          %1954 = vmatpush.msra.mxu0 %v1867
          %1955 = vmatpush.msra.mxu0 %v1863
          %1956 = vmatpush.msra.mxu0 %v1859
          %1957 = vmatpush.msra.mxu0 %v1855
          %1958 = vmatmul.f32.gmra.mxu0 0.0
          %v1959 = vpop.f32.mrf.mxu0
          %v1960 = vadd.f32 0.0, %v1959
          %1961 = vdwg.mxu0
          %1962 = vmatpush.msra.mxu0 %v1916
          %1963 = vmatpush.msra.mxu0 %v1912
          %1964 = vmatpush.msra.mxu0 %v1908
          %1965 = vmatpush.msra.mxu0 %v1904
          %1966 = vmatpush.msra.mxu0 %v1900
          %1967 = vmatpush.msra.mxu0 %v1896
          %1968 = vmatpush.msra.mxu0 %v1892
          %1969 = vmatpush.msra.mxu0 %v1888
          %1970 = vmatpush.msra.mxu0 %v1884
          %1971 = vmatpush.msra.mxu0 %v1880
          %1972 = vmatpush.msra.mxu0 %v1876
          %1973 = vmatpush.msra.mxu0 %v1872
          %1974 = vmatpush.msra.mxu0 %v1868
          %1975 = vmatpush.msra.mxu0 %v1864
          %1976 = vmatpush.msra.mxu0 %v1860
          %1977 = vmatpush.msra.mxu0 %v1856
          %1978 = vmatmul.f32.gmra.mxu0 0.0
          %v1979 = vpop.f32.mrf.mxu0
          %v1980 = vadd.f32 0.0, %v1979
          %1981 = vdwg.mxu0
          %1982 = vmatpush.msra.mxu0 %v1917
          %1983 = vmatpush.msra.mxu0 %v1913
          %1984 = vmatpush.msra.mxu0 %v1909
          %1985 = vmatpush.msra.mxu0 %v1905
          %1986 = vmatpush.msra.mxu0 %v1901
          %1987 = vmatpush.msra.mxu0 %v1897
          %1988 = vmatpush.msra.mxu0 %v1893
          %1989 = vmatpush.msra.mxu0 %v1889
          %1990 = vmatpush.msra.mxu0 %v1885
          %1991 = vmatpush.msra.mxu0 %v1881
          %1992 = vmatpush.msra.mxu0 %v1877
          %1993 = vmatpush.msra.mxu0 %v1873
          %1994 = vmatpush.msra.mxu0 %v1869
          %1995 = vmatpush.msra.mxu0 %v1865
          %1996 = vmatpush.msra.mxu0 %v1861
          %1997 = vmatpush.msra.mxu0 %v1857
          %1998 = vmatmul.f32.gmra.mxu0 0.0
          %v1999 = vpop.f32.mrf.mxu0
          %v2000 = vadd.f32 0.0, %v1999
          %2001 = vdwg.mxu0
          %v2002 = vadd.f32 %v1918, %v1940
          %v2003 = vadd.f32 %v1919, %v1960
          %v2004 = vadd.f32 %v1920, %v1980
          %v2005 = vadd.f32 %v1921, %v2000
          %v2006 = vxor.u32 %v2002, 2147483648
          %v2007 = vxor.u32 %v2003, 2147483648
          %v2008 = vxor.u32 %v2004, 2147483648
          %v2009 = vmul.f32 %v2006, 1.442695
          %v2010 = vpow.pop %v2009
          %v2011 = vmul.f32 %v2007, 1.442695
          %v2012 = vpow.pop %v2011
          %v2013 = vmul.f32 %v2008, 1.442695
          %v2014 = vpow.pop %v2013
          %v2015 = vadd.f32 %v2010, 1.0
          %v2016 = vadd.f32 %v2012, 1.0
          %v2017 = vadd.f32 %v2014, 1.0
          %v2018 = vrcp.pop %v2015
          %v2019 = vmul.f32 %v2015, %v2018
          %v2020 = vsub.f32 1.0, %v2019
          %v2021 = vmul.f32 %v2018, %v2020
          %v2022 = vadd.f32 %v2018, %v2021
          %vm2023 = vweird.f32 %v2015
          %vm2024 = vweird.f32 %v2018
          %vm2025 = vmor %vm2023, %vm2024
          %v2026 = vsel %vm2025, %v2018, %v2022
          %v2027 = vand.u32 2147483647, %v2015
          %vm2028 = vcmp.eq.f32.partialorder %v2027, 8.507059e+37
          %v2029 = vand.u32 %v2015, 2147483648
          %v2030 = vor.u32 1.1754944e-38, %v2029
          %v2031 = vsel %vm2028, %v2030, %v2026
          %v2032 = vmul.f32 1.0, %v2031
          %v2033 = vrcp.pop %v2016
          %v2034 = vmul.f32 %v2016, %v2033
          %v2035 = vsub.f32 1.0, %v2034
          %v2036 = vmul.f32 %v2033, %v2035
          %v2037 = vadd.f32 %v2033, %v2036
          %vm2038 = vweird.f32 %v2016
          %vm2039 = vweird.f32 %v2033
          %vm2040 = vmor %vm2038, %vm2039
          %v2041 = vsel %vm2040, %v2033, %v2037
          %v2042 = vand.u32 2147483647, %v2016
          %vm2043 = vcmp.eq.f32.partialorder %v2042, 8.507059e+37
          %v2044 = vand.u32 %v2016, 2147483648
          %v2045 = vor.u32 1.1754944e-38, %v2044
          %v2046 = vsel %vm2043, %v2045, %v2041
          %v2047 = vmul.f32 1.0, %v2046
          %v2048 = vrcp.pop %v2017
          %v2049 = vmul.f32 %v2017, %v2048
          %v2050 = vsub.f32 1.0, %v2049
          %v2051 = vmul.f32 %v2048, %v2050
          %v2052 = vadd.f32 %v2048, %v2051
          %vm2053 = vweird.f32 %v2017
          %vm2054 = vweird.f32 %v2048
          %vm2055 = vmor %vm2053, %vm2054
          %v2056 = vsel %vm2055, %v2048, %v2052
          %v2057 = vand.u32 2147483647, %v2017
          %vm2058 = vcmp.eq.f32.partialorder %v2057, 8.507059e+37
          %v2059 = vand.u32 %v2017, 2147483648
          %v2060 = vor.u32 1.1754944e-38, %v2059
          %v2061 = vsel %vm2058, %v2060, %v2056
          %v2062 = vmul.f32 1.0, %v2061
          %v2063 = vtanh.pop %v2005
          %v2064 = vmul.f32 %v2047, 0.0
          %v2065 = vmul.f32 %v2032, %v2063
          %v2066 = vadd.f32 %v2064, %v2065
          %v2067 = vtanh.pop %v2066
          %v2068 = vmul.f32 %v2062, %v2067
          %v2069 = vld [vmem:[#allocation2 + $0x20] sm:$0xff]
          %v2070 = vld [vmem:[#allocation2 + $0x28] sm:$0xff]
          %v2071 = vld [vmem:[#allocation2 + $0x30] sm:$0xff]
          %v2072 = vld [vmem:[#allocation2 + $0x38] sm:$0xff]
          %2073 = vmatpush.msra.mxu0 %v1914
          %2074 = vmatpush.msra.mxu0 %v1910
          %2075 = vmatpush.msra.mxu0 %v1906
          %2076 = vmatpush.msra.mxu0 %v1902
          %2077 = vmatpush.msra.mxu0 %v1898
          %2078 = vmatpush.msra.mxu0 %v1894
          %2079 = vmatpush.msra.mxu0 %v1890
          %2080 = vmatpush.msra.mxu0 %v1886
          %2081 = vmatpush.msra.mxu0 %v1882
          %2082 = vmatpush.msra.mxu0 %v1878
          %2083 = vmatpush.msra.mxu0 %v1874
          %2084 = vmatpush.msra.mxu0 %v1870
          %2085 = vmatpush.msra.mxu0 %v1866
          %2086 = vmatpush.msra.mxu0 %v1862
          %2087 = vmatpush.msra.mxu0 %v1858
          %2088 = vmatpush.msra.mxu0 %v1854
          %2089 = vmatmul.f32.gmra.mxu0 %v2068
          %v2090 = vpop.f32.mrf.mxu0
          %v2091 = vadd.f32 0.0, %v2090
          %2092 = vdwg.mxu0
          %2093 = vmatpush.msra.mxu0 %v1915
          %2094 = vmatpush.msra.mxu0 %v1911
          %2095 = vmatpush.msra.mxu0 %v1907
          %2096 = vmatpush.msra.mxu0 %v1903
          %2097 = vmatpush.msra.mxu0 %v1899
          %2098 = vmatpush.msra.mxu0 %v1895
          %2099 = vmatpush.msra.mxu0 %v1891
          %2100 = vmatpush.msra.mxu0 %v1887
          %2101 = vmatpush.msra.mxu0 %v1883
          %2102 = vmatpush.msra.mxu0 %v1879
          %2103 = vmatpush.msra.mxu0 %v1875
          %2104 = vmatpush.msra.mxu0 %v1871
          %2105 = vmatpush.msra.mxu0 %v1867
          %2106 = vmatpush.msra.mxu0 %v1863
          %2107 = vmatpush.msra.mxu0 %v1859
          %2108 = vmatpush.msra.mxu0 %v1855
          %2109 = vmatmul.f32.gmra.mxu0 %v2068
          %v2110 = vpop.f32.mrf.mxu0
          %v2111 = vadd.f32 0.0, %v2110
          %2112 = vdwg.mxu0
          %2113 = vmatpush.msra.mxu0 %v1916
          %2114 = vmatpush.msra.mxu0 %v1912
          %2115 = vmatpush.msra.mxu0 %v1908
          %2116 = vmatpush.msra.mxu0 %v1904
          %2117 = vmatpush.msra.mxu0 %v1900
          %2118 = vmatpush.msra.mxu0 %v1896
          %2119 = vmatpush.msra.mxu0 %v1892
          %2120 = vmatpush.msra.mxu0 %v1888
          %2121 = vmatpush.msra.mxu0 %v1884
          %2122 = vmatpush.msra.mxu0 %v1880
          %2123 = vmatpush.msra.mxu0 %v1876
          %2124 = vmatpush.msra.mxu0 %v1872
          %2125 = vmatpush.msra.mxu0 %v1868
          %2126 = vmatpush.msra.mxu0 %v1864
          %2127 = vmatpush.msra.mxu0 %v1860
          %2128 = vmatpush.msra.mxu0 %v1856
          %2129 = vmatmul.f32.gmra.mxu0 %v2068
          %v2130 = vpop.f32.mrf.mxu0
          %v2131 = vadd.f32 0.0, %v2130
          %2132 = vdwg.mxu0
          %2133 = vmatpush.msra.mxu0 %v1917
          %2134 = vmatpush.msra.mxu0 %v1913
          %2135 = vmatpush.msra.mxu0 %v1909
          %2136 = vmatpush.msra.mxu0 %v1905
          %2137 = vmatpush.msra.mxu0 %v1901
          %2138 = vmatpush.msra.mxu0 %v1897
          %2139 = vmatpush.msra.mxu0 %v1893
          %2140 = vmatpush.msra.mxu0 %v1889
          %2141 = vmatpush.msra.mxu0 %v1885
          %2142 = vmatpush.msra.mxu0 %v1881
          %2143 = vmatpush.msra.mxu0 %v1877
          %2144 = vmatpush.msra.mxu0 %v1873
          %2145 = vmatpush.msra.mxu0 %v1869
          %2146 = vmatpush.msra.mxu0 %v1865
          %2147 = vmatpush.msra.mxu0 %v1861
          %2148 = vmatpush.msra.mxu0 %v1857
          %2149 = vmatmul.f32.gmra.mxu0 %v2068
          %v2150 = vpop.f32.mrf.mxu0
          %v2151 = vadd.f32 0.0, %v2150
          %2152 = vdwg.mxu0
          %v2153 = vadd.f32 %v2069, %v2091
          %v2154 = vadd.f32 %v2070, %v2111
          %v2155 = vadd.f32 %v2071, %v2131
          %v2156 = vadd.f32 %v2072, %v2151
          %v2157 = vxor.u32 %v2153, 2147483648
          %v2158 = vxor.u32 %v2154, 2147483648
          %v2159 = vxor.u32 %v2155, 2147483648
          %v2160 = vmul.f32 %v2157, 1.442695
          %v2161 = vpow.pop %v2160
          %v2162 = vmul.f32 %v2158, 1.442695
          %v2163 = vpow.pop %v2162
          %v2164 = vmul.f32 %v2159, 1.442695
          %v2165 = vpow.pop %v2164
          %v2166 = vadd.f32 %v2161, 1.0
          %v2167 = vadd.f32 %v2163, 1.0
          %v2168 = vadd.f32 %v2165, 1.0
          %v2169 = vrcp.pop %v2166
          %v2170 = vmul.f32 %v2166, %v2169
          %v2171 = vsub.f32 1.0, %v2170
          %v2172 = vmul.f32 %v2169, %v2171
          %v2173 = vadd.f32 %v2169, %v2172
          %vm2174 = vweird.f32 %v2166
          %vm2175 = vweird.f32 %v2169
          %vm2176 = vmor %vm2174, %vm2175
          %v2177 = vsel %vm2176, %v2169, %v2173
          %v2178 = vand.u32 2147483647, %v2166
          %vm2179 = vcmp.eq.f32.partialorder %v2178, 8.507059e+37
          %v2180 = vand.u32 %v2166, 2147483648
          %v2181 = vor.u32 1.1754944e-38, %v2180
          %v2182 = vsel %vm2179, %v2181, %v2177
          %v2183 = vmul.f32 1.0, %v2182
          %v2184 = vrcp.pop %v2167
          %v2185 = vmul.f32 %v2167, %v2184
          %v2186 = vsub.f32 1.0, %v2185
          %v2187 = vmul.f32 %v2184, %v2186
          %v2188 = vadd.f32 %v2184, %v2187
          %vm2189 = vweird.f32 %v2167
          %vm2190 = vweird.f32 %v2184
          %vm2191 = vmor %vm2189, %vm2190
          %v2192 = vsel %vm2191, %v2184, %v2188
          %v2193 = vand.u32 2147483647, %v2167
          %vm2194 = vcmp.eq.f32.partialorder %v2193, 8.507059e+37
          %v2195 = vand.u32 %v2167, 2147483648
          %v2196 = vor.u32 1.1754944e-38, %v2195
          %v2197 = vsel %vm2194, %v2196, %v2192
          %v2198 = vmul.f32 1.0, %v2197
          %v2199 = vrcp.pop %v2168
          %v2200 = vmul.f32 %v2168, %v2199
          %v2201 = vsub.f32 1.0, %v2200
          %v2202 = vmul.f32 %v2199, %v2201
          %v2203 = vadd.f32 %v2199, %v2202
          %vm2204 = vweird.f32 %v2168
          %vm2205 = vweird.f32 %v2199
          %vm2206 = vmor %vm2204, %vm2205
          %v2207 = vsel %vm2206, %v2199, %v2203
          %v2208 = vand.u32 2147483647, %v2168
          %vm2209 = vcmp.eq.f32.partialorder %v2208, 8.507059e+37
          %v2210 = vand.u32 %v2168, 2147483648
          %v2211 = vor.u32 1.1754944e-38, %v2210
          %v2212 = vsel %vm2209, %v2211, %v2207
          %v2213 = vmul.f32 1.0, %v2212
          %v2214 = vtanh.pop %v2156
          %v2215 = vmul.f32 %v2198, %v2066
          %v2216 = vmul.f32 %v2183, %v2214
          %v2217 = vadd.f32 %v2215, %v2216
          %v2218 = vtanh.pop %v2217
          %v2219 = vmul.f32 %v2213, %v2218
          %v2220 = vld [vmem:[#allocation2 + $0x40] sm:$0xff]
          %v2221 = vld [vmem:[#allocation2 + $0x48] sm:$0xff]
          %v2222 = vld [vmem:[#allocation2 + $0x50] sm:$0xff]
          %v2223 = vld [vmem:[#allocation2 + $0x58] sm:$0xff]
          %2224 = vmatpush.msra.mxu0 %v1914
          %2225 = vmatpush.msra.mxu0 %v1910
          %2226 = vmatpush.msra.mxu0 %v1906
          %2227 = vmatpush.msra.mxu0 %v1902
          %2228 = vmatpush.msra.mxu0 %v1898
          %2229 = vmatpush.msra.mxu0 %v1894
          %2230 = vmatpush.msra.mxu0 %v1890
          %2231 = vmatpush.msra.mxu0 %v1886
          %2232 = vmatpush.msra.mxu0 %v1882
          %2233 = vmatpush.msra.mxu0 %v1878
          %2234 = vmatpush.msra.mxu0 %v1874
          %2235 = vmatpush.msra.mxu0 %v1870
          %2236 = vmatpush.msra.mxu0 %v1866
          %2237 = vmatpush.msra.mxu0 %v1862
          %2238 = vmatpush.msra.mxu0 %v1858
          %2239 = vmatpush.msra.mxu0 %v1854
          %2240 = vmatmul.f32.gmra.mxu0 %v2219
          %v2241 = vpop.f32.mrf.mxu0
          %v2242 = vadd.f32 0.0, %v2241
          %2243 = vdwg.mxu0
          %2244 = vmatpush.msra.mxu0 %v1915
          %2245 = vmatpush.msra.mxu0 %v1911
          %2246 = vmatpush.msra.mxu0 %v1907
          %2247 = vmatpush.msra.mxu0 %v1903
          %2248 = vmatpush.msra.mxu0 %v1899
          %2249 = vmatpush.msra.mxu0 %v1895
          %2250 = vmatpush.msra.mxu0 %v1891
          %2251 = vmatpush.msra.mxu0 %v1887
          %2252 = vmatpush.msra.mxu0 %v1883
          %2253 = vmatpush.msra.mxu0 %v1879
          %2254 = vmatpush.msra.mxu0 %v1875
          %2255 = vmatpush.msra.mxu0 %v1871
          %2256 = vmatpush.msra.mxu0 %v1867
          %2257 = vmatpush.msra.mxu0 %v1863
          %2258 = vmatpush.msra.mxu0 %v1859
          %2259 = vmatpush.msra.mxu0 %v1855
          %2260 = vmatmul.f32.gmra.mxu0 %v2219
          %v2261 = vpop.f32.mrf.mxu0
          %v2262 = vadd.f32 0.0, %v2261
          %2263 = vdwg.mxu0
          %2264 = vmatpush.msra.mxu0 %v1916
          %2265 = vmatpush.msra.mxu0 %v1912
          %2266 = vmatpush.msra.mxu0 %v1908
          %2267 = vmatpush.msra.mxu0 %v1904
          %2268 = vmatpush.msra.mxu0 %v1900
          %2269 = vmatpush.msra.mxu0 %v1896
          %2270 = vmatpush.msra.mxu0 %v1892
          %2271 = vmatpush.msra.mxu0 %v1888
          %2272 = vmatpush.msra.mxu0 %v1884
          %2273 = vmatpush.msra.mxu0 %v1880
          %2274 = vmatpush.msra.mxu0 %v1876
          %2275 = vmatpush.msra.mxu0 %v1872
          %2276 = vmatpush.msra.mxu0 %v1868
          %2277 = vmatpush.msra.mxu0 %v1864
          %2278 = vmatpush.msra.mxu0 %v1860
          %2279 = vmatpush.msra.mxu0 %v1856
          %2280 = vmatmul.f32.gmra.mxu0 %v2219
          %v2281 = vpop.f32.mrf.mxu0
          %v2282 = vadd.f32 0.0, %v2281
          %2283 = vdwg.mxu0
          %2284 = vmatpush.msra.mxu0 %v1917
          %2285 = vmatpush.msra.mxu0 %v1913
          %2286 = vmatpush.msra.mxu0 %v1909
          %2287 = vmatpush.msra.mxu0 %v1905
          %2288 = vmatpush.msra.mxu0 %v1901
          %2289 = vmatpush.msra.mxu0 %v1897
          %2290 = vmatpush.msra.mxu0 %v1893
          %2291 = vmatpush.msra.mxu0 %v1889
          %2292 = vmatpush.msra.mxu0 %v1885
          %2293 = vmatpush.msra.mxu0 %v1881
          %2294 = vmatpush.msra.mxu0 %v1877
          %2295 = vmatpush.msra.mxu0 %v1873
          %2296 = vmatpush.msra.mxu0 %v1869
          %2297 = vmatpush.msra.mxu0 %v1865
          %2298 = vmatpush.msra.mxu0 %v1861
          %2299 = vmatpush.msra.mxu0 %v1857
          %2300 = vmatmul.f32.gmra.mxu0 %v2219
          %v2301 = vpop.f32.mrf.mxu0
          %v2302 = vadd.f32 0.0, %v2301
          %2303 = vdwg.mxu0
          %v2304 = vadd.f32 %v2220, %v2242
          %v2305 = vadd.f32 %v2221, %v2262
          %v2306 = vadd.f32 %v2222, %v2282
          %v2307 = vadd.f32 %v2223, %v2302
          %v2308 = vxor.u32 %v2304, 2147483648
          %v2309 = vxor.u32 %v2305, 2147483648
          %v2310 = vxor.u32 %v2306, 2147483648
          %v2311 = vmul.f32 %v2308, 1.442695
          %v2312 = vpow.pop %v2311
          %v2313 = vmul.f32 %v2309, 1.442695
          %v2314 = vpow.pop %v2313
          %v2315 = vmul.f32 %v2310, 1.442695
          %v2316 = vpow.pop %v2315
          %v2317 = vadd.f32 %v2312, 1.0
          %v2318 = vadd.f32 %v2314, 1.0
          %v2319 = vadd.f32 %v2316, 1.0
          %v2320 = vrcp.pop %v2317
          %v2321 = vmul.f32 %v2317, %v2320
          %v2322 = vsub.f32 1.0, %v2321
          %v2323 = vmul.f32 %v2320, %v2322
          %v2324 = vadd.f32 %v2320, %v2323
          %vm2325 = vweird.f32 %v2317
          %vm2326 = vweird.f32 %v2320
          %vm2327 = vmor %vm2325, %vm2326
          %v2328 = vsel %vm2327, %v2320, %v2324
          %v2329 = vand.u32 2147483647, %v2317
          %vm2330 = vcmp.eq.f32.partialorder %v2329, 8.507059e+37
          %v2331 = vand.u32 %v2317, 2147483648
          %v2332 = vor.u32 1.1754944e-38, %v2331
          %v2333 = vsel %vm2330, %v2332, %v2328
          %v2334 = vmul.f32 1.0, %v2333
          %v2335 = vrcp.pop %v2318
          %v2336 = vmul.f32 %v2318, %v2335
          %v2337 = vsub.f32 1.0, %v2336
          %v2338 = vmul.f32 %v2335, %v2337
          %v2339 = vadd.f32 %v2335, %v2338
          %vm2340 = vweird.f32 %v2318
          %vm2341 = vweird.f32 %v2335
          %vm2342 = vmor %vm2340, %vm2341
          %v2343 = vsel %vm2342, %v2335, %v2339
          %v2344 = vand.u32 2147483647, %v2318
          %vm2345 = vcmp.eq.f32.partialorder %v2344, 8.507059e+37
          %v2346 = vand.u32 %v2318, 2147483648
          %v2347 = vor.u32 1.1754944e-38, %v2346
          %v2348 = vsel %vm2345, %v2347, %v2343
          %v2349 = vmul.f32 1.0, %v2348
          %v2350 = vrcp.pop %v2319
          %v2351 = vmul.f32 %v2319, %v2350
          %v2352 = vsub.f32 1.0, %v2351
          %v2353 = vmul.f32 %v2350, %v2352
          %v2354 = vadd.f32 %v2350, %v2353
          %vm2355 = vweird.f32 %v2319
          %vm2356 = vweird.f32 %v2350
          %vm2357 = vmor %vm2355, %vm2356
          %v2358 = vsel %vm2357, %v2350, %v2354
          %v2359 = vand.u32 2147483647, %v2319
          %vm2360 = vcmp.eq.f32.partialorder %v2359, 8.507059e+37
          %v2361 = vand.u32 %v2319, 2147483648
          %v2362 = vor.u32 1.1754944e-38, %v2361
          %v2363 = vsel %vm2360, %v2362, %v2358
          %v2364 = vmul.f32 1.0, %v2363
          %v2365 = vtanh.pop %v2307
          %v2366 = vmul.f32 %v2349, %v2217
          %v2367 = vmul.f32 %v2334, %v2365
          %v2368 = vadd.f32 %v2366, %v2367
          %v2369 = vtanh.pop %v2368
          %v2370 = vmul.f32 %v2364, %v2369
          %v2371 = vld [vmem:[#allocation2 + $0x60] sm:$0xff]
          %v2372 = vld [vmem:[#allocation2 + $0x68] sm:$0xff]
          %v2373 = vld [vmem:[#allocation2 + $0x70] sm:$0xff]
          %v2374 = vld [vmem:[#allocation2 + $0x78] sm:$0xff]
          %2375 = vmatpush.msra.mxu0 %v1914
          %2376 = vmatpush.msra.mxu0 %v1910
          %2377 = vmatpush.msra.mxu0 %v1906
          %2378 = vmatpush.msra.mxu0 %v1902
          %2379 = vmatpush.msra.mxu0 %v1898
          %2380 = vmatpush.msra.mxu0 %v1894
          %2381 = vmatpush.msra.mxu0 %v1890
          %2382 = vmatpush.msra.mxu0 %v1886
          %2383 = vmatpush.msra.mxu0 %v1882
          %2384 = vmatpush.msra.mxu0 %v1878
          %2385 = vmatpush.msra.mxu0 %v1874
          %2386 = vmatpush.msra.mxu0 %v1870
          %2387 = vmatpush.msra.mxu0 %v1866
          %2388 = vmatpush.msra.mxu0 %v1862
          %2389 = vmatpush.msra.mxu0 %v1858
          %2390 = vmatpush.msra.mxu0 %v1854
          %2391 = vmatmul.f32.gmra.mxu0 %v2370
          %v2392 = vpop.f32.mrf.mxu0
          %v2393 = vadd.f32 0.0, %v2392
          %2394 = vdwg.mxu0
          %2395 = vmatpush.msra.mxu0 %v1915
          %2396 = vmatpush.msra.mxu0 %v1911
          %2397 = vmatpush.msra.mxu0 %v1907
          %2398 = vmatpush.msra.mxu0 %v1903
          %2399 = vmatpush.msra.mxu0 %v1899
          %2400 = vmatpush.msra.mxu0 %v1895
          %2401 = vmatpush.msra.mxu0 %v1891
          %2402 = vmatpush.msra.mxu0 %v1887
          %2403 = vmatpush.msra.mxu0 %v1883
          %2404 = vmatpush.msra.mxu0 %v1879
          %2405 = vmatpush.msra.mxu0 %v1875
          %2406 = vmatpush.msra.mxu0 %v1871
          %2407 = vmatpush.msra.mxu0 %v1867
          %2408 = vmatpush.msra.mxu0 %v1863
          %2409 = vmatpush.msra.mxu0 %v1859
          %2410 = vmatpush.msra.mxu0 %v1855
          %2411 = vmatmul.f32.gmra.mxu0 %v2370
          %v2412 = vpop.f32.mrf.mxu0
          %v2413 = vadd.f32 0.0, %v2412
          %2414 = vdwg.mxu0
          %2415 = vmatpush.msra.mxu0 %v1916
          %2416 = vmatpush.msra.mxu0 %v1912
          %2417 = vmatpush.msra.mxu0 %v1908
          %2418 = vmatpush.msra.mxu0 %v1904
          %2419 = vmatpush.msra.mxu0 %v1900
          %2420 = vmatpush.msra.mxu0 %v1896
          %2421 = vmatpush.msra.mxu0 %v1892
          %2422 = vmatpush.msra.mxu0 %v1888
          %2423 = vmatpush.msra.mxu0 %v1884
          %2424 = vmatpush.msra.mxu0 %v1880
          %2425 = vmatpush.msra.mxu0 %v1876
          %2426 = vmatpush.msra.mxu0 %v1872
          %2427 = vmatpush.msra.mxu0 %v1868
          %2428 = vmatpush.msra.mxu0 %v1864
          %2429 = vmatpush.msra.mxu0 %v1860
          %2430 = vmatpush.msra.mxu0 %v1856
          %2431 = vmatmul.f32.gmra.mxu0 %v2370
          %v2432 = vpop.f32.mrf.mxu0
          %v2433 = vadd.f32 0.0, %v2432
          %2434 = vdwg.mxu0
          %2435 = vmatpush.msra.mxu0 %v1917
          %2436 = vmatpush.msra.mxu0 %v1913
          %2437 = vmatpush.msra.mxu0 %v1909
          %2438 = vmatpush.msra.mxu0 %v1905
          %2439 = vmatpush.msra.mxu0 %v1901
          %2440 = vmatpush.msra.mxu0 %v1897
          %2441 = vmatpush.msra.mxu0 %v1893
          %2442 = vmatpush.msra.mxu0 %v1889
          %2443 = vmatpush.msra.mxu0 %v1885
          %2444 = vmatpush.msra.mxu0 %v1881
          %2445 = vmatpush.msra.mxu0 %v1877
          %2446 = vmatpush.msra.mxu0 %v1873
          %2447 = vmatpush.msra.mxu0 %v1869
          %2448 = vmatpush.msra.mxu0 %v1865
          %2449 = vmatpush.msra.mxu0 %v1861
          %2450 = vmatpush.msra.mxu0 %v1857
          %2451 = vmatmul.f32.gmra.mxu0 %v2370
          %v2452 = vpop.f32.mrf.mxu0
          %v2453 = vadd.f32 0.0, %v2452
          %2454 = vdwg.mxu0
          %v2455 = vadd.f32 %v2371, %v2393
          %v2456 = vadd.f32 %v2372, %v2413
          %v2457 = vadd.f32 %v2373, %v2433
          %v2458 = vadd.f32 %v2374, %v2453
          %v2459 = vxor.u32 %v2455, 2147483648
          %v2460 = vxor.u32 %v2456, 2147483648
          %v2461 = vxor.u32 %v2457, 2147483648
          %v2462 = vmul.f32 %v2459, 1.442695
          %v2463 = vpow.pop %v2462
          %v2464 = vmul.f32 %v2460, 1.442695
          %v2465 = vpow.pop %v2464
          %v2466 = vmul.f32 %v2461, 1.442695
          %v2467 = vpow.pop %v2466
          %v2468 = vadd.f32 %v2463, 1.0
          %v2469 = vadd.f32 %v2465, 1.0
          %v2470 = vadd.f32 %v2467, 1.0
          %v2471 = vrcp.pop %v2468
          %v2472 = vmul.f32 %v2468, %v2471
          %v2473 = vsub.f32 1.0, %v2472
          %v2474 = vmul.f32 %v2471, %v2473
          %v2475 = vadd.f32 %v2471, %v2474
          %vm2476 = vweird.f32 %v2468
          %vm2477 = vweird.f32 %v2471
          %vm2478 = vmor %vm2476, %vm2477
          %v2479 = vsel %vm2478, %v2471, %v2475
          %v2480 = vand.u32 2147483647, %v2468
          %vm2481 = vcmp.eq.f32.partialorder %v2480, 8.507059e+37
          %v2482 = vand.u32 %v2468, 2147483648
          %v2483 = vor.u32 1.1754944e-38, %v2482
          %v2484 = vsel %vm2481, %v2483, %v2479
          %v2485 = vmul.f32 1.0, %v2484
          %v2486 = vrcp.pop %v2469
          %v2487 = vmul.f32 %v2469, %v2486
          %v2488 = vsub.f32 1.0, %v2487
          %v2489 = vmul.f32 %v2486, %v2488
          %v2490 = vadd.f32 %v2486, %v2489
          %vm2491 = vweird.f32 %v2469
          %vm2492 = vweird.f32 %v2486
          %vm2493 = vmor %vm2491, %vm2492
          %v2494 = vsel %vm2493, %v2486, %v2490
          %v2495 = vand.u32 2147483647, %v2469
          %vm2496 = vcmp.eq.f32.partialorder %v2495, 8.507059e+37
          %v2497 = vand.u32 %v2469, 2147483648
          %v2498 = vor.u32 1.1754944e-38, %v2497
          %v2499 = vsel %vm2496, %v2498, %v2494
          %v2500 = vmul.f32 1.0, %v2499
          %v2501 = vrcp.pop %v2470
          %v2502 = vmul.f32 %v2470, %v2501
          %v2503 = vsub.f32 1.0, %v2502
          %v2504 = vmul.f32 %v2501, %v2503
          %v2505 = vadd.f32 %v2501, %v2504
          %vm2506 = vweird.f32 %v2470
          %vm2507 = vweird.f32 %v2501
          %vm2508 = vmor %vm2506, %vm2507
          %v2509 = vsel %vm2508, %v2501, %v2505
          %v2510 = vand.u32 2147483647, %v2470
          %vm2511 = vcmp.eq.f32.partialorder %v2510, 8.507059e+37
          %v2512 = vand.u32 %v2470, 2147483648
          %v2513 = vor.u32 1.1754944e-38, %v2512
          %v2514 = vsel %vm2511, %v2513, %v2509
          %v2515 = vmul.f32 1.0, %v2514
          %v2516 = vtanh.pop %v2458
          %v2517 = vmul.f32 %v2500, %v2368
          %v2518 = vmul.f32 %v2485, %v2516
          %v2519 = vadd.f32 %v2517, %v2518
          %v2520 = vtanh.pop %v2519
          %v2521 = vmul.f32 %v2515, %v2520
          %v2522 = vld [vmem:[#allocation2 + $0x80] sm:$0xff]
          %v2523 = vld [vmem:[#allocation2 + $0x88] sm:$0xff]
          %v2524 = vld [vmem:[#allocation2 + $0x90] sm:$0xff]
          %v2525 = vld [vmem:[#allocation2 + $0x98] sm:$0xff]
          %2526 = vmatpush.msra.mxu0 %v1914
          %2527 = vmatpush.msra.mxu0 %v1910
          %2528 = vmatpush.msra.mxu0 %v1906
          %2529 = vmatpush.msra.mxu0 %v1902
          %2530 = vmatpush.msra.mxu0 %v1898
          %2531 = vmatpush.msra.mxu0 %v1894
          %2532 = vmatpush.msra.mxu0 %v1890
          %2533 = vmatpush.msra.mxu0 %v1886
          %2534 = vmatpush.msra.mxu0 %v1882
          %2535 = vmatpush.msra.mxu0 %v1878
          %2536 = vmatpush.msra.mxu0 %v1874
          %2537 = vmatpush.msra.mxu0 %v1870
          %2538 = vmatpush.msra.mxu0 %v1866
          %2539 = vmatpush.msra.mxu0 %v1862
          %2540 = vmatpush.msra.mxu0 %v1858
          %2541 = vmatpush.msra.mxu0 %v1854
          %2542 = vmatmul.f32.gmra.mxu0 %v2521
          %v2543 = vpop.f32.mrf.mxu0
          %v2544 = vadd.f32 0.0, %v2543
          %2545 = vdwg.mxu0
          %2546 = vmatpush.msra.mxu0 %v1915
          %2547 = vmatpush.msra.mxu0 %v1911
          %2548 = vmatpush.msra.mxu0 %v1907
          %2549 = vmatpush.msra.mxu0 %v1903
          %2550 = vmatpush.msra.mxu0 %v1899
          %2551 = vmatpush.msra.mxu0 %v1895
          %2552 = vmatpush.msra.mxu0 %v1891
          %2553 = vmatpush.msra.mxu0 %v1887
          %2554 = vmatpush.msra.mxu0 %v1883
          %2555 = vmatpush.msra.mxu0 %v1879
          %2556 = vmatpush.msra.mxu0 %v1875
          %2557 = vmatpush.msra.mxu0 %v1871
          %2558 = vmatpush.msra.mxu0 %v1867
          %2559 = vmatpush.msra.mxu0 %v1863
          %2560 = vmatpush.msra.mxu0 %v1859
          %2561 = vmatpush.msra.mxu0 %v1855
          %2562 = vmatmul.f32.gmra.mxu0 %v2521
          %v2563 = vpop.f32.mrf.mxu0
          %v2564 = vadd.f32 0.0, %v2563
          %2565 = vdwg.mxu0
          %2566 = vmatpush.msra.mxu0 %v1916
          %2567 = vmatpush.msra.mxu0 %v1912
          %2568 = vmatpush.msra.mxu0 %v1908
          %2569 = vmatpush.msra.mxu0 %v1904
          %2570 = vmatpush.msra.mxu0 %v1900
          %2571 = vmatpush.msra.mxu0 %v1896
          %2572 = vmatpush.msra.mxu0 %v1892
          %2573 = vmatpush.msra.mxu0 %v1888
          %2574 = vmatpush.msra.mxu0 %v1884
          %2575 = vmatpush.msra.mxu0 %v1880
          %2576 = vmatpush.msra.mxu0 %v1876
          %2577 = vmatpush.msra.mxu0 %v1872
          %2578 = vmatpush.msra.mxu0 %v1868
          %2579 = vmatpush.msra.mxu0 %v1864
          %2580 = vmatpush.msra.mxu0 %v1860
          %2581 = vmatpush.msra.mxu0 %v1856
          %2582 = vmatmul.f32.gmra.mxu0 %v2521
          %v2583 = vpop.f32.mrf.mxu0
          %v2584 = vadd.f32 0.0, %v2583
          %2585 = vdwg.mxu0
          %2586 = vmatpush.msra.mxu0 %v1917
          %2587 = vmatpush.msra.mxu0 %v1913
          %2588 = vmatpush.msra.mxu0 %v1909
          %2589 = vmatpush.msra.mxu0 %v1905
          %2590 = vmatpush.msra.mxu0 %v1901
          %2591 = vmatpush.msra.mxu0 %v1897
          %2592 = vmatpush.msra.mxu0 %v1893
          %2593 = vmatpush.msra.mxu0 %v1889
          %2594 = vmatpush.msra.mxu0 %v1885
          %2595 = vmatpush.msra.mxu0 %v1881
          %2596 = vmatpush.msra.mxu0 %v1877
          %2597 = vmatpush.msra.mxu0 %v1873
          %2598 = vmatpush.msra.mxu0 %v1869
          %2599 = vmatpush.msra.mxu0 %v1865
          %2600 = vmatpush.msra.mxu0 %v1861
          %2601 = vmatpush.msra.mxu0 %v1857
          %2602 = vmatmul.f32.gmra.mxu0 %v2521
          %v2603 = vpop.f32.mrf.mxu0
          %v2604 = vadd.f32 0.0, %v2603
          %2605 = vdwg.mxu0
          %v2606 = vadd.f32 %v2522, %v2544
          %v2607 = vadd.f32 %v2523, %v2564
          %v2608 = vadd.f32 %v2524, %v2584
          %v2609 = vadd.f32 %v2525, %v2604
          %v2610 = vxor.u32 %v2606, 2147483648
          %v2611 = vxor.u32 %v2607, 2147483648
          %v2612 = vxor.u32 %v2608, 2147483648
          %v2613 = vmul.f32 %v2610, 1.442695
          %v2614 = vpow.pop %v2613
          %v2615 = vmul.f32 %v2611, 1.442695
          %v2616 = vpow.pop %v2615
          %v2617 = vmul.f32 %v2612, 1.442695
          %v2618 = vpow.pop %v2617
          %v2619 = vadd.f32 %v2614, 1.0
          %v2620 = vadd.f32 %v2616, 1.0
          %v2621 = vadd.f32 %v2618, 1.0
          %v2622 = vrcp.pop %v2619
          %v2623 = vmul.f32 %v2619, %v2622
          %v2624 = vsub.f32 1.0, %v2623
          %v2625 = vmul.f32 %v2622, %v2624
          %v2626 = vadd.f32 %v2622, %v2625
          %vm2627 = vweird.f32 %v2619
          %vm2628 = vweird.f32 %v2622
          %vm2629 = vmor %vm2627, %vm2628
          %v2630 = vsel %vm2629, %v2622, %v2626
          %v2631 = vand.u32 2147483647, %v2619
          %vm2632 = vcmp.eq.f32.partialorder %v2631, 8.507059e+37
          %v2633 = vand.u32 %v2619, 2147483648
          %v2634 = vor.u32 1.1754944e-38, %v2633
          %v2635 = vsel %vm2632, %v2634, %v2630
          %v2636 = vmul.f32 1.0, %v2635
          %v2637 = vrcp.pop %v2620
          %v2638 = vmul.f32 %v2620, %v2637
          %v2639 = vsub.f32 1.0, %v2638
          %v2640 = vmul.f32 %v2637, %v2639
          %v2641 = vadd.f32 %v2637, %v2640
          %vm2642 = vweird.f32 %v2620
          %vm2643 = vweird.f32 %v2637
          %vm2644 = vmor %vm2642, %vm2643
          %v2645 = vsel %vm2644, %v2637, %v2641
          %v2646 = vand.u32 2147483647, %v2620
          %vm2647 = vcmp.eq.f32.partialorder %v2646, 8.507059e+37
          %v2648 = vand.u32 %v2620, 2147483648
          %v2649 = vor.u32 1.1754944e-38, %v2648
          %v2650 = vsel %vm2647, %v2649, %v2645
          %v2651 = vmul.f32 1.0, %v2650
          %v2652 = vrcp.pop %v2621
          %v2653 = vmul.f32 %v2621, %v2652
          %v2654 = vsub.f32 1.0, %v2653
          %v2655 = vmul.f32 %v2652, %v2654
          %v2656 = vadd.f32 %v2652, %v2655
          %vm2657 = vweird.f32 %v2621
          %vm2658 = vweird.f32 %v2652
          %vm2659 = vmor %vm2657, %vm2658
          %v2660 = vsel %vm2659, %v2652, %v2656
          %v2661 = vand.u32 2147483647, %v2621
          %vm2662 = vcmp.eq.f32.partialorder %v2661, 8.507059e+37
          %v2663 = vand.u32 %v2621, 2147483648
          %v2664 = vor.u32 1.1754944e-38, %v2663
          %v2665 = vsel %vm2662, %v2664, %v2660
          %v2666 = vmul.f32 1.0, %v2665
          %v2667 = vtanh.pop %v2609
          %v2668 = vmul.f32 %v2651, %v2519
          %v2669 = vmul.f32 %v2636, %v2667
          %v2670 = vadd.f32 %v2668, %v2669
          %v2671 = vtanh.pop %v2670
          %v2672 = vmul.f32 %v2666, %v2671
          %v2673 = vld [vmem:[#allocation2 + $0xa0] sm:$0xff]
          %v2674 = vld [vmem:[#allocation2 + $0xa8] sm:$0xff]
          %v2675 = vld [vmem:[#allocation2 + $0xb0] sm:$0xff]
          %v2676 = vld [vmem:[#allocation2 + $0xb8] sm:$0xff]
          %2677 = vmatpush.msra.mxu0 %v1914
          %2678 = vmatpush.msra.mxu0 %v1910
          %2679 = vmatpush.msra.mxu0 %v1906
          %2680 = vmatpush.msra.mxu0 %v1902
          %2681 = vmatpush.msra.mxu0 %v1898
          %2682 = vmatpush.msra.mxu0 %v1894
          %2683 = vmatpush.msra.mxu0 %v1890
          %2684 = vmatpush.msra.mxu0 %v1886
          %2685 = vmatpush.msra.mxu0 %v1882
          %2686 = vmatpush.msra.mxu0 %v1878
          %2687 = vmatpush.msra.mxu0 %v1874
          %2688 = vmatpush.msra.mxu0 %v1870
          %2689 = vmatpush.msra.mxu0 %v1866
          %2690 = vmatpush.msra.mxu0 %v1862
          %2691 = vmatpush.msra.mxu0 %v1858
          %2692 = vmatpush.msra.mxu0 %v1854
          %2693 = vmatmul.f32.gmra.mxu0 %v2672
          %v2694 = vpop.f32.mrf.mxu0
          %v2695 = vadd.f32 0.0, %v2694
          %2696 = vdwg.mxu0
          %2697 = vmatpush.msra.mxu0 %v1915
          %2698 = vmatpush.msra.mxu0 %v1911
          %2699 = vmatpush.msra.mxu0 %v1907
          %2700 = vmatpush.msra.mxu0 %v1903
          %2701 = vmatpush.msra.mxu0 %v1899
          %2702 = vmatpush.msra.mxu0 %v1895
          %2703 = vmatpush.msra.mxu0 %v1891
          %2704 = vmatpush.msra.mxu0 %v1887
          %2705 = vmatpush.msra.mxu0 %v1883
          %2706 = vmatpush.msra.mxu0 %v1879
          %2707 = vmatpush.msra.mxu0 %v1875
          %2708 = vmatpush.msra.mxu0 %v1871
          %2709 = vmatpush.msra.mxu0 %v1867
          %2710 = vmatpush.msra.mxu0 %v1863
          %2711 = vmatpush.msra.mxu0 %v1859
          %2712 = vmatpush.msra.mxu0 %v1855
          %2713 = vmatmul.f32.gmra.mxu0 %v2672
          %v2714 = vpop.f32.mrf.mxu0
          %v2715 = vadd.f32 0.0, %v2714
          %2716 = vdwg.mxu0
          %2717 = vmatpush.msra.mxu0 %v1916
          %2718 = vmatpush.msra.mxu0 %v1912
          %2719 = vmatpush.msra.mxu0 %v1908
          %2720 = vmatpush.msra.mxu0 %v1904
          %2721 = vmatpush.msra.mxu0 %v1900
          %2722 = vmatpush.msra.mxu0 %v1896
          %2723 = vmatpush.msra.mxu0 %v1892
          %2724 = vmatpush.msra.mxu0 %v1888
          %2725 = vmatpush.msra.mxu0 %v1884
          %2726 = vmatpush.msra.mxu0 %v1880
          %2727 = vmatpush.msra.mxu0 %v1876
          %2728 = vmatpush.msra.mxu0 %v1872
          %2729 = vmatpush.msra.mxu0 %v1868
          %2730 = vmatpush.msra.mxu0 %v1864
          %2731 = vmatpush.msra.mxu0 %v1860
          %2732 = vmatpush.msra.mxu0 %v1856
          %2733 = vmatmul.f32.gmra.mxu0 %v2672
          %v2734 = vpop.f32.mrf.mxu0
          %v2735 = vadd.f32 0.0, %v2734
          %2736 = vdwg.mxu0
          %2737 = vmatpush.msra.mxu0 %v1917
          %2738 = vmatpush.msra.mxu0 %v1913
          %2739 = vmatpush.msra.mxu0 %v1909
          %2740 = vmatpush.msra.mxu0 %v1905
          %2741 = vmatpush.msra.mxu0 %v1901
          %2742 = vmatpush.msra.mxu0 %v1897
          %2743 = vmatpush.msra.mxu0 %v1893
          %2744 = vmatpush.msra.mxu0 %v1889
          %2745 = vmatpush.msra.mxu0 %v1885
          %2746 = vmatpush.msra.mxu0 %v1881
          %2747 = vmatpush.msra.mxu0 %v1877
          %2748 = vmatpush.msra.mxu0 %v1873
          %2749 = vmatpush.msra.mxu0 %v1869
          %2750 = vmatpush.msra.mxu0 %v1865
          %2751 = vmatpush.msra.mxu0 %v1861
          %2752 = vmatpush.msra.mxu0 %v1857
          %2753 = vmatmul.f32.gmra.mxu0 %v2672
          %v2754 = vpop.f32.mrf.mxu0
          %v2755 = vadd.f32 0.0, %v2754
          %2756 = vdwg.mxu0
          %v2757 = vadd.f32 %v2673, %v2695
          %v2758 = vadd.f32 %v2674, %v2715
          %v2759 = vadd.f32 %v2675, %v2735
          %v2760 = vadd.f32 %v2676, %v2755
          %v2761 = vxor.u32 %v2757, 2147483648
          %v2762 = vxor.u32 %v2758, 2147483648
          %v2763 = vxor.u32 %v2759, 2147483648
          %v2764 = vmul.f32 %v2761, 1.442695
          %v2765 = vpow.pop %v2764
          %v2766 = vmul.f32 %v2762, 1.442695
          %v2767 = vpow.pop %v2766
          %v2768 = vmul.f32 %v2763, 1.442695
          %v2769 = vpow.pop %v2768
          %v2770 = vadd.f32 %v2765, 1.0
          %v2771 = vadd.f32 %v2767, 1.0
          %v2772 = vadd.f32 %v2769, 1.0
          %v2773 = vrcp.pop %v2770
          %v2774 = vmul.f32 %v2770, %v2773
          %v2775 = vsub.f32 1.0, %v2774
          %v2776 = vmul.f32 %v2773, %v2775
          %v2777 = vadd.f32 %v2773, %v2776
          %vm2778 = vweird.f32 %v2770
          %vm2779 = vweird.f32 %v2773
          %vm2780 = vmor %vm2778, %vm2779
          %v2781 = vsel %vm2780, %v2773, %v2777
          %v2782 = vand.u32 2147483647, %v2770
          %vm2783 = vcmp.eq.f32.partialorder %v2782, 8.507059e+37
          %v2784 = vand.u32 %v2770, 2147483648
          %v2785 = vor.u32 1.1754944e-38, %v2784
          %v2786 = vsel %vm2783, %v2785, %v2781
          %v2787 = vmul.f32 1.0, %v2786
          %v2788 = vrcp.pop %v2771
          %v2789 = vmul.f32 %v2771, %v2788
          %v2790 = vsub.f32 1.0, %v2789
          %v2791 = vmul.f32 %v2788, %v2790
          %v2792 = vadd.f32 %v2788, %v2791
          %vm2793 = vweird.f32 %v2771
          %vm2794 = vweird.f32 %v2788
          %vm2795 = vmor %vm2793, %vm2794
          %v2796 = vsel %vm2795, %v2788, %v2792
          %v2797 = vand.u32 2147483647, %v2771
          %vm2798 = vcmp.eq.f32.partialorder %v2797, 8.507059e+37
          %v2799 = vand.u32 %v2771, 2147483648
          %v2800 = vor.u32 1.1754944e-38, %v2799
          %v2801 = vsel %vm2798, %v2800, %v2796
          %v2802 = vmul.f32 1.0, %v2801
          %v2803 = vrcp.pop %v2772
          %v2804 = vmul.f32 %v2772, %v2803
          %v2805 = vsub.f32 1.0, %v2804
          %v2806 = vmul.f32 %v2803, %v2805
          %v2807 = vadd.f32 %v2803, %v2806
          %vm2808 = vweird.f32 %v2772
          %vm2809 = vweird.f32 %v2803
          %vm2810 = vmor %vm2808, %vm2809
          %v2811 = vsel %vm2810, %v2803, %v2807
          %v2812 = vand.u32 2147483647, %v2772
          %vm2813 = vcmp.eq.f32.partialorder %v2812, 8.507059e+37
          %v2814 = vand.u32 %v2772, 2147483648
          %v2815 = vor.u32 1.1754944e-38, %v2814
          %v2816 = vsel %vm2813, %v2815, %v2811
          %v2817 = vmul.f32 1.0, %v2816
          %v2818 = vtanh.pop %v2760
          %v2819 = vmul.f32 %v2802, %v2670
          %v2820 = vmul.f32 %v2787, %v2818
          %v2821 = vadd.f32 %v2819, %v2820
          %v2822 = vtanh.pop %v2821
          %v2823 = vmul.f32 %v2817, %v2822
          %v2824 = vld [vmem:[#allocation2 + $0xc0] sm:$0xff]
          %v2825 = vld [vmem:[#allocation2 + $0xc8] sm:$0xff]
          %v2826 = vld [vmem:[#allocation2 + $0xd0] sm:$0xff]
          %v2827 = vld [vmem:[#allocation2 + $0xd8] sm:$0xff]
          %2828 = vmatpush.msra.mxu0 %v1914
          %2829 = vmatpush.msra.mxu0 %v1910
          %2830 = vmatpush.msra.mxu0 %v1906
          %2831 = vmatpush.msra.mxu0 %v1902
          %2832 = vmatpush.msra.mxu0 %v1898
          %2833 = vmatpush.msra.mxu0 %v1894
          %2834 = vmatpush.msra.mxu0 %v1890
          %2835 = vmatpush.msra.mxu0 %v1886
          %2836 = vmatpush.msra.mxu0 %v1882
          %2837 = vmatpush.msra.mxu0 %v1878
          %2838 = vmatpush.msra.mxu0 %v1874
          %2839 = vmatpush.msra.mxu0 %v1870
          %2840 = vmatpush.msra.mxu0 %v1866
          %2841 = vmatpush.msra.mxu0 %v1862
          %2842 = vmatpush.msra.mxu0 %v1858
          %2843 = vmatpush.msra.mxu0 %v1854
          %2844 = vmatmul.f32.gmra.mxu0 %v2823
          %v2845 = vpop.f32.mrf.mxu0
          %v2846 = vadd.f32 0.0, %v2845
          %2847 = vdwg.mxu0
          %2848 = vmatpush.msra.mxu0 %v1915
          %2849 = vmatpush.msra.mxu0 %v1911
          %2850 = vmatpush.msra.mxu0 %v1907
          %2851 = vmatpush.msra.mxu0 %v1903
          %2852 = vmatpush.msra.mxu0 %v1899
          %2853 = vmatpush.msra.mxu0 %v1895
          %2854 = vmatpush.msra.mxu0 %v1891
          %2855 = vmatpush.msra.mxu0 %v1887
          %2856 = vmatpush.msra.mxu0 %v1883
          %2857 = vmatpush.msra.mxu0 %v1879
          %2858 = vmatpush.msra.mxu0 %v1875
          %2859 = vmatpush.msra.mxu0 %v1871
          %2860 = vmatpush.msra.mxu0 %v1867
          %2861 = vmatpush.msra.mxu0 %v1863
          %2862 = vmatpush.msra.mxu0 %v1859
          %2863 = vmatpush.msra.mxu0 %v1855
          %2864 = vmatmul.f32.gmra.mxu0 %v2823
          %v2865 = vpop.f32.mrf.mxu0
          %v2866 = vadd.f32 0.0, %v2865
          %2867 = vdwg.mxu0
          %2868 = vmatpush.msra.mxu0 %v1916
          %2869 = vmatpush.msra.mxu0 %v1912
          %2870 = vmatpush.msra.mxu0 %v1908
          %2871 = vmatpush.msra.mxu0 %v1904
          %2872 = vmatpush.msra.mxu0 %v1900
          %2873 = vmatpush.msra.mxu0 %v1896
          %2874 = vmatpush.msra.mxu0 %v1892
          %2875 = vmatpush.msra.mxu0 %v1888
          %2876 = vmatpush.msra.mxu0 %v1884
          %2877 = vmatpush.msra.mxu0 %v1880
          %2878 = vmatpush.msra.mxu0 %v1876
          %2879 = vmatpush.msra.mxu0 %v1872
          %2880 = vmatpush.msra.mxu0 %v1868
          %2881 = vmatpush.msra.mxu0 %v1864
          %2882 = vmatpush.msra.mxu0 %v1860
          %2883 = vmatpush.msra.mxu0 %v1856
          %2884 = vmatmul.f32.gmra.mxu0 %v2823
          %v2885 = vpop.f32.mrf.mxu0
          %v2886 = vadd.f32 0.0, %v2885
          %2887 = vdwg.mxu0
          %2888 = vmatpush.msra.mxu0 %v1917
          %2889 = vmatpush.msra.mxu0 %v1913
          %2890 = vmatpush.msra.mxu0 %v1909
          %2891 = vmatpush.msra.mxu0 %v1905
          %2892 = vmatpush.msra.mxu0 %v1901
          %2893 = vmatpush.msra.mxu0 %v1897
          %2894 = vmatpush.msra.mxu0 %v1893
          %2895 = vmatpush.msra.mxu0 %v1889
          %2896 = vmatpush.msra.mxu0 %v1885
          %2897 = vmatpush.msra.mxu0 %v1881
          %2898 = vmatpush.msra.mxu0 %v1877
          %2899 = vmatpush.msra.mxu0 %v1873
          %2900 = vmatpush.msra.mxu0 %v1869
          %2901 = vmatpush.msra.mxu0 %v1865
          %2902 = vmatpush.msra.mxu0 %v1861
          %2903 = vmatpush.msra.mxu0 %v1857
          %2904 = vmatmul.f32.gmra.mxu0 %v2823
          %v2905 = vpop.f32.mrf.mxu0
          %v2906 = vadd.f32 0.0, %v2905
          %2907 = vdwg.mxu0
          %v2908 = vadd.f32 %v2824, %v2846
          %v2909 = vadd.f32 %v2825, %v2866
          %v2910 = vadd.f32 %v2826, %v2886
          %v2911 = vadd.f32 %v2827, %v2906
          %v2912 = vxor.u32 %v2908, 2147483648
          %v2913 = vxor.u32 %v2909, 2147483648
          %v2914 = vxor.u32 %v2910, 2147483648
          %v2915 = vmul.f32 %v2912, 1.442695
          %v2916 = vpow.pop %v2915
          %v2917 = vmul.f32 %v2913, 1.442695
          %v2918 = vpow.pop %v2917
          %v2919 = vmul.f32 %v2914, 1.442695
          %v2920 = vpow.pop %v2919
          %v2921 = vadd.f32 %v2916, 1.0
          %v2922 = vadd.f32 %v2918, 1.0
          %v2923 = vadd.f32 %v2920, 1.0
          %v2924 = vrcp.pop %v2921
          %v2925 = vmul.f32 %v2921, %v2924
          %v2926 = vsub.f32 1.0, %v2925
          %v2927 = vmul.f32 %v2924, %v2926
          %v2928 = vadd.f32 %v2924, %v2927
          %vm2929 = vweird.f32 %v2921
          %vm2930 = vweird.f32 %v2924
          %vm2931 = vmor %vm2929, %vm2930
          %v2932 = vsel %vm2931, %v2924, %v2928
          %v2933 = vand.u32 2147483647, %v2921
          %vm2934 = vcmp.eq.f32.partialorder %v2933, 8.507059e+37
          %v2935 = vand.u32 %v2921, 2147483648
          %v2936 = vor.u32 1.1754944e-38, %v2935
          %v2937 = vsel %vm2934, %v2936, %v2932
          %v2938 = vmul.f32 1.0, %v2937
          %v2939 = vrcp.pop %v2922
          %v2940 = vmul.f32 %v2922, %v2939
          %v2941 = vsub.f32 1.0, %v2940
          %v2942 = vmul.f32 %v2939, %v2941
          %v2943 = vadd.f32 %v2939, %v2942
          %vm2944 = vweird.f32 %v2922
          %vm2945 = vweird.f32 %v2939
          %vm2946 = vmor %vm2944, %vm2945
          %v2947 = vsel %vm2946, %v2939, %v2943
          %v2948 = vand.u32 2147483647, %v2922
          %vm2949 = vcmp.eq.f32.partialorder %v2948, 8.507059e+37
          %v2950 = vand.u32 %v2922, 2147483648
          %v2951 = vor.u32 1.1754944e-38, %v2950
          %v2952 = vsel %vm2949, %v2951, %v2947
          %v2953 = vmul.f32 1.0, %v2952
          %v2954 = vrcp.pop %v2923
          %v2955 = vmul.f32 %v2923, %v2954
          %v2956 = vsub.f32 1.0, %v2955
          %v2957 = vmul.f32 %v2954, %v2956
          %v2958 = vadd.f32 %v2954, %v2957
          %vm2959 = vweird.f32 %v2923
          %vm2960 = vweird.f32 %v2954
          %vm2961 = vmor %vm2959, %vm2960
          %v2962 = vsel %vm2961, %v2954, %v2958
          %v2963 = vand.u32 2147483647, %v2923
          %vm2964 = vcmp.eq.f32.partialorder %v2963, 8.507059e+37
          %v2965 = vand.u32 %v2923, 2147483648
          %v2966 = vor.u32 1.1754944e-38, %v2965
          %v2967 = vsel %vm2964, %v2966, %v2962
          %v2968 = vmul.f32 1.0, %v2967
          %v2969 = vtanh.pop %v2911
          %v2970 = vmul.f32 %v2953, %v2821
          %v2971 = vmul.f32 %v2938, %v2969
          %v2972 = vadd.f32 %v2970, %v2971
          %v2973 = vtanh.pop %v2972
          %v2974 = vmul.f32 %v2968, %v2973
          %v2975 = vld [vmem:[#allocation2 + $0xe0] sm:$0xff]
          %v2976 = vld [vmem:[#allocation2 + $0xe8] sm:$0xff]
          %v2977 = vld [vmem:[#allocation2 + $0xf0] sm:$0xff]
          %v2978 = vld [vmem:[#allocation2 + $0xf8] sm:$0xff]
          %2979 = vmatpush.msra.mxu0 %v1914
          %2980 = vmatpush.msra.mxu0 %v1910
          %2981 = vmatpush.msra.mxu0 %v1906
          %2982 = vmatpush.msra.mxu0 %v1902
          %2983 = vmatpush.msra.mxu0 %v1898
          %2984 = vmatpush.msra.mxu0 %v1894
          %2985 = vmatpush.msra.mxu0 %v1890
          %2986 = vmatpush.msra.mxu0 %v1886
          %2987 = vmatpush.msra.mxu0 %v1882
          %2988 = vmatpush.msra.mxu0 %v1878
          %2989 = vmatpush.msra.mxu0 %v1874
          %2990 = vmatpush.msra.mxu0 %v1870
          %2991 = vmatpush.msra.mxu0 %v1866
          %2992 = vmatpush.msra.mxu0 %v1862
          %2993 = vmatpush.msra.mxu0 %v1858
          %2994 = vmatpush.msra.mxu0 %v1854
          %2995 = vmatmul.f32.gmra.mxu0 %v2974
          %v2996 = vpop.f32.mrf.mxu0
          %v2997 = vadd.f32 0.0, %v2996
          %2998 = vdwg.mxu0
          %2999 = vmatpush.msra.mxu0 %v1915
          %3000 = vmatpush.msra.mxu0 %v1911
          %3001 = vmatpush.msra.mxu0 %v1907
          %3002 = vmatpush.msra.mxu0 %v1903
          %3003 = vmatpush.msra.mxu0 %v1899
          %3004 = vmatpush.msra.mxu0 %v1895
          %3005 = vmatpush.msra.mxu0 %v1891
          %3006 = vmatpush.msra.mxu0 %v1887
          %3007 = vmatpush.msra.mxu0 %v1883
          %3008 = vmatpush.msra.mxu0 %v1879
          %3009 = vmatpush.msra.mxu0 %v1875
          %3010 = vmatpush.msra.mxu0 %v1871
          %3011 = vmatpush.msra.mxu0 %v1867
          %3012 = vmatpush.msra.mxu0 %v1863
          %3013 = vmatpush.msra.mxu0 %v1859
          %3014 = vmatpush.msra.mxu0 %v1855
          %3015 = vmatmul.f32.gmra.mxu0 %v2974
          %v3016 = vpop.f32.mrf.mxu0
          %v3017 = vadd.f32 0.0, %v3016
          %3018 = vdwg.mxu0
          %3019 = vmatpush.msra.mxu0 %v1916
          %3020 = vmatpush.msra.mxu0 %v1912
          %3021 = vmatpush.msra.mxu0 %v1908
          %3022 = vmatpush.msra.mxu0 %v1904
          %3023 = vmatpush.msra.mxu0 %v1900
          %3024 = vmatpush.msra.mxu0 %v1896
          %3025 = vmatpush.msra.mxu0 %v1892
          %3026 = vmatpush.msra.mxu0 %v1888
          %3027 = vmatpush.msra.mxu0 %v1884
          %3028 = vmatpush.msra.mxu0 %v1880
          %3029 = vmatpush.msra.mxu0 %v1876
          %3030 = vmatpush.msra.mxu0 %v1872
          %3031 = vmatpush.msra.mxu0 %v1868
          %3032 = vmatpush.msra.mxu0 %v1864
          %3033 = vmatpush.msra.mxu0 %v1860
          %3034 = vmatpush.msra.mxu0 %v1856
          %3035 = vmatmul.f32.gmra.mxu0 %v2974
          %v3036 = vpop.f32.mrf.mxu0
          %v3037 = vadd.f32 0.0, %v3036
          %3038 = vdwg.mxu0
          %3039 = vmatpush.msra.mxu0 %v1917
          %3040 = vmatpush.msra.mxu0 %v1913
          %3041 = vmatpush.msra.mxu0 %v1909
          %3042 = vmatpush.msra.mxu0 %v1905
          %3043 = vmatpush.msra.mxu0 %v1901
          %3044 = vmatpush.msra.mxu0 %v1897
          %3045 = vmatpush.msra.mxu0 %v1893
          %3046 = vmatpush.msra.mxu0 %v1889
          %3047 = vmatpush.msra.mxu0 %v1885
          %3048 = vmatpush.msra.mxu0 %v1881
          %3049 = vmatpush.msra.mxu0 %v1877
          %3050 = vmatpush.msra.mxu0 %v1873
          %3051 = vmatpush.msra.mxu0 %v1869
          %3052 = vmatpush.msra.mxu0 %v1865
          %3053 = vmatpush.msra.mxu0 %v1861
          %3054 = vmatpush.msra.mxu0 %v1857
          %3055 = vmatmul.f32.gmra.mxu0 %v2974
          %v3056 = vpop.f32.mrf.mxu0
          %v3057 = vadd.f32 0.0, %v3056
          %3058 = vdwg.mxu0
          %v3059 = vadd.f32 %v2975, %v2997
          %v3060 = vadd.f32 %v2976, %v3017
          %v3061 = vadd.f32 %v2977, %v3037
          %v3062 = vadd.f32 %v2978, %v3057
          %v3063 = vxor.u32 %v3059, 2147483648
          %v3064 = vxor.u32 %v3060, 2147483648
          %v3065 = vxor.u32 %v3061, 2147483648
          %v3066 = vmul.f32 %v3063, 1.442695
          %v3067 = vpow.pop %v3066
          %v3068 = vmul.f32 %v3064, 1.442695
          %v3069 = vpow.pop %v3068
          %v3070 = vmul.f32 %v3065, 1.442695
          %v3071 = vpow.pop %v3070
          %v3072 = vadd.f32 %v3067, 1.0
          %v3073 = vadd.f32 %v3069, 1.0
          %v3074 = vadd.f32 %v3071, 1.0
          %v3075 = vrcp.pop %v3072
          %v3076 = vmul.f32 %v3072, %v3075
          %v3077 = vsub.f32 1.0, %v3076
          %v3078 = vmul.f32 %v3075, %v3077
          %v3079 = vadd.f32 %v3075, %v3078
          %vm3080 = vweird.f32 %v3072
          %vm3081 = vweird.f32 %v3075
          %vm3082 = vmor %vm3080, %vm3081
          %v3083 = vsel %vm3082, %v3075, %v3079
          %v3084 = vand.u32 2147483647, %v3072
          %vm3085 = vcmp.eq.f32.partialorder %v3084, 8.507059e+37
          %v3086 = vand.u32 %v3072, 2147483648
          %v3087 = vor.u32 1.1754944e-38, %v3086
          %v3088 = vsel %vm3085, %v3087, %v3083
          %v3089 = vmul.f32 1.0, %v3088
          %v3090 = vrcp.pop %v3073
          %v3091 = vmul.f32 %v3073, %v3090
          %v3092 = vsub.f32 1.0, %v3091
          %v3093 = vmul.f32 %v3090, %v3092
          %v3094 = vadd.f32 %v3090, %v3093
          %vm3095 = vweird.f32 %v3073
          %vm3096 = vweird.f32 %v3090
          %vm3097 = vmor %vm3095, %vm3096
          %v3098 = vsel %vm3097, %v3090, %v3094
          %v3099 = vand.u32 2147483647, %v3073
          %vm3100 = vcmp.eq.f32.partialorder %v3099, 8.507059e+37
          %v3101 = vand.u32 %v3073, 2147483648
          %v3102 = vor.u32 1.1754944e-38, %v3101
          %v3103 = vsel %vm3100, %v3102, %v3098
          %v3104 = vmul.f32 1.0, %v3103
          %v3105 = vrcp.pop %v3074
          %v3106 = vmul.f32 %v3074, %v3105
          %v3107 = vsub.f32 1.0, %v3106
          %v3108 = vmul.f32 %v3105, %v3107
          %v3109 = vadd.f32 %v3105, %v3108
          %vm3110 = vweird.f32 %v3074
          %vm3111 = vweird.f32 %v3105
          %vm3112 = vmor %vm3110, %vm3111
          %v3113 = vsel %vm3112, %v3105, %v3109
          %v3114 = vand.u32 2147483647, %v3074
          %vm3115 = vcmp.eq.f32.partialorder %v3114, 8.507059e+37
          %v3116 = vand.u32 %v3074, 2147483648
          %v3117 = vor.u32 1.1754944e-38, %v3116
          %v3118 = vsel %vm3115, %v3117, %v3113
          %v3119 = vmul.f32 1.0, %v3118
          %v3120 = vtanh.pop %v3062
          %v3121 = vmul.f32 %v3104, %v2972
          %v3122 = vmul.f32 %v3089, %v3120
          %v3123 = vadd.f32 %v3121, %v3122
          %v3124 = vtanh.pop %v3123
          %v3125 = vmul.f32 %v3119, %v3124
          %v3126 = vld [vmem:[#allocation10] sm:$0x1]
          %v3128 = vperm.slane %v3126, 0
          %v3130 = vmul.f32 %v3125, %v3128
          %3131 = vadd.xlane.f32.xlu0 %v3130
          %v3132 = vpop.xlane.xlu0 %3131
          %v3133 = vld [vmem:[#allocation3] sm:$0x1]
          %v3135 = vperm.slane %v3133, 0
          %v3137 = vadd.f32 %v3132, %v3135
          %v3138 = vxor.u32 %v3137, 2147483648
          %v3139 = vmul.f32 %v3138, 1.442695
          %v3140 = vpow.pop %v3139
          %v3141 = vadd.f32 %v3140, 1.0
          %v3142 = vrcp.pop %v3141
          %v3143 = vmul.f32 %v3141, %v3142
          %v3144 = vsub.f32 1.0, %v3143
          %v3145 = vmul.f32 %v3142, %v3144
          %v3146 = vadd.f32 %v3142, %v3145
          %vm3147 = vweird.f32 %v3141
          %vm3148 = vweird.f32 %v3142
          %vm3149 = vmor %vm3147, %vm3148
          %v3150 = vsel %vm3149, %v3142, %v3146
          %v3151 = vand.u32 2147483647, %v3141
          %vm3152 = vcmp.eq.f32.partialorder %v3151, 8.507059e+37
          %v3153 = vand.u32 %v3141, 2147483648
          %v3154 = vor.u32 1.1754944e-38, %v3153
          %v3155 = vsel %vm3152, %v3154, %v3150
          %v3156 = vmul.f32 1.0, %v3155
          %vm3157 = vcmask 7168
          %3158 = vst.msk [vmem:[%s6] sm:$0xff] %vm3157, %v3156
        $region91: #{lstm_forward_pallas.1} parent=62 // pred_fallthru
          _
        // Predicated region
        $region92: #{lstm_forward_pallas.1} parent=62 // pred_check
          %p3159 = pneg %p173
        $region93: #{lstm_forward_pallas.1} parent=62 // pred_check_branch
          %3161 = sbr.rel (%p3159) target = $region95
        $region94: #{lstm_forward_pallas.1} parent=62 // pred_region
          _
        $region95: #{lstm_forward_pallas.1} parent=62 // pred_fallthru
          _
        // Predicated region
        $region96: #{lstm_forward_pallas.1} parent=62 // pred_check
          %p3162 = pneg %p173
        $region97: #{lstm_forward_pallas.1} parent=62 // pred_check_branch
          %3164 = sbr.rel (%p3162) target = $region99
        $region98: #{lstm_forward_pallas.1} parent=62 // pred_region
          _
        $region99: #{lstm_forward_pallas.1} parent=62 // pred_fallthru
          _
      $region63: #{lstm_forward_pallas.1} parent=5 // pred_fallthru
        _
      %p3165 = scmp.le.s32.totalorder 2, %s19
      // Predicated region
      $region100: #{lstm_forward_pallas.1} parent=5 // pred_check
        %p3166 = pneg %p3165
      $region101: #{lstm_forward_pallas.1} parent=5 // pred_check_branch
        %3168 = sbr.rel (%p3166) target = $region103
      $region102: #{lstm_forward_pallas.1} parent=5 // pred_region
        %s3169 = ssub.s32 %s19, 2
      $region103: #{lstm_forward_pallas.1} parent=5 // pred_fallthru
        _
    $region6: #{lstm_forward_pallas.1} parent=1 // loop_footer
      %s23 = sadd.s32 1, %s19
    $region7: #{lstm_forward_pallas.1} parent=1 // loop_footer_branch
      %18 = sbr.rel target = $region3
    $region8: #{lstm_forward_pallas.1} parent=1 // loop_exit
      _
    %3170 = vsyncpa [#allocation6], 1
    %s3171 = scalar_lea.sflag [#allocation6], 1
    %3172 = vsyncpa %s3171, 1
    %3173 = vsyncpa [#allocation8], 1
    %3174 = vsyncpa [#allocation11], 1

</llo_original>
